<compile_context>
chip_gen: v5e
topology: v5e:2x2
jax: 0.10.0
libtpu: 0.0.40
codegen_flags: <defaults>
</compile_context>

<pallas_src>
import functools

import jax
import jax.numpy as jnp
from jax.experimental import pallas as pl
from jax.experimental.pallas import tpu as pltpu

LEAKY_SLOPE = 0.01   # PyTorch LeakyReLU default negative_slope
BN_EPS = 1e-5        # PyTorch BatchNorm2d default eps


# ---------------------------------------------------------------------------
# Kernel 1: ConvTranspose2d(k=2, s=2) as one GEMM per (batch, row-tile).
# Output pixel (2i+di, 2j+dj, c) = x[i, j, :] @ W[:, (di,dj,c)] + b[c], so the
# four 2x2 taps are the GEMM output columns (ordered (di, dj, c)).  The kernel
# stores (TH, 2, W1, 2*Cup) so the full (N, H1, 2, W1, 2*Cup) array reshapes
# for free (row-major) to the NHWC image (N, 2H1, 2W1, Cup).
# ---------------------------------------------------------------------------
def _upconv_kernel(x_ref, w_ref, b_ref, o_ref):
    # x_ref: (1, TH, W1, Cin); w_ref: (Cin, 4*Cup); b_ref: (1, 4*Cup)
    # o_ref: (1, TH, 2, W1, 2*Cup)
    two_cup = o_ref.shape[-1]
    acc = jax.lax.dot_general(
        x_ref[0], w_ref[...], (((2,), (0,)), ((), ())),
        preferred_element_type=jnp.float32)                   # (TH, W1, 4*Cup)
    acc = acc + b_ref[...]
    # Direct stores (no concatenate): di=0 -> even output rows, di=1 -> odd.
    o_ref[0, :, 0] = acc[:, :, :two_cup].astype(o_ref.dtype)
    o_ref[0, :, 1] = acc[:, :, two_cup:].astype(o_ref.dtype)


def _pick_row_tile(h1, w1, cin, cup, budget_bytes=8 << 20):
    """Largest divisor of h1 whose double-buffered in/out blocks fit budget."""
    per_row = 4 * 2 * (w1 * cin + 2 * w1 * 2 * cup)   # f32, x2 double-buffer
    max_rows = max(1, budget_bytes // per_row)
    if h1 <= max_rows:
        return h1
    best = 1
    for th in range(1, int(max_rows) + 1):
        if h1 % th == 0:
            best = th
    return best   # degenerates to 1 only for prime h1 with a huge row footprint


def conv_transpose2x2_stride2(x_nhwc, w2, b4):
    """x_nhwc: (N, H1, W1, Cin); w2: (Cin, 4*Cup) cols ordered (di, dj, c);
    b4: (1, 4*Cup).  Returns NHWC (N, 2*H1, 2*W1, Cup)."""
    N, H1, W1, Cin = x_nhwc.shape
    four_cup = w2.shape[1]
    Cup = four_cup // 4
    TH = _pick_row_tile(H1, W1, Cin, Cup)
    grid = (N, H1 // TH)

    out = pl.pallas_call(
        _upconv_kernel,
        out_shape=jax.ShapeDtypeStruct((N, H1, 2, W1, 2 * Cup), jnp.float32),
        grid=grid,
        in_specs=[
            pl.BlockSpec((1, TH, W1, Cin), lambda n, r: (n, r, 0, 0)),
            pl.BlockSpec((Cin, four_cup), lambda n, r: (0, 0)),
            pl.BlockSpec((1, four_cup), lambda n, r: (0, 0)),
        ],
        out_specs=pl.BlockSpec((1, TH, 2, W1, 2 * Cup),
                               lambda n, r: (n, r, 0, 0, 0)),
        compiler_params=pltpu.CompilerParams(
            dimension_semantics=("parallel", "parallel")),
    )(x_nhwc, w2, b4)

    # free (metadata-only) reshape: (N, H1, 2, W1, 2*Cup) -> (N, 2H1, 2W1, Cup)
    return out.reshape(N, 2 * H1, 2 * W1, Cup)


# ---------------------------------------------------------------------------
# Kernel 2: fused  F.pad + concat + Conv3x3 + BN + LReLU + Conv3x3 + BN + LReLU
# The padded/concatenated input and the `mid` activation (with zero halos)
# live only in VMEM scratch.  conv1 runs 9 full-K GEMMs over the merged
# buffer; conv2 accumulates channel-major (Cout, H*W) so the output is
# lane-dense and no transpose is ever needed.
# ---------------------------------------------------------------------------
def _doubleconv_kernel(x2_ref, up_ref, w1_ref, s1_ref, t1_ref,
                       w2t_ref, s2_ref, t2_ref, o_ref,
                       xp_ref, midp_ref, *, py, px):
    # x2_ref: (1, H2, W2, Cskip)   up_ref: (1, Hu, Wu, Cup)
    # w1_ref: (3, 3, Cin, Cmid)    w2t_ref: (3, 3, Cout, Cmid)
    # s1/t1: (1, Cmid)             s2/t2: (Cout, 1)
    # o_ref: (1, Cout, H2*W2)
    # scratch: xp (H2+2, W2+2, Cin), midp (H2+2, W2+2, Cmid)
    H2, W2, Cskip = x2_ref.shape[1], x2_ref.shape[2], x2_ref.shape[3]
    Hu, Wu, Cup = up_ref.shape[1], up_ref.shape[2], up_ref.shape[3]
    Cin = Cskip + Cup
    Cmid = w1_ref.shape[3]
    Cout = w2t_ref.shape[2]
    pb = H2 - Hu - py                      # static bottom / right pad amounts
    pr = W2 - Wu - px

    # ---- zero only the 1-pixel conv halo (+ static F.pad strips). The
    #      interior is fully overwritten every step, so no full memset. -------
    zrow = jnp.zeros((1, W2 + 2, Cin), jnp.float32)
    zcol = jnp.zeros((H2 + 2, 1, Cin), jnp.float32)
    xp_ref[0:1, :, :] = zrow
    xp_ref[H2 + 1:H2 + 2, :, :] = zrow
    xp_ref[:, 0:1, :] = zcol
    xp_ref[:, W2 + 1:W2 + 2, :] = zcol
    if py > 0:
        xp_ref[1:1 + py, 1:1 + W2, Cskip:] = jnp.zeros((py, W2, Cup), jnp.float32)
    if pb > 0:
        xp_ref[1 + py + Hu:1 + H2, 1:1 + W2, Cskip:] = jnp.zeros((pb, W2, Cup), jnp.float32)
    if px > 0:
        xp_ref[1:1 + H2, 1:1 + px, Cskip:] = jnp.zeros((H2, px, Cup), jnp.float32)
    if pr > 0:
        xp_ref[1:1 + H2, 1 + px + Wu:1 + W2, Cskip:] = jnp.zeros((H2, pr, Cup), jnp.float32)

    # ---- F.pad + channel concat fused into the merged scratch --------------
    xp_ref[1:1 + H2, 1:1 + W2, :Cskip] = x2_ref[0]
    xp_ref[1 + py:1 + py + Hu, 1 + px:1 + px + Wu, Cskip:] = up_ref[0]

    # ---- conv1 (3x3, pad=1, no bias) + BN1 + LeakyReLU ----------------------
    acc1 = jnp.zeros((H2, W2, Cmid), jnp.float32)
    for kh in range(3):
        slab = xp_ref[kh:kh + H2, :, :]                      # (H2, W2+2, Cin)
        for kw in range(3):
            acc1 = acc1 + jax.lax.dot_general(
                slab[:, kw:kw + W2, :], w1_ref[kh, kw],
                (((2,), (0,)), ((), ())), preferred_element_type=jnp.float32)
    y1 = acc1 * s1_ref[...] + t1_ref[...]
    y1 = jnp.where(y1 >= 0, y1, LEAKY_SLOPE * y1)

    # ---- keep `mid` (with zero conv halo) in VMEM; zero halo strips only ----
    zrow = jnp.zeros((1, W2 + 2, Cmid), jnp.float32)
    zcol = jnp.zeros((H2 + 2, 1, Cmid), jnp.float32)
    midp_ref[0:1, :, :] = zrow
    midp_ref[H2 + 1:H2 + 2, :, :] = zrow
    midp_ref[:, 0:1, :] = zcol
    midp_ref[:, W2 + 1:W2 + 2, :] = zcol
    midp_ref[1:1 + H2, 1:1 + W2, :] = y1

    # ---- conv2 (3x3, pad=1, no bias) + BN2 + LeakyReLU, channel-major -------
    acc2 = jnp.zeros((Cout, H2 * W2), jnp.float32)
    for kh in range(3):
        slab = midp_ref[kh:kh + H2, :, :]                    # (H2, W2+2, Cmid)
        for kw in range(3):
            rhs = slab[:, kw:kw + W2, :].reshape(H2 * W2, Cmid)
            acc2 = acc2 + jax.lax.dot_general(
                w2t_ref[kh, kw], rhs,
                (((1,), (1,)), ((), ())), preferred_element_type=jnp.float32)
    y2 = acc2 * s2_ref[...] + t2_ref[...]
    y2 = jnp.where(y2 >= 0, y2, LEAKY_SLOPE * y2)
    o_ref[0] = y2.astype(o_ref.dtype)                        # lane-dense store


def fused_pad_concat_doubleconv(x2_nhwc, up_nhwc, params, diffY, diffX):
    """x2_nhwc: (N, H2, W2, Cskip); up_nhwc: (N, Hu, Wu, Cup).
    Returns NCHW (N, Cout, H2, W2)."""
    N, H2, W2, Cskip = x2_nhwc.shape
    _, Hu, Wu, Cup = up_nhwc.shape
    assert diffY >= 0 and diffX >= 0, "up-sampled map must not exceed the skip"
    Cin = Cskip + Cup
    Cmid = params["c1_w"].shape[3]
    Cout = params["c2_wt"].shape[2]
    py, px = diffY // 2, diffX // 2

    kernel = functools.partial(_doubleconv_kernel, py=py, px=px)

    out = pl.pallas_call(
        kernel,
        out_shape=jax.ShapeDtypeStruct((N, Cout, H2 * W2), jnp.float32),
        grid=(N,),
        in_specs=[
            pl.BlockSpec((1, H2, W2, Cskip), lambda n: (n, 0, 0, 0)),
            pl.BlockSpec((1, Hu, Wu, Cup), lambda n: (n, 0, 0, 0)),
            pl.BlockSpec((3, 3, Cin, Cmid), lambda n: (0, 0, 0, 0)),
            pl.BlockSpec((1, Cmid), lambda n: (0, 0)),
            pl.BlockSpec((1, Cmid), lambda n: (0, 0)),
            pl.BlockSpec((3, 3, Cout, Cmid), lambda n: (0, 0, 0, 0)),
            pl.BlockSpec((Cout, 1), lambda n: (0, 0)),
            pl.BlockSpec((Cout, 1), lambda n: (0, 0)),
        ],
        out_specs=pl.BlockSpec((1, Cout, H2 * W2), lambda n: (n, 0, 0)),
        scratch_shapes=[
            pltpu.VMEM((H2 + 2, W2 + 2, Cin), jnp.float32),
            pltpu.VMEM((H2 + 2, W2 + 2, Cmid), jnp.float32),
        ],
        compiler_params=pltpu.CompilerParams(
            dimension_semantics=("parallel",)),
    )(x2_nhwc, up_nhwc,
      params["c1_w"], params["bn1_scale"], params["bn1_shift"],
      params["c2_wt"], params["bn2_scale"], params["bn2_shift"])

    # free reshape: (N, Cout, H2*W2) -> NCHW (N, Cout, H2, W2)
    return out.reshape(N, Cout, H2, W2)


# ---------------------------------------------------------------------------
# Parameters: deterministic synthetic weights; all kernel-side layouts
# (transposes, bias tiling, BN folding) are precomputed here.  Raw torch-layout
# copies are kept for the pure-JAX reference.
# ---------------------------------------------------------------------------
def _bn_fold(gamma, beta, mean, var):
    scale = gamma / jnp.sqrt(var + BN_EPS)
    shift = beta - mean * scale
    return scale, shift


def init_params(in_channels, out_channels):
    mid_channels = out_channels          # DoubleConv default
    cup = in_channels // 2
    keys = jax.random.split(jax.random.PRNGKey(42), 12)
    p = {}

    # ConvTranspose2d(in, in//2, 2, 2): torch weight (Cin, Cup, 2, 2) + bias
    up_w = 0.1 * jax.random.normal(keys[0], (in_channels, cup, 2, 2), jnp.float32)
    up_b = 0.1 * jax.random.normal(keys[1], (cup,), jnp.float32)
    p["raw_up_w"], p["raw_up_b"] = up_w, up_b
    # (Cin, Cup, 2, 2) -> (Cin, 2, 2, Cup) -> (Cin, 4*Cup); col = (di*2+dj)*Cup+c
    p["up_w2"] = jnp.transpose(up_w, (0, 2, 3, 1)).reshape(in_channels, 4 * cup)
    p["up_b4"] = jnp.tile(up_b, 4).reshape(1, 4 * cup)

    # Conv1: torch (Cmid, Cin, 3, 3), no bias
    c1_w = 0.1 * jax.random.normal(
        keys[2], (mid_channels, in_channels, 3, 3), jnp.float32)
    p["raw_c1_w"] = c1_w
    p["c1_w"] = jnp.transpose(c1_w, (2, 3, 1, 0))            # (3,3,Cin,Cmid)
    g1 = 1.0 + 0.1 * jax.random.normal(keys[3], (mid_channels,), jnp.float32)
    b1 = 0.1 * jax.random.normal(keys[4], (mid_channels,), jnp.float32)
    m1 = 0.1 * jax.random.normal(keys[5], (mid_channels,), jnp.float32)
    v1 = 0.5 + jax.random.uniform(keys[6], (mid_channels,), jnp.float32)
    p["raw_g1"], p["raw_b1"], p["raw_m1"], p["raw_v1"] = g1, b1, m1, v1
    s1, t1 = _bn_fold(g1, b1, m1, v1)
    p["bn1_scale"] = s1.reshape(1, mid_channels)
    p["bn1_shift"] = t1.reshape(1, mid_channels)

    # Conv2: torch (Cout, Cmid, 3, 3), no bias
    c2_w = 0.1 * jax.random.normal(
        keys[7], (out_channels, mid_channels, 3, 3), jnp.float32)
    p["raw_c2_w"] = c2_w
    p["c2_wt"] = jnp.transpose(c2_w, (2, 3, 0, 1))           # (3,3,Cout,Cmid)
    g2 = 1.0 + 0.1 * jax.random.normal(keys[8], (out_channels,), jnp.float32)
    b2 = 0.1 * jax.random.normal(keys[9], (out_channels,), jnp.float32)
    m2 = 0.1 * jax.random.normal(keys[10], (out_channels,), jnp.float32)
    v2 = 0.5 + jax.random.uniform(keys[11], (out_channels,), jnp.float32)
    p["raw_g2"], p["raw_b2"], p["raw_m2"], p["raw_v2"] = g2, b2, m2, v2
    s2, t2 = _bn_fold(g2, b2, m2, v2)
    p["bn2_scale"] = s2.reshape(out_channels, 1)
    p["bn2_shift"] = t2.reshape(out_channels, 1)
    return p


# ---------------------------------------------------------------------------
# Full forward pass (public interface keeps the PyTorch NCHW convention).
# ---------------------------------------------------------------------------
def up_forward(x1_nchw, x2_nchw, params):
    x1_nhwc = jnp.transpose(x1_nchw, (0, 2, 3, 1))
    x2_nhwc = jnp.transpose(x2_nchw, (0, 2, 3, 1))

    # x1 = self.up(x1)  (2x2-tap scatter folded into the output layout -> free)
    up = conv_transpose2x2_stride2(x1_nhwc, params["up_w2"], params["up_b4"])

    # F.pad + cat + DoubleConv fused into one kernel (pads/concat/mid in VMEM)
    diffY = x2_nhwc.shape[1] - up.shape[1]
    diffX = x2_nhwc.shape[2] - up.shape[2]
    return fused_pad_concat_doubleconv(x2_nhwc, up, params, diffY, diffX)


# ---------------------------------------------------------------------------
# Pure-JAX reference (inference-mode BN), for a numerical sanity check.
# ---------------------------------------------------------------------------
def up_forward_ref(x1, x2, p):
    N, _, H1, W1 = x1.shape
    Cup = p["raw_up_w"].shape[1]
    tmp = jnp.einsum("nchw,cokl->nohkwl", x1, p["raw_up_w"])
    up = tmp.reshape(N, Cup, 2 * H1, 2 * W1) + p["raw_up_b"][None, :, None, None]
    diffY = x2.shape[2] - up.shape[2]
    diffX = x2.shape[3] - up.shape[3]
    up = jnp.pad(up, ((0, 0), (0, 0),
                      (diffY // 2, diffY - diffY // 2),
                      (diffX // 2, diffX - diffX // 2)))
    x = jnp.concatenate([x2, up], axis=1)

    def conv_bn_lrelu(x, w, g, b, m, v):
        y = jax.lax.conv_general_dilated(
            x, w, (1, 1), ((1, 1), (1, 1)),
            dimension_numbers=("NCHW", "OIHW", "NCHW"))
        y = ((y - m[None, :, None, None])
             / jnp.sqrt(v[None, :, None, None] + BN_EPS)
             * g[None, :, None, None] + b[None, :, None, None])
        return jnp.where(y >= 0, y, LEAKY_SLOPE * y)

    y = conv_bn_lrelu(x, p["raw_c1_w"], p["raw_g1"], p["raw_b1"],
                      p["raw_m1"], p["raw_v1"])
    y = conv_bn_lrelu(y, p["raw_c2_w"], p["raw_g2"], p["raw_b2"],
                      p["raw_m2"], p["raw_v2"])
    return y


if __name__ == "__main__":
    in_channels, out_channels = 16, 8
    N, H, W = 2, 8, 8

    key = jax.random.PRNGKey(0)
    k1, k2 = jax.random.split(key)
    # x1: coarse feature map (in_channels); x2: skip connection (in_channels//2)
    x1 = jax.random.normal(k1, (N, in_channels, H, W), jnp.float32)
    x2 = jax.random.normal(k2, (N, in_channels // 2, 2 * H, 2 * W), jnp.float32)

    params = init_params(in_channels, out_channels)
    y = jax.jit(up_forward)(x1, x2, params)
    jax.block_until_ready(y)

    assert y.shape == (N, out_channels, 2 * H, 2 * W), y.shape
    assert bool(jnp.all(jnp.isfinite(y)))

    y_ref = up_forward_ref(x1, x2, params)
    assert bool(jnp.allclose(y, y_ref, rtol=5e-2, atol=5e-2)), (
        float(jnp.max(jnp.abs(y - y_ref))))
    print("KERNEL_OK")
</pallas_src>

<mosaic_0001>
module attributes {stable_mosaic.version = 11 : i64} {
  func.func @_upconv_kernel(%arg0: i32, %arg1: i32, %arg2: memref<1x8x8x16xf32, #tpu.memory_space<vmem>>, %arg3: memref<16x32xf32, #tpu.memory_space<vmem>>, %arg4: memref<1x32xf32, #tpu.memory_space<vmem>>, %arg5: memref<1x8x2x8x16xf32, #tpu.memory_space<vmem>>) attributes {dimension_semantics = [#tpu.dimension_semantics<parallel>, #tpu.dimension_semantics<parallel>], iteration_bounds = array<i64: 2, 1>, scalar_prefetch = 0 : i64, scratch_operands = 0 : i64, tpu.core_type = #tpu.core_type<tc>, window_params = [{transform_indices = @transform_0, window_bounds = array<i64: 1, 8, 8, 16>}, {pipeline_mode = #tpu.pipeline_mode<synchronous>, transform_indices = @transform_1, window_bounds = array<i64: 16, 32>}, {pipeline_mode = #tpu.pipeline_mode<synchronous>, transform_indices = @transform_2, window_bounds = array<i64: 1, 32>}, {transform_indices = @transform_3, window_bounds = array<i64: 1, 8, 2, 8, 16>}]} {
    %c0 = arith.constant 0 : index
    %c0_0 = arith.constant 0 : index
    %c0_1 = arith.constant 0 : index
    %c0_2 = arith.constant 0 : index
    %0 = vector.load %arg2[%c0, %c0_0, %c0_1, %c0_2] : memref<1x8x8x16xf32, #tpu.memory_space<vmem>>, vector<1x8x8x16xf32>
    %1 = vector.shape_cast %0 : vector<1x8x8x16xf32> to vector<8x8x16xf32>
    %c0_3 = arith.constant 0 : index
    %c0_4 = arith.constant 0 : index
    %2 = vector.load %arg3[%c0_3, %c0_4] : memref<16x32xf32, #tpu.memory_space<vmem>>, vector<16x32xf32>
    %cst = arith.constant dense<0.000000e+00> : vector<8x8x32xf32>
    %3 = tpu.matmul %1, %2, %cst {dimension_numbers = #tpu.dot_dimension_numbers<[2], [0], [0, 1], [1], [0, 0, 0, 1, 1, 1], [], []>} : vector<8x8x16xf32>, vector<16x32xf32>, vector<8x8x32xf32> -> vector<8x8x32xf32>
    %c0_5 = arith.constant 0 : index
    %c0_6 = arith.constant 0 : index
    %4 = vector.load %arg4[%c0_5, %c0_6] : memref<1x32xf32, #tpu.memory_space<vmem>>, vector<1x32xf32>
    %5 = vector.shape_cast %4 : vector<1x32xf32> to vector<1x1x32xf32>
    %6 = vector.broadcast %5 : vector<1x1x32xf32> to vector<8x8x32xf32>
    %7 = arith.addf %3, %6 : vector<8x8x32xf32>
    %8 = vector.extract_strided_slice %7 {offsets = [0, 0, 0], sizes = [8, 8, 16], strides = [1, 1, 1]} : vector<8x8x32xf32> to vector<8x8x16xf32>
    %c0_7 = arith.constant 0 : index
    %c0_8 = arith.constant 0 : index
    %c0_9 = arith.constant 0 : index
    %c0_10 = arith.constant 0 : index
    %c0_11 = arith.constant 0 : index
    %9 = vector.load %arg5[%c0_7, %c0_8, %c0_9, %c0_10, %c0_11] : memref<1x8x2x8x16xf32, #tpu.memory_space<vmem>>, vector<1x8x1x8x16xf32>
    %10 = vector.shape_cast %9 : vector<1x8x1x8x16xf32> to vector<8x8x16xf32>
    %11 = vector.shape_cast %8 : vector<8x8x16xf32> to vector<1x8x1x8x16xf32>
    tpu.vector_store %arg5[%c0_7, %c0_8, %c0_9, %c0_10, %c0_11], %11 {strides = array<i32>} : memref<1x8x2x8x16xf32, #tpu.memory_space<vmem>>, vector<1x8x1x8x16xf32>,
    %12 = vector.extract_strided_slice %7 {offsets = [0, 0, 16], sizes = [8, 8, 16], strides = [1, 1, 1]} : vector<8x8x32xf32> to vector<8x8x16xf32>
    %c0_12 = arith.constant 0 : index
    %c0_13 = arith.constant 0 : index
    %c1 = arith.constant 1 : index
    %c0_14 = arith.constant 0 : index
    %c0_15 = arith.constant 0 : index
    %13 = vector.load %arg5[%c0_12, %c0_13, %c1, %c0_14, %c0_15] : memref<1x8x2x8x16xf32, #tpu.memory_space<vmem>>, vector<1x8x1x8x16xf32>
    %14 = vector.shape_cast %13 : vector<1x8x1x8x16xf32> to vector<8x8x16xf32>
    %15 = vector.shape_cast %12 : vector<8x8x16xf32> to vector<1x8x1x8x16xf32>
    tpu.vector_store %arg5[%c0_12, %c0_13, %c1, %c0_14, %c0_15], %15 {strides = array<i32>} : memref<1x8x2x8x16xf32, #tpu.memory_space<vmem>>, vector<1x8x1x8x16xf32>,
    return
  }
  func.func @transform_0(%arg0: i32, %arg1: i32) -> (i32, i32, i32, i32) {
    %c0_i32 = arith.constant 0 : i32
    %c0_i32_0 = arith.constant 0 : i32
    %c0_i32_1 = arith.constant 0 : i32
    return %arg0, %arg1, %c0_i32, %c0_i32_0 : i32, i32, i32, i32
  }
  func.func @transform_1(%arg0: i32, %arg1: i32) -> (i32, i32) {
    %c0_i32 = arith.constant 0 : i32
    %c0_i32_0 = arith.constant 0 : i32
    %c0_i32_1 = arith.constant 0 : i32
    return %c0_i32, %c0_i32_0 : i32, i32
  }
  func.func @transform_2(%arg0: i32, %arg1: i32) -> (i32, i32) {
    %c0_i32 = arith.constant 0 : i32
    %c0_i32_0 = arith.constant 0 : i32
    %c0_i32_1 = arith.constant 0 : i32
    return %c0_i32, %c0_i32_0 : i32, i32
  }
  func.func @transform_3(%arg0: i32, %arg1: i32) -> (i32, i32, i32, i32, i32) {
    %c0_i32 = arith.constant 0 : i32
    %c0_i32_0 = arith.constant 0 : i32
    %c0_i32_1 = arith.constant 0 : i32
    %c0_i32_2 = arith.constant 0 : i32
    return %arg0, %arg1, %c0_i32, %c0_i32_0, %c0_i32_1 : i32, i32, i32, i32, i32
  }
}

module attributes {stable_mosaic.version = 11 : i64} {
  func.func @_doubleconv_kernel(%arg0: i32, %arg1: memref<1x16x16x8xf32, #tpu.memory_space<vmem>>, %arg2: memref<1x16x16x8xf32, #tpu.memory_space<vmem>>, %arg3: memref<3x3x16x8xf32, #tpu.memory_space<vmem>>, %arg4: memref<1x8xf32, #tpu.memory_space<vmem>>, %arg5: memref<1x8xf32, #tpu.memory_space<vmem>>, %arg6: memref<3x3x8x8xf32, #tpu.memory_space<vmem>>, %arg7: memref<8x1xf32, #tpu.memory_space<vmem>>, %arg8: memref<8x1xf32, #tpu.memory_space<vmem>>, %arg9: memref<1x8x256xf32, #tpu.memory_space<vmem>>, %arg10: memref<18x18x16xf32, #tpu.memory_space<vmem>>, %arg11: memref<18x18x8xf32, #tpu.memory_space<vmem>>) attributes {dimension_semantics = [#tpu.dimension_semantics<parallel>], iteration_bounds = array<i64: 2>, scalar_prefetch = 0 : i64, scratch_operands = 2 : i64, tpu.core_type = #tpu.core_type<tc>, window_params = [{transform_indices = @transform_0, window_bounds = array<i64: 1, 16, 16, 8>}, {transform_indices = @transform_1, window_bounds = array<i64: 1, 16, 16, 8>}, {pipeline_mode = #tpu.pipeline_mode<synchronous>, transform_indices = @transform_2, window_bounds = array<i64: 3, 3, 16, 8>}, {pipeline_mode = #tpu.pipeline_mode<synchronous>, transform_indices = @transform_3, window_bounds = array<i64: 1, 8>}, {pipeline_mode = #tpu.pipeline_mode<synchronous>, transform_indices = @transform_4, window_bounds = array<i64: 1, 8>}, {pipeline_mode = #tpu.pipeline_mode<synchronous>, transform_indices = @transform_5, window_bounds = array<i64: 3, 3, 8, 8>}, {pipeline_mode = #tpu.pipeline_mode<synchronous>, transform_indices = @transform_6, window_bounds = array<i64: 8, 1>}, {pipeline_mode = #tpu.pipeline_mode<synchronous>, transform_indices = @transform_7, window_bounds = array<i64: 8, 1>}, {transform_indices = @transform_8, window_bounds = array<i64: 1, 8, 256>}]} {
    %cst = arith.constant 0.000000e+00 : f32
    %0 = vector.broadcast %cst : f32 to vector<1x18x16xf32>
    %cst_0 = arith.constant 0.000000e+00 : f32
    %1 = vector.broadcast %cst_0 : f32 to vector<18x1x16xf32>
    %c0 = arith.constant 0 : index
    %c0_1 = arith.constant 0 : index
    %c0_2 = arith.constant 0 : index
    %2 = vector.load %arg10[%c0, %c0_1, %c0_2] : memref<18x18x16xf32, #tpu.memory_space<vmem>>, vector<1x18x16xf32>
    tpu.vector_store %arg10[%c0, %c0_1, %c0_2], %0 {strides = array<i32>} : memref<18x18x16xf32, #tpu.memory_space<vmem>>, vector<1x18x16xf32>,
    %c17 = arith.constant 17 : index
    %c0_3 = arith.constant 0 : index
    %c0_4 = arith.constant 0 : index
    %3 = vector.load %arg10[%c17, %c0_3, %c0_4] : memref<18x18x16xf32, #tpu.memory_space<vmem>>, vector<1x18x16xf32>
    tpu.vector_store %arg10[%c17, %c0_3, %c0_4], %0 {strides = array<i32>} : memref<18x18x16xf32, #tpu.memory_space<vmem>>, vector<1x18x16xf32>,
    %c0_5 = arith.constant 0 : index
    %c0_6 = arith.constant 0 : index
    %c0_7 = arith.constant 0 : index
    %4 = vector.load %arg10[%c0_5, %c0_6, %c0_7] : memref<18x18x16xf32, #tpu.memory_space<vmem>>, vector<18x1x16xf32>
    tpu.vector_store %arg10[%c0_5, %c0_6, %c0_7], %1 {strides = array<i32>} : memref<18x18x16xf32, #tpu.memory_space<vmem>>, vector<18x1x16xf32>,
    %c0_8 = arith.constant 0 : index
    %c17_9 = arith.constant 17 : index
    %c0_10 = arith.constant 0 : index
    %5 = vector.load %arg10[%c0_8, %c17_9, %c0_10] : memref<18x18x16xf32, #tpu.memory_space<vmem>>, vector<18x1x16xf32>
    tpu.vector_store %arg10[%c0_8, %c17_9, %c0_10], %1 {strides = array<i32>} : memref<18x18x16xf32, #tpu.memory_space<vmem>>, vector<18x1x16xf32>,
    %c0_11 = arith.constant 0 : index
    %c0_12 = arith.constant 0 : index
    %c0_13 = arith.constant 0 : index
    %c0_14 = arith.constant 0 : index
    %6 = vector.load %arg1[%c0_11, %c0_12, %c0_13, %c0_14] : memref<1x16x16x8xf32, #tpu.memory_space<vmem>>, vector<1x16x16x8xf32>
    %7 = vector.shape_cast %6 : vector<1x16x16x8xf32> to vector<16x16x8xf32>
    %c1 = arith.constant 1 : index
    %c1_15 = arith.constant 1 : index
    %c0_16 = arith.constant 0 : index
    %8 = vector.load %arg10[%c1, %c1_15, %c0_16] : memref<18x18x16xf32, #tpu.memory_space<vmem>>, vector<16x16x8xf32>
    tpu.vector_store %arg10[%c1, %c1_15, %c0_16], %7 {strides = array<i32>} : memref<18x18x16xf32, #tpu.memory_space<vmem>>, vector<16x16x8xf32>,
    %c0_17 = arith.constant 0 : index
    %c0_18 = arith.constant 0 : index
    %c0_19 = arith.constant 0 : index
    %c0_20 = arith.constant 0 : index
    %9 = vector.load %arg2[%c0_17, %c0_18, %c0_19, %c0_20] : memref<1x16x16x8xf32, #tpu.memory_space<vmem>>, vector<1x16x16x8xf32>
    %10 = vector.shape_cast %9 : vector<1x16x16x8xf32> to vector<16x16x8xf32>
    %c1_21 = arith.constant 1 : index
    %c1_22 = arith.constant 1 : index
    %c8 = arith.constant 8 : index
    %11 = vector.load %arg10[%c1_21, %c1_22, %c8] : memref<18x18x16xf32, #tpu.memory_space<vmem>>, vector<16x16x8xf32>
    tpu.vector_store %arg10[%c1_21, %c1_22, %c8], %10 {strides = array<i32>} : memref<18x18x16xf32, #tpu.memory_space<vmem>>, vector<16x16x8xf32>,
    %cst_23 = arith.constant 0.000000e+00 : f32
    %12 = vector.broadcast %cst_23 : f32 to vector<16x16x8xf32>
    %c0_24 = arith.constant 0 : index
    %c0_25 = arith.constant 0 : index
    %c0_26 = arith.constant 0 : index
    %13 = vector.load %arg10[%c0_24, %c0_25, %c0_26] : memref<18x18x16xf32, #tpu.memory_space<vmem>>, vector<16x18x16xf32>
    %14 = vector.extract_strided_slice %13 {offsets = [0, 0, 0], sizes = [16, 16, 16], strides = [1, 1, 1]} : vector<16x18x16xf32> to vector<16x16x16xf32>
    %c0_27 = arith.constant 0 : index
    %c0_28 = arith.constant 0 : index
    %c0_29 = arith.constant 0 : index
    %c0_30 = arith.constant 0 : index
    %15 = vector.load %arg3[%c0_27, %c0_28, %c0_29, %c0_30] : memref<3x3x16x8xf32, #tpu.memory_space<vmem>>, vector<1x1x16x8xf32>
    %16 = vector.shape_cast %15 : vector<1x1x16x8xf32> to vector<16x8xf32>
    %cst_31 = arith.constant dense<0.000000e+00> : vector<16x16x8xf32>
    %17 = tpu.matmul %14, %16, %cst_31 {dimension_numbers = #tpu.dot_dimension_numbers<[2], [0], [0, 1], [1], [0, 0, 0, 1, 1, 1], [], []>} : vector<16x16x16xf32>, vector<16x8xf32>, vector<16x16x8xf32> -> vector<16x16x8xf32>
    %18 = arith.addf %12, %17 : vector<16x16x8xf32>
    %19 = vector.extract_strided_slice %13 {offsets = [0, 1, 0], sizes = [16, 16, 16], strides = [1, 1, 1]} : vector<16x18x16xf32> to vector<16x16x16xf32>
    %c0_32 = arith.constant 0 : index
    %c1_33 = arith.constant 1 : index
    %c0_34 = arith.constant 0 : index
    %c0_35 = arith.constant 0 : index
    %20 = vector.load %arg3[%c0_32, %c1_33, %c0_34, %c0_35] : memref<3x3x16x8xf32, #tpu.memory_space<vmem>>, vector<1x1x16x8xf32>
    %21 = vector.shape_cast %20 : vector<1x1x16x8xf32> to vector<16x8xf32>
    %cst_36 = arith.constant dense<0.000000e+00> : vector<16x16x8xf32>
    %22 = tpu.matmul %19, %21, %cst_36 {dimension_numbers = #tpu.dot_dimension_numbers<[2], [0], [0, 1], [1], [0, 0, 0, 1, 1, 1], [], []>} : vector<16x16x16xf32>, vector<16x8xf32>, vector<16x16x8xf32> -> vector<16x16x8xf32>
    %23 = arith.addf %18, %22 : vector<16x16x8xf32>
    %24 = vector.extract_strided_slice %13 {offsets = [0, 2, 0], sizes = [16, 16, 16], strides = [1, 1, 1]} : vector<16x18x16xf32> to vector<16x16x16xf32>
    %c0_37 = arith.constant 0 : index
    %c2 = arith.constant 2 : index
    %c0_38 = arith.constant 0 : index
    %c0_39 = arith.constant 0 : index
    %25 = vector.load %arg3[%c0_37, %c2, %c0_38, %c0_39] : memref<3x3x16x8xf32, #tpu.memory_space<vmem>>, vector<1x1x16x8xf32>
    %26 = vector.shape_cast %25 : vector<1x1x16x8xf32> to vector<16x8xf32>
    %cst_40 = arith.constant dense<0.000000e+00> : vector<16x16x8xf32>
    %27 = tpu.matmul %24, %26, %cst_40 {dimension_numbers = #tpu.dot_dimension_numbers<[2], [0], [0, 1], [1], [0, 0, 0, 1, 1, 1], [], []>} : vector<16x16x16xf32>, vector<16x8xf32>, vector<16x16x8xf32> -> vector<16x16x8xf32>
    %28 = arith.addf %23, %27 : vector<16x16x8xf32>
    %c1_41 = arith.constant 1 : index
    %c0_42 = arith.constant 0 : index
    %c0_43 = arith.constant 0 : index
    %29 = vector.load %arg10[%c1_41, %c0_42, %c0_43] : memref<18x18x16xf32, #tpu.memory_space<vmem>>, vector<16x18x16xf32>
    %30 = vector.extract_strided_slice %29 {offsets = [0, 0, 0], sizes = [16, 16, 16], strides = [1, 1, 1]} : vector<16x18x16xf32> to vector<16x16x16xf32>
    %c1_44 = arith.constant 1 : index
    %c0_45 = arith.constant 0 : index
    %c0_46 = arith.constant 0 : index
    %c0_47 = arith.constant 0 : index
    %31 = vector.load %arg3[%c1_44, %c0_45, %c0_46, %c0_47] : memref<3x3x16x8xf32, #tpu.memory_space<vmem>>, vector<1x1x16x8xf32>
    %32 = vector.shape_cast %31 : vector<1x1x16x8xf32> to vector<16x8xf32>
    %cst_48 = arith.constant dense<0.000000e+00> : vector<16x16x8xf32>
    %33 = tpu.matmul %30, %32, %cst_48 {dimension_numbers = #tpu.dot_dimension_numbers<[2], [0], [0, 1], [1], [0, 0, 0, 1, 1, 1], [], []>} : vector<16x16x16xf32>, vector<16x8xf32>, vector<16x16x8xf32> -> vector<16x16x8xf32>
    %34 = arith.addf %28, %33 : vector<16x16x8xf32>
    %35 = vector.extract_strided_slice %29 {offsets = [0, 1, 0], sizes = [16, 16, 16], strides = [1, 1, 1]} : vector<16x18x16xf32> to vector<16x16x16xf32>
    %c1_49 = arith.constant 1 : index
    %c1_50 = arith.constant 1 : index
    %c0_51 = arith.constant 0 : index
    %c0_52 = arith.constant 0 : index
    %36 = vector.load %arg3[%c1_49, %c1_50, %c0_51, %c0_52] : memref<3x3x16x8xf32, #tpu.memory_space<vmem>>, vector<1x1x16x8xf32>
    %37 = vector.shape_cast %36 : vector<1x1x16x8xf32> to vector<16x8xf32>
    %cst_53 = arith.constant dense<0.000000e+00> : vector<16x16x8xf32>
    %38 = tpu.matmul %35, %37, %cst_53 {dimension_numbers = #tpu.dot_dimension_numbers<[2], [0], [0, 1], [1], [0, 0, 0, 1, 1, 1], [], []>} : vector<16x16x16xf32>, vector<16x8xf32>, vector<16x16x8xf32> -> vector<16x16x8xf32>
    %39 = arith.addf %34, %38 : vector<16x16x8xf32>
    %40 = vector.extract_strided_slice %29 {offsets = [0, 2, 0], sizes = [16, 16, 16], strides = [1, 1, 1]} : vector<16x18x16xf32> to vector<16x16x16xf32>
    %c1_54 = arith.constant 1 : index
    %c2_55 = arith.constant 2 : index
    %c0_56 = arith.constant 0 : index
    %c0_57 = arith.constant 0 : index
    %41 = vector.load %arg3[%c1_54, %c2_55, %c0_56, %c0_57] : memref<3x3x16x8xf32, #tpu.memory_space<vmem>>, vector<1x1x16x8xf32>
    %42 = vector.shape_cast %41 : vector<1x1x16x8xf32> to vector<16x8xf32>
    %cst_58 = arith.constant dense<0.000000e+00> : vector<16x16x8xf32>
    %43 = tpu.matmul %40, %42, %cst_58 {dimension_numbers = #tpu.dot_dimension_numbers<[2], [0], [0, 1], [1], [0, 0, 0, 1, 1, 1], [], []>} : vector<16x16x16xf32>, vector<16x8xf32>, vector<16x16x8xf32> -> vector<16x16x8xf32>
    %44 = arith.addf %39, %43 : vector<16x16x8xf32>
    %c2_59 = arith.constant 2 : index
    %c0_60 = arith.constant 0 : index
    %c0_61 = arith.constant 0 : index
    %45 = vector.load %arg10[%c2_59, %c0_60, %c0_61] : memref<18x18x16xf32, #tpu.memory_space<vmem>>, vector<16x18x16xf32>
    %46 = vector.extract_strided_slice %45 {offsets = [0, 0, 0], sizes = [16, 16, 16], strides = [1, 1, 1]} : vector<16x18x16xf32> to vector<16x16x16xf32>
    %c2_62 = arith.constant 2 : index
    %c0_63 = arith.constant 0 : index
    %c0_64 = arith.constant 0 : index
    %c0_65 = arith.constant 0 : index
    %47 = vector.load %arg3[%c2_62, %c0_63, %c0_64, %c0_65] : memref<3x3x16x8xf32, #tpu.memory_space<vmem>>, vector<1x1x16x8xf32>
    %48 = vector.shape_cast %47 : vector<1x1x16x8xf32> to vector<16x8xf32>
    %cst_66 = arith.constant dense<0.000000e+00> : vector<16x16x8xf32>
    %49 = tpu.matmul %46, %48, %cst_66 {dimension_numbers = #tpu.dot_dimension_numbers<[2], [0], [0, 1], [1], [0, 0, 0, 1, 1, 1], [], []>} : vector<16x16x16xf32>, vector<16x8xf32>, vector<16x16x8xf32> -> vector<16x16x8xf32>
    %50 = arith.addf %44, %49 : vector<16x16x8xf32>
    %51 = vector.extract_strided_slice %45 {offsets = [0, 1, 0], sizes = [16, 16, 16], strides = [1, 1, 1]} : vector<16x18x16xf32> to vector<16x16x16xf32>
    %c2_67 = arith.constant 2 : index
    %c1_68 = arith.constant 1 : index
    %c0_69 = arith.constant 0 : index
    %c0_70 = arith.constant 0 : index
    %52 = vector.load %arg3[%c2_67, %c1_68, %c0_69, %c0_70] : memref<3x3x16x8xf32, #tpu.memory_space<vmem>>, vector<1x1x16x8xf32>
    %53 = vector.shape_cast %52 : vector<1x1x16x8xf32> to vector<16x8xf32>
    %cst_71 = arith.constant dense<0.000000e+00> : vector<16x16x8xf32>
    %54 = tpu.matmul %51, %53, %cst_71 {dimension_numbers = #tpu.dot_dimension_numbers<[2], [0], [0, 1], [1], [0, 0, 0, 1, 1, 1], [], []>} : vector<16x16x16xf32>, vector<16x8xf32>, vector<16x16x8xf32> -> vector<16x16x8xf32>
    %55 = arith.addf %50, %54 : vector<16x16x8xf32>
    %56 = vector.extract_strided_slice %45 {offsets = [0, 2, 0], sizes = [16, 16, 16], strides = [1, 1, 1]} : vector<16x18x16xf32> to vector<16x16x16xf32>
    %c2_72 = arith.constant 2 : index
    %c2_73 = arith.constant 2 : index
    %c0_74 = arith.constant 0 : index
    %c0_75 = arith.constant 0 : index
    %57 = vector.load %arg3[%c2_72, %c2_73, %c0_74, %c0_75] : memref<3x3x16x8xf32, #tpu.memory_space<vmem>>, vector<1x1x16x8xf32>
    %58 = vector.shape_cast %57 : vector<1x1x16x8xf32> to vector<16x8xf32>
    %cst_76 = arith.constant dense<0.000000e+00> : vector<16x16x8xf32>
    %59 = tpu.matmul %56, %58, %cst_76 {dimension_numbers = #tpu.dot_dimension_numbers<[2], [0], [0, 1], [1], [0, 0, 0, 1, 1, 1], [], []>} : vector<16x16x16xf32>, vector<16x8xf32>, vector<16x16x8xf32> -> vector<16x16x8xf32>
    %60 = arith.addf %55, %59 : vector<16x16x8xf32>
    %c0_77 = arith.constant 0 : index
    %c0_78 = arith.constant 0 : index
    %61 = vector.load %arg4[%c0_77, %c0_78] : memref<1x8xf32, #tpu.memory_space<vmem>>, vector<1x8xf32>
    %62 = vector.shape_cast %61 : vector<1x8xf32> to vector<1x1x8xf32>
    %63 = vector.broadcast %62 : vector<1x1x8xf32> to vector<16x16x8xf32>
    %64 = arith.mulf %60, %63 : vector<16x16x8xf32>
    %c0_79 = arith.constant 0 : index
    %c0_80 = arith.constant 0 : index
    %65 = vector.load %arg5[%c0_79, %c0_80] : memref<1x8xf32, #tpu.memory_space<vmem>>, vector<1x8xf32>
    %66 = vector.shape_cast %65 : vector<1x8xf32> to vector<1x1x8xf32>
    %67 = vector.broadcast %66 : vector<1x1x8xf32> to vector<16x16x8xf32>
    %68 = arith.addf %64, %67 : vector<16x16x8xf32>
    %cst_81 = arith.constant 0.000000e+00 : f32
    %69 = vector.broadcast %cst_81 : f32 to vector<16x16x8xf32>
    %70 = arith.cmpf oge, %68, %69 : vector<16x16x8xf32>
    %cst_82 = arith.constant 0.00999999977 : f32
    %71 = vector.broadcast %cst_82 : f32 to vector<16x16x8xf32>
    %72 = arith.mulf %71, %68 : vector<16x16x8xf32>
    %73 = arith.select %70, %68, %72 : vector<16x16x8xi1>, vector<16x16x8xf32>
    %cst_83 = arith.constant 0.000000e+00 : f32
    %74 = vector.broadcast %cst_83 : f32 to vector<1x18x8xf32>
    %cst_84 = arith.constant 0.000000e+00 : f32
    %75 = vector.broadcast %cst_84 : f32 to vector<18x1x8xf32>
    %c0_85 = arith.constant 0 : index
    %c0_86 = arith.constant 0 : index
    %c0_87 = arith.constant 0 : index
    %76 = vector.load %arg11[%c0_85, %c0_86, %c0_87] : memref<18x18x8xf32, #tpu.memory_space<vmem>>, vector<1x18x8xf32>
    tpu.vector_store %arg11[%c0_85, %c0_86, %c0_87], %74 {strides = array<i32>} : memref<18x18x8xf32, #tpu.memory_space<vmem>>, vector<1x18x8xf32>,
    %c17_88 = arith.constant 17 : index
    %c0_89 = arith.constant 0 : index
    %c0_90 = arith.constant 0 : index
    %77 = vector.load %arg11[%c17_88, %c0_89, %c0_90] : memref<18x18x8xf32, #tpu.memory_space<vmem>>, vector<1x18x8xf32>
    tpu.vector_store %arg11[%c17_88, %c0_89, %c0_90], %74 {strides = array<i32>} : memref<18x18x8xf32, #tpu.memory_space<vmem>>, vector<1x18x8xf32>,
    %c0_91 = arith.constant 0 : index
    %c0_92 = arith.constant 0 : index
    %c0_93 = arith.constant 0 : index
    %78 = vector.load %arg11[%c0_91, %c0_92, %c0_93] : memref<18x18x8xf32, #tpu.memory_space<vmem>>, vector<18x1x8xf32>
    tpu.vector_store %arg11[%c0_91, %c0_92, %c0_93], %75 {strides = array<i32>} : memref<18x18x8xf32, #tpu.memory_space<vmem>>, vector<18x1x8xf32>,
    %c0_94 = arith.constant 0 : index
    %c17_95 = arith.constant 17 : index
    %c0_96 = arith.constant 0 : index
    %79 = vector.load %arg11[%c0_94, %c17_95, %c0_96] : memref<18x18x8xf32, #tpu.memory_space<vmem>>, vector<18x1x8xf32>
    tpu.vector_store %arg11[%c0_94, %c17_95, %c0_96], %75 {strides = array<i32>} : memref<18x18x8xf32, #tpu.memory_space<vmem>>, vector<18x1x8xf32>,
    %c1_97 = arith.constant 1 : index
    %c1_98 = arith.constant 1 : index
    %c0_99 = arith.constant 0 : index
    %80 = vector.load %arg11[%c1_97, %c1_98, %c0_99] : memref<18x18x8xf32, #tpu.memory_space<vmem>>, vector<16x16x8xf32>
    tpu.vector_store %arg11[%c1_97, %c1_98, %c0_99], %73 {strides = array<i32>} : memref<18x18x8xf32, #tpu.memory_space<vmem>>, vector<16x16x8xf32>,
    %cst_100 = arith.constant 0.000000e+00 : f32
    %81 = vector.broadcast %cst_100 : f32 to vector<8x256xf32>
    %c0_101 = arith.constant 0 : index
    %c0_102 = arith.constant 0 : index
    %c0_103 = arith.constant 0 : index
    %82 = vector.load %arg11[%c0_101, %c0_102, %c0_103] : memref<18x18x8xf32, #tpu.memory_space<vmem>>, vector<16x18x8xf32>
    %83 = vector.extract_strided_slice %82 {offsets = [0, 0, 0], sizes = [16, 16, 8], strides = [1, 1, 1]} : vector<16x18x8xf32> to vector<16x16x8xf32>
    %84 = vector.shape_cast %83 : vector<16x16x8xf32> to vector<256x8xf32>
    %c0_104 = arith.constant 0 : index
    %c0_105 = arith.constant 0 : index
    %c0_106 = arith.constant 0 : index
    %c0_107 = arith.constant 0 : index
    %85 = vector.load %arg6[%c0_104, %c0_105, %c0_106, %c0_107] : memref<3x3x8x8xf32, #tpu.memory_space<vmem>>, vector<1x1x8x8xf32>
    %86 = vector.shape_cast %85 : vector<1x1x8x8xf32> to vector<8x8xf32>
    %cst_108 = arith.constant dense<0.000000e+00> : vector<8x256xf32>
    %87 = tpu.matmul %86, %84, %cst_108 {dimension_numbers = #tpu.dot_dimension_numbers<[1], [1], [0], [0], [0, 0, 1, 0], [], []>} : vector<8x8xf32>, vector<256x8xf32>, vector<8x256xf32> -> vector<8x256xf32>
    %88 = arith.addf %81, %87 : vector<8x256xf32>
    %89 = vector.extract_strided_slice %82 {offsets = [0, 1, 0], sizes = [16, 16, 8], strides = [1, 1, 1]} : vector<16x18x8xf32> to vector<16x16x8xf32>
    %90 = vector.shape_cast %89 : vector<16x16x8xf32> to vector<256x8xf32>
    %c0_109 = arith.constant 0 : index
    %c1_110 = arith.constant 1 : index
    %c0_111 = arith.constant 0 : index
    %c0_112 = arith.constant 0 : index
    %91 = vector.load %arg6[%c0_109, %c1_110, %c0_111, %c0_112] : memref<3x3x8x8xf32, #tpu.memory_space<vmem>>, vector<1x1x8x8xf32>
    %92 = vector.shape_cast %91 : vector<1x1x8x8xf32> to vector<8x8xf32>
    %cst_113 = arith.constant dense<0.000000e+00> : vector<8x256xf32>
    %93 = tpu.matmul %92, %90, %cst_113 {dimension_numbers = #tpu.dot_dimension_numbers<[1], [1], [0], [0], [0, 0, 1, 0], [], []>} : vector<8x8xf32>, vector<256x8xf32>, vector<8x256xf32> -> vector<8x256xf32>
    %94 = arith.addf %88, %93 : vector<8x256xf32>
    %95 = vector.extract_strided_slice %82 {offsets = [0, 2, 0], sizes = [16, 16, 8], strides = [1, 1, 1]} : vector<16x18x8xf32> to vector<16x16x8xf32>
    %96 = vector.shape_cast %95 : vector<16x16x8xf32> to vector<256x8xf32>
    %c0_114 = arith.constant 0 : index
    %c2_115 = arith.constant 2 : index
    %c0_116 = arith.constant 0 : index
    %c0_117 = arith.constant 0 : index
    %97 = vector.load %arg6[%c0_114, %c2_115, %c0_116, %c0_117] : memref<3x3x8x8xf32, #tpu.memory_space<vmem>>, vector<1x1x8x8xf32>
    %98 = vector.shape_cast %97 : vector<1x1x8x8xf32> to vector<8x8xf32>
    %cst_118 = arith.constant dense<0.000000e+00> : vector<8x256xf32>
    %99 = tpu.matmul %98, %96, %cst_118 {dimension_numbers = #tpu.dot_dimension_numbers<[1], [1], [0], [0], [0, 0, 1, 0], [], []>} : vector<8x8xf32>, vector<256x8xf32>, vector<8x256xf32> -> vector<8x256xf32>
    %100 = arith.addf %94, %99 : vector<8x256xf32>
    %c1_119 = arith.constant 1 : index
    %c0_120 = arith.constant 0 : index
    %c0_121 = arith.constant 0 : index
    %101 = vector.load %arg11[%c1_119, %c0_120, %c0_121] : memref<18x18x8xf32, #tpu.memory_space<vmem>>, vector<16x18x8xf32>
    %102 = vector.extract_strided_slice %101 {offsets = [0, 0, 0], sizes = [16, 16, 8], strides = [1, 1, 1]} : vector<16x18x8xf32> to vector<16x16x8xf32>
    %103 = vector.shape_cast %102 : vector<16x16x8xf32> to vector<256x8xf32>
    %c1_122 = arith.constant 1 : index
    %c0_123 = arith.constant 0 : index
    %c0_124 = arith.constant 0 : index
    %c0_125 = arith.constant 0 : index
    %104 = vector.load %arg6[%c1_122, %c0_123, %c0_124, %c0_125] : memref<3x3x8x8xf32, #tpu.memory_space<vmem>>, vector<1x1x8x8xf32>
    %105 = vector.shape_cast %104 : vector<1x1x8x8xf32> to vector<8x8xf32>
    %cst_126 = arith.constant dense<0.000000e+00> : vector<8x256xf32>
    %106 = tpu.matmul %105, %103, %cst_126 {dimension_numbers = #tpu.dot_dimension_numbers<[1], [1], [0], [0], [0, 0, 1, 0], [], []>} : vector<8x8xf32>, vector<256x8xf32>, vector<8x256xf32> -> vector<8x256xf32>
    %107 = arith.addf %100, %106 : vector<8x256xf32>
    %108 = vector.extract_strided_slice %101 {offsets = [0, 1, 0], sizes = [16, 16, 8], strides = [1, 1, 1]} : vector<16x18x8xf32> to vector<16x16x8xf32>
    %109 = vector.shape_cast %108 : vector<16x16x8xf32> to vector<256x8xf32>
    %c1_127 = arith.constant 1 : index
    %c1_128 = arith.constant 1 : index
    %c0_129 = arith.constant 0 : index
    %c0_130 = arith.constant 0 : index
    %110 = vector.load %arg6[%c1_127, %c1_128, %c0_129, %c0_130] : memref<3x3x8x8xf32, #tpu.memory_space<vmem>>, vector<1x1x8x8xf32>
    %111 = vector.shape_cast %110 : vector<1x1x8x8xf32> to vector<8x8xf32>
    %cst_131 = arith.constant dense<0.000000e+00> : vector<8x256xf32>
    %112 = tpu.matmul %111, %109, %cst_131 {dimension_numbers = #tpu.dot_dimension_numbers<[1], [1], [0], [0], [0, 0, 1, 0], [], []>} : vector<8x8xf32>, vector<256x8xf32>, vector<8x256xf32> -> vector<8x256xf32>
    %113 = arith.addf %107, %112 : vector<8x256xf32>
    %114 = vector.extract_strided_slice %101 {offsets = [0, 2, 0], sizes = [16, 16, 8], strides = [1, 1, 1]} : vector<16x18x8xf32> to vector<16x16x8xf32>
    %115 = vector.shape_cast %114 : vector<16x16x8xf32> to vector<256x8xf32>
    %c1_132 = arith.constant 1 : index
    %c2_133 = arith.constant 2 : index
    %c0_134 = arith.constant 0 : index
    %c0_135 = arith.constant 0 : index
    %116 = vector.load %arg6[%c1_132, %c2_133, %c0_134, %c0_135] : memref<3x3x8x8xf32, #tpu.memory_space<vmem>>, vector<1x1x8x8xf32>
    %117 = vector.shape_cast %116 : vector<1x1x8x8xf32> to vector<8x8xf32>
    %cst_136 = arith.constant dense<0.000000e+00> : vector<8x256xf32>
    %118 = tpu.matmul %117, %115, %cst_136 {dimension_numbers = #tpu.dot_dimension_numbers<[1], [1], [0], [0], [0, 0, 1, 0], [], []>} : vector<8x8xf32>, vector<256x8xf32>, vector<8x256xf32> -> vector<8x256xf32>
    %119 = arith.addf %113, %118 : vector<8x256xf32>
    %c2_137 = arith.constant 2 : index
    %c0_138 = arith.constant 0 : index
    %c0_139 = arith.constant 0 : index
    %120 = vector.load %arg11[%c2_137, %c0_138, %c0_139] : memref<18x18x8xf32, #tpu.memory_space<vmem>>, vector<16x18x8xf32>
    %121 = vector.extract_strided_slice %120 {offsets = [0, 0, 0], sizes = [16, 16, 8], strides = [1, 1, 1]} : vector<16x18x8xf32> to vector<16x16x8xf32>
    %122 = vector.shape_cast %121 : vector<16x16x8xf32> to vector<256x8xf32>
    %c2_140 = arith.constant 2 : index
    %c0_141 = arith.constant 0 : index
    %c0_142 = arith.constant 0 : index
    %c0_143 = arith.constant 0 : index
    %123 = vector.load %arg6[%c2_140, %c0_141, %c0_142, %c0_143] : memref<3x3x8x8xf32, #tpu.memory_space<vmem>>, vector<1x1x8x8xf32>
    %124 = vector.shape_cast %123 : vector<1x1x8x8xf32> to vector<8x8xf32>
    %cst_144 = arith.constant dense<0.000000e+00> : vector<8x256xf32>
    %125 = tpu.matmul %124, %122, %cst_144 {dimension_numbers = #tpu.dot_dimension_numbers<[1], [1], [0], [0], [0, 0, 1, 0], [], []>} : vector<8x8xf32>, vector<256x8xf32>, vector<8x256xf32> -> vector<8x256xf32>
    %126 = arith.addf %119, %125 : vector<8x256xf32>
    %127 = vector.extract_strided_slice %120 {offsets = [0, 1, 0], sizes = [16, 16, 8], strides = [1, 1, 1]} : vector<16x18x8xf32> to vector<16x16x8xf32>
    %128 = vector.shape_cast %127 : vector<16x16x8xf32> to vector<256x8xf32>
    %c2_145 = arith.constant 2 : index
    %c1_146 = arith.constant 1 : index
    %c0_147 = arith.constant 0 : index
    %c0_148 = arith.constant 0 : index
    %129 = vector.load %arg6[%c2_145, %c1_146, %c0_147, %c0_148] : memref<3x3x8x8xf32, #tpu.memory_space<vmem>>, vector<1x1x8x8xf32>
    %130 = vector.shape_cast %129 : vector<1x1x8x8xf32> to vector<8x8xf32>
    %cst_149 = arith.constant dense<0.000000e+00> : vector<8x256xf32>
    %131 = tpu.matmul %130, %128, %cst_149 {dimension_numbers = #tpu.dot_dimension_numbers<[1], [1], [0], [0], [0, 0, 1, 0], [], []>} : vector<8x8xf32>, vector<256x8xf32>, vector<8x256xf32> -> vector<8x256xf32>
    %132 = arith.addf %126, %131 : vector<8x256xf32>
    %133 = vector.extract_strided_slice %120 {offsets = [0, 2, 0], sizes = [16, 16, 8], strides = [1, 1, 1]} : vector<16x18x8xf32> to vector<16x16x8xf32>
    %134 = vector.shape_cast %133 : vector<16x16x8xf32> to vector<256x8xf32>
    %c2_150 = arith.constant 2 : index
    %c2_151 = arith.constant 2 : index
    %c0_152 = arith.constant 0 : index
    %c0_153 = arith.constant 0 : index
    %135 = vector.load %arg6[%c2_150, %c2_151, %c0_152, %c0_153] : memref<3x3x8x8xf32, #tpu.memory_space<vmem>>, vector<1x1x8x8xf32>
    %136 = vector.shape_cast %135 : vector<1x1x8x8xf32> to vector<8x8xf32>
    %cst_154 = arith.constant dense<0.000000e+00> : vector<8x256xf32>
    %137 = tpu.matmul %136, %134, %cst_154 {dimension_numbers = #tpu.dot_dimension_numbers<[1], [1], [0], [0], [0, 0, 1, 0], [], []>} : vector<8x8xf32>, vector<256x8xf32>, vector<8x256xf32> -> vector<8x256xf32>
    %138 = arith.addf %132, %137 : vector<8x256xf32>
    %c0_155 = arith.constant 0 : index
    %c0_156 = arith.constant 0 : index
    %139 = vector.load %arg7[%c0_155, %c0_156] : memref<8x1xf32, #tpu.memory_space<vmem>>, vector<8x1xf32>
    %140 = vector.broadcast %139 : vector<8x1xf32> to vector<8x256xf32>
    %141 = arith.mulf %138, %140 : vector<8x256xf32>
    %c0_157 = arith.constant 0 : index
    %c0_158 = arith.constant 0 : index
    %142 = vector.load %arg8[%c0_157, %c0_158] : memref<8x1xf32, #tpu.memory_space<vmem>>, vector<8x1xf32>
    %143 = vector.broadcast %142 : vector<8x1xf32> to vector<8x256xf32>
    %144 = arith.addf %141, %143 : vector<8x256xf32>
    %cst_159 = arith.constant 0.000000e+00 : f32
    %145 = vector.broadcast %cst_159 : f32 to vector<8x256xf32>
    %146 = arith.cmpf oge, %144, %145 : vector<8x256xf32>
    %cst_160 = arith.constant 0.00999999977 : f32
    %147 = vector.broadcast %cst_160 : f32 to vector<8x256xf32>
    %148 = arith.mulf %147, %144 : vector<8x256xf32>
    %149 = arith.select %146, %144, %148 : vector<8x256xi1>, vector<8x256xf32>
    %c0_161 = arith.constant 0 : index
    %c0_162 = arith.constant 0 : index
    %c0_163 = arith.constant 0 : index
    %150 = vector.load %arg9[%c0_161, %c0_162, %c0_163] : memref<1x8x256xf32, #tpu.memory_space<vmem>>, vector<1x8x256xf32>
    %151 = vector.shape_cast %150 : vector<1x8x256xf32> to vector<8x256xf32>
    %152 = vector.shape_cast %149 : vector<8x256xf32> to vector<1x8x256xf32>
    tpu.vector_store %arg9[%c0_161, %c0_162, %c0_163], %152 {strides = array<i32>} : memref<1x8x256xf32, #tpu.memory_space<vmem>>, vector<1x8x256xf32>,
    return
  }
  func.func @transform_0(%arg0: i32) -> (i32, i32, i32, i32) {
    %c0_i32 = arith.constant 0 : i32
    %c0_i32_0 = arith.constant 0 : i32
    %c0_i32_1 = arith.constant 0 : i32
    %c0_i32_2 = arith.constant 0 : i32
    return %arg0, %c0_i32, %c0_i32_0, %c0_i32_1 : i32, i32, i32, i32
  }
  func.func @transform_1(%arg0: i32) -> (i32, i32, i32, i32) {
    %c0_i32 = arith.constant 0 : i32
    %c0_i32_0 = arith.constant 0 : i32
    %c0_i32_1 = arith.constant 0 : i32
    %c0_i32_2 = arith.constant 0 : i32
    return %arg0, %c0_i32, %c0_i32_0, %c0_i32_1 : i32, i32, i32, i32
  }
  func.func @transform_2(%arg0: i32) -> (i32, i32, i32, i32) {
    %c0_i32 = arith.constant 0 : i32
    %c0_i32_0 = arith.constant 0 : i32
    %c0_i32_1 = arith.constant 0 : i32
    %c0_i32_2 = arith.constant 0 : i32
    %c0_i32_3 = arith.constant 0 : i32
    return %c0_i32, %c0_i32_0, %c0_i32_1, %c0_i32_2 : i32, i32, i32, i32
  }
  func.func @transform_3(%arg0: i32) -> (i32, i32) {
    %c0_i32 = arith.constant 0 : i32
    %c0_i32_0 = arith.constant 0 : i32
    %c0_i32_1 = arith.constant 0 : i32
    return %c0_i32, %c0_i32_0 : i32, i32
  }
  func.func @transform_4(%arg0: i32) -> (i32, i32) {
    %c0_i32 = arith.constant 0 : i32
    %c0_i32_0 = arith.constant 0 : i32
    %c0_i32_1 = arith.constant 0 : i32
    return %c0_i32, %c0_i32_0 : i32, i32
  }
  func.func @transform_5(%arg0: i32) -> (i32, i32, i32, i32) {
    %c0_i32 = arith.constant 0 : i32
    %c0_i32_0 = arith.constant 0 : i32
    %c0_i32_1 = arith.constant 0 : i32
    %c0_i32_2 = arith.constant 0 : i32
    %c0_i32_3 = arith.constant 0 : i32
    return %c0_i32, %c0_i32_0, %c0_i32_1, %c0_i32_2 : i32, i32, i32, i32
  }
  func.func @transform_6(%arg0: i32) -> (i32, i32) {
    %c0_i32 = arith.constant 0 : i32
    %c0_i32_0 = arith.constant 0 : i32
    %c0_i32_1 = arith.constant 0 : i32
    return %c0_i32, %c0_i32_0 : i32, i32
  }
  func.func @transform_7(%arg0: i32) -> (i32, i32) {
    %c0_i32 = arith.constant 0 : i32
    %c0_i32_0 = arith.constant 0 : i32
    %c0_i32_1 = arith.constant 0 : i32
    return %c0_i32, %c0_i32_0 : i32, i32
  }
  func.func @transform_8(%arg0: i32) -> (i32, i32, i32) {
    %c0_i32 = arith.constant 0 : i32
    %c0_i32_0 = arith.constant 0 : i32
    %c0_i32_1 = arith.constant 0 : i32
    return %arg0, %c0_i32, %c0_i32_0 : i32, i32, i32
  }
}

</mosaic_0001>

<llo_original>
// kernel: up_forward.2
$region0: #{up_forward.2}
  #allocation0 [shape = 'u32[]', space=smem, size = 0x4, offset = 0x4, fixed_abs, tag = 'smem constant byte address 0x4 - core index']
  #allocation1 [shape = 'u32[72,128]{1,0:T(1,128)}', space=vmem, size = 0x9000, scoped, tag = 'internal scratch']
  %s0 = inlined_call_operand.vmem [shape: f32[2,8,8,16], index: 0, kind: input, shape index: {}]
  %s1 = inlined_call_operand.vmem [shape: f32[16,32], index: 1, kind: input, shape index: {}]
  %s2 = inlined_call_operand.vmem [shape: f32[1,32], index: 2, kind: input, shape index: {}]
  %s3 = inlined_call_operand.vmem [shape: f32[2,8,2,8,16], index: 3, kind: output, shape index: {}]
  %s4 = sld [smem:[#allocation0]]
  $region45: #{up_forward.2} parent=0
    _
  %s6 = ssub.s32 1, %s4
  %s7 = scalar_select 0, %s6, %s4
  loop: start=0, step=1, limit=4
  $region2: #{up_forward.2} parent=0 // loop_pre_header
    _
  $region3: #{up_forward.2} parent=0 // loop_header
    %s9 = sphi 0, %s13
    %p10 = scmp.ge.s32.totalorder %s9, 4
    %s16 = sphi 0, %s28
    %s17 = sphi 0, %s24
    %s18 = sphi 0, %s16
    %s19 = sphi 0, %s17
    %s20 = sphi 0, %s18
    %s21 = sphi 0, %s19
    %s33 = sphi 0, %s35
    %s36 = sphi 0, %s33
    %s37 = sphi 0, %s36
    %s53 = sphi 0, %s37
    %s57 = sphi 0, %s57
    %s59 = sphi 0, %s57
    %s60 = sphi 0, %s59
    %s74 = sphi 0, %s60
    %s78 = sphi 0, %s78
    %s80 = sphi 0, %s78
    %s81 = sphi 0, %s80
    %s95 = sphi 0, %s81
    %s103 = sphi 0, %s105
    %s106 = sphi 0, %s103
    %s107 = sphi 0, %s106
    %s123 = sphi 0, %s107
  $region4: #{up_forward.2} parent=0 // loop_header_branch
    %12 = sbr.rel (%p10) target = $region8
  $region5: #{up_forward.2} parent=0 // loop_body
    %s14 = ssub.s32 %s9, 1
    %s15 = ssub.s32 %s9, 2
    %s22 = sadd.s32 1, %s17
    %p23 = scmp.ge.s32.totalorder %s22, 1
    %s24 = scalar_select %p23, 0, %s22
    %s25 = sadd.s32 1, %s16
    %s26 = scalar_select %p23, %s25, %s16
    %p27 = scmp.ge.s32.totalorder %s26, 2
    %s28 = scalar_select %p27, 0, %s26
    %s29 = ssub.s32 %s16, %s28
    %s30 = ssub.s32 %s17, %s24
    %s31 = sor.u32 %s29, %s30
    %p32 = scmp.eq.s32.totalorder %s31, 0
    %s34 = sadd.s32 %s33, 1
    %s35 = scalar_select %p32, %s33, %s34
    %p38 = pneg %p32
    %p39 = scmp.eq.s32.totalorder %s9, 1
    %p40 = por %p38, %p39
    %p41 = scmp.ne.s32.totalorder %s33, %s36
    %p42 = scmp.eq.s32.totalorder %s9, 0
    %p43 = por %p41, %p42
    %p44 = scmp.ne.s32.totalorder %s33, %s36
    %p45 = scmp.eq.s32.totalorder %s14, 1
    %p46 = por %p44, %p45
    %p47 = scmp.ne.s32.totalorder %s36, %s37
    %p48 = scmp.eq.s32.totalorder %s14, 0
    %p49 = por %p47, %p48
    %p50 = scmp.ne.s32.totalorder %s36, %s37
    %p51 = scmp.eq.s32.totalorder %s15, 1
    %p52 = por %p50, %p51
    %p54 = scmp.ne.s32.totalorder %s37, %s53
    %p55 = scmp.eq.s32.totalorder %s15, 0
    %p56 = por %p54, %p55
    %s58 = sadd.s32 %s57, 1
    %p61 = scmp.eq.s32.totalorder %s9, 1
    %p62 = scmp.ne.s32.totalorder %s57, %s59
    %p63 = scmp.eq.s32.totalorder %s9, 0
    %p64 = por %p62, %p63
    %p65 = scmp.ne.s32.totalorder %s57, %s59
    %p66 = scmp.eq.s32.totalorder %s14, 1
    %p67 = por %p65, %p66
    %p68 = scmp.ne.s32.totalorder %s59, %s60
    %p69 = scmp.eq.s32.totalorder %s14, 0
    %p70 = por %p68, %p69
    %p71 = scmp.ne.s32.totalorder %s59, %s60
    %p72 = scmp.eq.s32.totalorder %s15, 1
    %p73 = por %p71, %p72
    %p75 = scmp.ne.s32.totalorder %s60, %s74
    %p76 = scmp.eq.s32.totalorder %s15, 0
    %p77 = por %p75, %p76
    %s79 = sadd.s32 %s78, 1
    %p82 = scmp.eq.s32.totalorder %s9, 1
    %p83 = scmp.ne.s32.totalorder %s78, %s80
    %p84 = scmp.eq.s32.totalorder %s9, 0
    %p85 = por %p83, %p84
    %p86 = scmp.ne.s32.totalorder %s78, %s80
    %p87 = scmp.eq.s32.totalorder %s14, 1
    %p88 = por %p86, %p87
    %p89 = scmp.ne.s32.totalorder %s80, %s81
    %p90 = scmp.eq.s32.totalorder %s14, 0
    %p91 = por %p89, %p90
    %p92 = scmp.ne.s32.totalorder %s80, %s81
    %p93 = scmp.eq.s32.totalorder %s15, 1
    %p94 = por %p92, %p93
    %p96 = scmp.ne.s32.totalorder %s81, %s95
    %p97 = scmp.eq.s32.totalorder %s15, 0
    %p98 = por %p96, %p97
    %s99 = ssub.s32 %s16, %s28
    %s100 = ssub.s32 %s17, %s24
    %s101 = sor.u32 %s99, %s100
    %p102 = scmp.eq.s32.totalorder %s101, 0
    %s104 = sadd.s32 %s103, 1
    %s105 = scalar_select %p102, %s103, %s104
    %p108 = pneg %p102
    %p109 = scmp.eq.s32.totalorder %s9, 1
    %p110 = por %p108, %p109
    %p111 = scmp.ne.s32.totalorder %s103, %s106
    %p112 = scmp.eq.s32.totalorder %s9, 0
    %p113 = por %p111, %p112
    %p114 = scmp.ne.s32.totalorder %s103, %s106
    %p115 = scmp.eq.s32.totalorder %s14, 1
    %p116 = por %p114, %p115
    %p117 = scmp.ne.s32.totalorder %s106, %s107
    %p118 = scmp.eq.s32.totalorder %s14, 0
    %p119 = por %p117, %p118
    %p120 = scmp.ne.s32.totalorder %s106, %s107
    %p121 = scmp.eq.s32.totalorder %s15, 1
    %p122 = por %p120, %p121
    %p124 = scmp.ne.s32.totalorder %s107, %s123
    %p125 = scmp.eq.s32.totalorder %s15, 0
    %p126 = por %p124, %p125
    %p127 = scmp.le.s32.totalorder 1, %s9
    %p128 = scmp.lt.s32.totalorder %s9, 3
    %p129 = pnand %p127, %p128
    %p130 = pneg %p129
    // Predicated region
    $region9: #{up_forward.2} parent=5 // pred_check
      _
    $region10: #{up_forward.2} parent=5 // pred_check_branch
      %132 = sbr.rel (%p129) target = $region12
    $region11: #{up_forward.2} parent=5 // pred_region
      %s133 = ssub.s32 %s9, 1
      // Predicated region
      $region13: #{up_forward.2} parent=11 // pred_check
        %p134 = pneg %p70
      $region14: #{up_forward.2} parent=11 // pred_check_branch
        %136 = sbr.rel (%p134) target = $region16
      $region15: #{up_forward.2} parent=11 // pred_region
        _
      $region16: #{up_forward.2} parent=11 // pred_fallthru
        _
      // Predicated region
      $region17: #{up_forward.2} parent=11 // pred_check
        %p137 = pneg %p91
      $region18: #{up_forward.2} parent=11 // pred_check_branch
        %139 = sbr.rel (%p137) target = $region20
      $region19: #{up_forward.2} parent=11 // pred_region
        _
      $region20: #{up_forward.2} parent=11 // pred_fallthru
        _
    $region12: #{up_forward.2} parent=5 // pred_fallthru
      _
    %p140 = scmp.lt.s32.totalorder %s9, 2
    // Predicated region
    $region21: #{up_forward.2} parent=5 // pred_check
      %p141 = pneg %p140
    $region22: #{up_forward.2} parent=5 // pred_check_branch
      %143 = sbr.rel (%p141) target = $region24
    $region23: #{up_forward.2} parent=5 // pred_region
      // Predicated region
      $region25: #{up_forward.2} parent=23 // pred_check
        %p144 = pneg %p43
      $region26: #{up_forward.2} parent=23 // pred_check_branch
        %146 = sbr.rel (%p144) target = $region28
      $region27: #{up_forward.2} parent=23 // pred_region
        %s147 = smul.u32 8, %s17
        %p148 = scmp.lt.s32.totalorder %s16, 1
        %s149 = scalar_select %p148, %s16, 1
        %p150 = scmp.lt.s32.totalorder %s147, 7
        %s151 = scalar_select %p150, %s147, 7
        %s152 = smul.addr %s149, 8
        %s153 = sadd.s32 %s151, %s152
        %s154 = smul.addr %s153, 8
        %s155 = scalar_lea.vmem %s0, %s154
        %s156 = smul.u32 8, %s17
      $region28: #{up_forward.2} parent=23 // pred_fallthru
        _
    $region24: #{up_forward.2} parent=5 // pred_fallthru
      _
    %p157 = scmp.le.s32.totalorder 1, %s9
    %p158 = scmp.lt.s32.totalorder %s9, 3
    %p159 = pnand %p157, %p158
    %p160 = pneg %p159
    // Predicated region
    $region29: #{up_forward.2} parent=5 // pred_check
      _
    $region30: #{up_forward.2} parent=5 // pred_check_branch
      %162 = sbr.rel (%p159) target = $region32
    $region31: #{up_forward.2} parent=5 // pred_region
      %s163 = ssub.s32 %s9, 1
      %s164 = smul.u32 8, %s19
      %p165 = scmp.lt.s32.totalorder %s18, 1
      %s166 = scalar_select %p165, %s18, 1
      %p167 = scmp.lt.s32.totalorder %s164, 7
      %s168 = scalar_select %p167, %s164, 7
      %s169 = smul.addr %s166, 8
      %s170 = sadd.s32 %s168, %s169
      %s171 = smul.addr %s170, 8
      %s172 = scalar_lea.vmem %s0, %s171
      %p173 = pneg %p49
      %p174 = pneg %p46
      %p175 = pneg %p70
      %p176 = pneg %p67
      %p177 = pneg %p91
      %p178 = pneg %p88
      %p179 = pneg %p119
      %p180 = pneg %p116
      %s181 = smul.u32 8, %s19
      %p182 = scmp.lt.s32.totalorder %s18, 1
      %s183 = scalar_select %p182, %s18, 1
      %p184 = scmp.lt.s32.totalorder %s181, 7
      %s185 = scalar_select %p184, %s181, 7
      %s186 = smul.addr %s185, 2
      %s187 = smul.addr %s183, 16
      %s188 = sadd.s32 %s186, %s187
      %s189 = smul.addr %s188, 8
      %s190 = scalar_lea.vmem %s3, %s189
      %s191 = smul.u32 8, %s19
      %p192 = scmp.lt.s32.totalorder %s18, 1
      %s193 = scalar_select %p192, %s18, 1
      %p194 = scmp.lt.s32.totalorder %s191, 7
      %s195 = scalar_select %p194, %s191, 7
      %s196 = smul.addr %s193, 8
      %s197 = sadd.s32 %s195, %s196
      %s198 = smul.addr %s197, 8
      %s199 = scalar_lea.vmem %s0, %s198
      %s200 = smul.u32 8, %s19
      %s201 = smul.u32 8, %s19
      %p202 = scmp.lt.s32.totalorder %s18, 1
      %s203 = scalar_select %p202, %s18, 1
      %p204 = scmp.lt.s32.totalorder %s201, 7
      %s205 = scalar_select %p204, %s201, 7
      %s206 = smul.addr %s205, 2
      %s207 = smul.addr %s203, 16
      %s208 = sadd.s32 %s206, %s207
      %s209 = smul.addr %s208, 8
      %s210 = scalar_lea.vmem %s3, %s209
      %s211 = smul.u32 8, %s19
      %v212 = vld [vmem:[%s199] sm:$0xff]
      %v213 = vld [vmem:[%s199 + $0x8] sm:$0xff]
      %v214 = vld [vmem:[%s199 + $0x10] sm:$0xff]
      %v215 = vld [vmem:[%s199 + $0x18] sm:$0xff]
      %v216 = vld [vmem:[%s199 + $0x20] sm:$0xff]
      %v217 = vld [vmem:[%s199 + $0x28] sm:$0xff]
      %v218 = vld [vmem:[%s199 + $0x30] sm:$0xff]
      %v219 = vld [vmem:[%s199 + $0x38] sm:$0xff]
      %v220 = vld [vmem:[%s1] sm:$0xff]
      %v221 = vld [vmem:[%s1 + $0x8] sm:$0xff]
      %v222 = vld [vmem:[%s2] sm:$0x1]
      %v224 = vperm.slane %v222, 0
      %vm226 = vcmask 130048
      %v228 = vsel %vm226, %v212, 0
      %v231 = vsel %vm226, %v213, 0
      %v234 = vsel %vm226, %v214, 0
      %v237 = vsel %vm226, %v215, 0
      %v240 = vsel %vm226, %v216, 0
      %v243 = vsel %vm226, %v217, 0
      %v246 = vsel %vm226, %v218, 0
      %v249 = vsel %vm226, %v219, 0
      %251 = vmatpush.msra.mxu0 0.0
      %252 = vmatpush.msra.mxu0 0.0
      %253 = vmatpush.msra.mxu0 0.0
      %254 = vmatpush.msra.mxu0 0.0
      %255 = vmatpush.msra.mxu0 0.0
      %256 = vmatpush.msra.mxu0 0.0
      %257 = vmatpush.msra.mxu0 0.0
      %258 = vmatpush.msra.mxu0 0.0
      %259 = vmatpush.msra.mxu0 0.0
      %260 = vmatpush.msra.mxu0 0.0
      %261 = vmatpush.msra.mxu0 0.0
      %262 = vmatpush.msra.mxu0 0.0
      %263 = vmatpush.msra.mxu0 0.0
      %264 = vmatpush.msra.mxu0 0.0
      %265 = vmatpush.msra.mxu0 %v221
      %266 = vmatpush.msra.mxu0 %v220
      %267 = vmatmul.f32.gmra.mxu0 %v228
      %v268 = vpop.f32.mrf.mxu0
      %v269 = vadd.f32 %v224, %v268
      %270 = vmatmul.f32.gmra.mxu0 %v231
      %v271 = vpop.f32.mrf.mxu0
      %v272 = vadd.f32 %v224, %v271
      %273 = vmatmul.f32.gmra.mxu0 %v234
      %v274 = vpop.f32.mrf.mxu0
      %v275 = vadd.f32 %v224, %v274
      %276 = vmatmul.f32.gmra.mxu0 %v237
      %v277 = vpop.f32.mrf.mxu0
      %v278 = vadd.f32 %v224, %v277
      %279 = vmatmul.f32.gmra.mxu0 %v240
      %v280 = vpop.f32.mrf.mxu0
      %v281 = vadd.f32 %v224, %v280
      %282 = vmatmul.f32.gmra.mxu0 %v243
      %v283 = vpop.f32.mrf.mxu0
      %v284 = vadd.f32 %v224, %v283
      %285 = vmatmul.f32.gmra.mxu0 %v246
      %v286 = vpop.f32.mrf.mxu0
      %v287 = vadd.f32 %v224, %v286
      %288 = vmatmul.f32.gmra.mxu0 %v249
      %v289 = vpop.f32.mrf.mxu0
      %v290 = vadd.f32 %v224, %v289
      %291 = vdwg.mxu0
      %292 = vst.msk [vmem:[%s210] sm:$0xff] %vm226, %v269
      %293 = vst.msk [vmem:[%s210 + $0x10] sm:$0xff] %vm226, %v272
      %294 = vst.msk [vmem:[%s210 + $0x20] sm:$0xff] %vm226, %v275
      %295 = vst.msk [vmem:[%s210 + $0x30] sm:$0xff] %vm226, %v278
      %296 = vst.msk [vmem:[%s210 + $0x40] sm:$0xff] %vm226, %v281
      %297 = vst.msk [vmem:[%s210 + $0x50] sm:$0xff] %vm226, %v284
      %298 = vst.msk [vmem:[%s210 + $0x60] sm:$0xff] %vm226, %v287
      %299 = vst.msk [vmem:[%s210 + $0x70] sm:$0xff] %vm226, %v290
      %308 = vrot.lane.b32.xlu0 %v269, 112
      %v309 = vpop.permute.xlu0 %308
      %310 = vrot.lane.b32.xlu0 %v272, 112
      %v311 = vpop.permute.xlu0 %310
      %312 = vrot.lane.b32.xlu0 %v275, 112
      %v313 = vpop.permute.xlu0 %312
      %314 = vrot.lane.b32.xlu0 %v278, 112
      %v315 = vpop.permute.xlu0 %314
      %316 = vrot.lane.b32.xlu0 %v281, 112
      %v317 = vpop.permute.xlu0 %316
      %318 = vrot.lane.b32.xlu0 %v284, 112
      %v319 = vpop.permute.xlu0 %318
      %320 = vrot.lane.b32.xlu0 %v287, 112
      %v321 = vpop.permute.xlu0 %320
      %322 = vrot.lane.b32.xlu0 %v290, 112
      %v323 = vpop.permute.xlu0 %322
      %s332 = scalar_lea.vmem %s210, 8
      %333 = vst.msk [vmem:[%s332] sm:$0xff] %vm226, %v309
      %334 = vst.msk [vmem:[%s332 + $0x10] sm:$0xff] %vm226, %v311
      %335 = vst.msk [vmem:[%s332 + $0x20] sm:$0xff] %vm226, %v313
      %336 = vst.msk [vmem:[%s332 + $0x30] sm:$0xff] %vm226, %v315
      %337 = vst.msk [vmem:[%s332 + $0x40] sm:$0xff] %vm226, %v317
      %338 = vst.msk [vmem:[%s332 + $0x50] sm:$0xff] %vm226, %v319
      %339 = vst.msk [vmem:[%s332 + $0x60] sm:$0xff] %vm226, %v321
      %340 = vst.msk [vmem:[%s332 + $0x70] sm:$0xff] %vm226, %v323
      %s341 = smul.u32 8, %s19
      %p342 = scmp.lt.s32.totalorder %s18, 1
      %s343 = scalar_select %p342, %s18, 1
      %p344 = scmp.lt.s32.totalorder %s341, 7
      %s345 = scalar_select %p344, %s341, 7
      %s346 = smul.addr %s345, 2
      %s347 = smul.addr %s343, 16
      %s348 = sadd.s32 %s346, %s347
      %s349 = smul.addr %s348, 8
      %s350 = scalar_lea.vmem %s3, %s349
      // Predicated region
      $region33: #{up_forward.2} parent=31 // pred_check
        %p351 = pneg %p116
      $region34: #{up_forward.2} parent=31 // pred_check_branch
        %353 = sbr.rel (%p351) target = $region36
      $region35: #{up_forward.2} parent=31 // pred_region
        %s354 = smul.u32 8, %s19
      $region36: #{up_forward.2} parent=31 // pred_fallthru
        _
    $region32: #{up_forward.2} parent=5 // pred_fallthru
      _
    %p355 = scmp.le.s32.totalorder 2, %s9
    // Predicated region
    $region37: #{up_forward.2} parent=5 // pred_check
      %p356 = pneg %p355
    $region38: #{up_forward.2} parent=5 // pred_check_branch
      %358 = sbr.rel (%p356) target = $region40
    $region39: #{up_forward.2} parent=5 // pred_region
      %s359 = ssub.s32 %s9, 2
      // Predicated region
      $region41: #{up_forward.2} parent=39 // pred_check
        %p360 = pneg %p122
      $region42: #{up_forward.2} parent=39 // pred_check_branch
        %362 = sbr.rel (%p360) target = $region44
      $region43: #{up_forward.2} parent=39 // pred_region
        %s363 = smul.u32 8, %s21
        %p364 = scmp.lt.s32.totalorder %s20, 1
        %s365 = scalar_select %p364, %s20, 1
        %p366 = scmp.lt.s32.totalorder %s363, 7
        %s367 = scalar_select %p366, %s363, 7
        %s368 = smul.addr %s367, 2
        %s369 = smul.addr %s365, 16
        %s370 = sadd.s32 %s368, %s369
        %s371 = smul.addr %s370, 8
        %s372 = scalar_lea.vmem %s3, %s371
      $region44: #{up_forward.2} parent=39 // pred_fallthru
        _
    $region40: #{up_forward.2} parent=5 // pred_fallthru
      _
  $region6: #{up_forward.2} parent=0 // loop_footer
    %s13 = sadd.s32 1, %s9
  $region7: #{up_forward.2} parent=0 // loop_footer_branch
    %8 = sbr.rel target = $region3
  $region8: #{up_forward.2} parent=0 // loop_exit
    _

// kernel: up_forward.3
$region0: #{up_forward.3}
  #allocation0 [shape = 'u32[]', space=smem, size = 0x4, offset = 0x4, fixed_abs, tag = 'smem constant byte address 0x4 - core index']
  #allocation1 [shape = 'u32[72,128]{1,0:T(1,128)}', space=vmem, size = 0x9000, scoped, tag = 'internal scratch']
  #allocation2 [shape = 'f32[18,18,16]{2,1,0:T(8,128)}', space=vmem, size = 0x36000, scoped, tag = 'scratch operand']
  #allocation3 [shape = 'f32[18,18,8]{2,1,0:T(8,128)}', space=vmem, size = 0x36000, scoped, tag = 'scratch operand']
  %s0 = inlined_call_operand.vmem [shape: f32[2,16,16,8], index: 0, kind: input, shape index: {}]
  %s1 = inlined_call_operand.vmem [shape: f32[2,16,16,8], index: 1, kind: input, shape index: {}]
  %s2 = inlined_call_operand.vmem [shape: f32[3,3,16,8], index: 2, kind: input, shape index: {}]
  %s3 = inlined_call_operand.vmem [shape: f32[1,8], index: 3, kind: input, shape index: {}]
  %s4 = inlined_call_operand.vmem [shape: f32[1,8], index: 4, kind: input, shape index: {}]
  %s5 = inlined_call_operand.vmem [shape: f32[3,3,8,8], index: 5, kind: input, shape index: {}]
  %s6 = inlined_call_operand.vmem [shape: f32[8,1], index: 6, kind: input, shape index: {}]
  %s7 = inlined_call_operand.vmem [shape: f32[8,1], index: 7, kind: input, shape index: {}]
  %s8 = inlined_call_operand.vmem [shape: f32[2,8,256], index: 8, kind: output, shape index: {}]
  %s9 = sld [smem:[#allocation0]]
  $region65: #{up_forward.3} parent=0
    _
  %s11 = ssub.s32 1, %s9
  %s12 = scalar_select 0, %s11, %s9
  loop: start=0, step=1, limit=4
  $region2: #{up_forward.3} parent=0 // loop_pre_header
    _
  $region3: #{up_forward.3} parent=0 // loop_header
    %s14 = sphi 0, %s18
    %p15 = scmp.ge.s32.totalorder %s14, 4
    %s24 = sphi 0, %s26
    %s27 = sphi 0, %s24
    %s28 = sphi 0, %s27
    %s44 = sphi 0, %s28
    %s50 = sphi 0, %s52
    %s53 = sphi 0, %s50
    %s54 = sphi 0, %s53
    %s70 = sphi 0, %s54
    %s74 = sphi 0, %s74
    %s76 = sphi 0, %s74
    %s77 = sphi 0, %s76
    %s91 = sphi 0, %s77
    %s95 = sphi 0, %s95
    %s97 = sphi 0, %s95
    %s98 = sphi 0, %s97
    %s112 = sphi 0, %s98
    %s116 = sphi 0, %s116
    %s118 = sphi 0, %s116
    %s119 = sphi 0, %s118
    %s133 = sphi 0, %s119
    %s137 = sphi 0, %s137
    %s139 = sphi 0, %s137
    %s140 = sphi 0, %s139
    %s154 = sphi 0, %s140
    %s158 = sphi 0, %s158
    %s160 = sphi 0, %s158
    %s161 = sphi 0, %s160
    %s175 = sphi 0, %s161
    %s179 = sphi 0, %s179
    %s181 = sphi 0, %s179
    %s182 = sphi 0, %s181
    %s196 = sphi 0, %s182
    %s202 = sphi 0, %s204
    %s205 = sphi 0, %s202
    %s206 = sphi 0, %s205
    %s222 = sphi 0, %s206
  $region4: #{up_forward.3} parent=0 // loop_header_branch
    %17 = sbr.rel (%p15) target = $region8
  $region5: #{up_forward.3} parent=0 // loop_body
    %s19 = ssub.s32 %s14, 1
    %s20 = ssub.s32 %s14, 2
    %s21 = sadd.s32 %s14, 1
    %s22 = ssub.s32 %s14, %s21
    %p23 = scmp.eq.s32.totalorder %s22, 0
    %s25 = sadd.s32 %s24, 1
    %s26 = scalar_select %p23, %s24, %s25
    %p29 = pneg %p23
    %p30 = scmp.eq.s32.totalorder %s14, 1
    %p31 = por %p29, %p30
    %p32 = scmp.ne.s32.totalorder %s24, %s27
    %p33 = scmp.eq.s32.totalorder %s14, 0
    %p34 = por %p32, %p33
    %p35 = scmp.ne.s32.totalorder %s24, %s27
    %p36 = scmp.eq.s32.totalorder %s19, 1
    %p37 = por %p35, %p36
    %p38 = scmp.ne.s32.totalorder %s27, %s28
    %p39 = scmp.eq.s32.totalorder %s19, 0
    %p40 = por %p38, %p39
    %p41 = scmp.ne.s32.totalorder %s27, %s28
    %p42 = scmp.eq.s32.totalorder %s20, 1
    %p43 = por %p41, %p42
    %p45 = scmp.ne.s32.totalorder %s28, %s44
    %p46 = scmp.eq.s32.totalorder %s20, 0
    %p47 = por %p45, %p46
    %s48 = ssub.s32 %s14, %s21
    %p49 = scmp.eq.s32.totalorder %s48, 0
    %s51 = sadd.s32 %s50, 1
    %s52 = scalar_select %p49, %s50, %s51
    %p55 = pneg %p49
    %p56 = scmp.eq.s32.totalorder %s14, 1
    %p57 = por %p55, %p56
    %p58 = scmp.ne.s32.totalorder %s50, %s53
    %p59 = scmp.eq.s32.totalorder %s14, 0
    %p60 = por %p58, %p59
    %p61 = scmp.ne.s32.totalorder %s50, %s53
    %p62 = scmp.eq.s32.totalorder %s19, 1
    %p63 = por %p61, %p62
    %p64 = scmp.ne.s32.totalorder %s53, %s54
    %p65 = scmp.eq.s32.totalorder %s19, 0
    %p66 = por %p64, %p65
    %p67 = scmp.ne.s32.totalorder %s53, %s54
    %p68 = scmp.eq.s32.totalorder %s20, 1
    %p69 = por %p67, %p68
    %p71 = scmp.ne.s32.totalorder %s54, %s70
    %p72 = scmp.eq.s32.totalorder %s20, 0
    %p73 = por %p71, %p72
    %s75 = sadd.s32 %s74, 1
    %p78 = scmp.eq.s32.totalorder %s14, 1
    %p79 = scmp.ne.s32.totalorder %s74, %s76
    %p80 = scmp.eq.s32.totalorder %s14, 0
    %p81 = por %p79, %p80
    %p82 = scmp.ne.s32.totalorder %s74, %s76
    %p83 = scmp.eq.s32.totalorder %s19, 1
    %p84 = por %p82, %p83
    %p85 = scmp.ne.s32.totalorder %s76, %s77
    %p86 = scmp.eq.s32.totalorder %s19, 0
    %p87 = por %p85, %p86
    %p88 = scmp.ne.s32.totalorder %s76, %s77
    %p89 = scmp.eq.s32.totalorder %s20, 1
    %p90 = por %p88, %p89
    %p92 = scmp.ne.s32.totalorder %s77, %s91
    %p93 = scmp.eq.s32.totalorder %s20, 0
    %p94 = por %p92, %p93
    %s96 = sadd.s32 %s95, 1
    %p99 = scmp.eq.s32.totalorder %s14, 1
    %p100 = scmp.ne.s32.totalorder %s95, %s97
    %p101 = scmp.eq.s32.totalorder %s14, 0
    %p102 = por %p100, %p101
    %p103 = scmp.ne.s32.totalorder %s95, %s97
    %p104 = scmp.eq.s32.totalorder %s19, 1
    %p105 = por %p103, %p104
    %p106 = scmp.ne.s32.totalorder %s97, %s98
    %p107 = scmp.eq.s32.totalorder %s19, 0
    %p108 = por %p106, %p107
    %p109 = scmp.ne.s32.totalorder %s97, %s98
    %p110 = scmp.eq.s32.totalorder %s20, 1
    %p111 = por %p109, %p110
    %p113 = scmp.ne.s32.totalorder %s98, %s112
    %p114 = scmp.eq.s32.totalorder %s20, 0
    %p115 = por %p113, %p114
    %s117 = sadd.s32 %s116, 1
    %p120 = scmp.eq.s32.totalorder %s14, 1
    %p121 = scmp.ne.s32.totalorder %s116, %s118
    %p122 = scmp.eq.s32.totalorder %s14, 0
    %p123 = por %p121, %p122
    %p124 = scmp.ne.s32.totalorder %s116, %s118
    %p125 = scmp.eq.s32.totalorder %s19, 1
    %p126 = por %p124, %p125
    %p127 = scmp.ne.s32.totalorder %s118, %s119
    %p128 = scmp.eq.s32.totalorder %s19, 0
    %p129 = por %p127, %p128
    %p130 = scmp.ne.s32.totalorder %s118, %s119
    %p131 = scmp.eq.s32.totalorder %s20, 1
    %p132 = por %p130, %p131
    %p134 = scmp.ne.s32.totalorder %s119, %s133
    %p135 = scmp.eq.s32.totalorder %s20, 0
    %p136 = por %p134, %p135
    %s138 = sadd.s32 %s137, 1
    %p141 = scmp.eq.s32.totalorder %s14, 1
    %p142 = scmp.ne.s32.totalorder %s137, %s139
    %p143 = scmp.eq.s32.totalorder %s14, 0
    %p144 = por %p142, %p143
    %p145 = scmp.ne.s32.totalorder %s137, %s139
    %p146 = scmp.eq.s32.totalorder %s19, 1
    %p147 = por %p145, %p146
    %p148 = scmp.ne.s32.totalorder %s139, %s140
    %p149 = scmp.eq.s32.totalorder %s19, 0
    %p150 = por %p148, %p149
    %p151 = scmp.ne.s32.totalorder %s139, %s140
    %p152 = scmp.eq.s32.totalorder %s20, 1
    %p153 = por %p151, %p152
    %p155 = scmp.ne.s32.totalorder %s140, %s154
    %p156 = scmp.eq.s32.totalorder %s20, 0
    %p157 = por %p155, %p156
    %s159 = sadd.s32 %s158, 1
    %p162 = scmp.eq.s32.totalorder %s14, 1
    %p163 = scmp.ne.s32.totalorder %s158, %s160
    %p164 = scmp.eq.s32.totalorder %s14, 0
    %p165 = por %p163, %p164
    %p166 = scmp.ne.s32.totalorder %s158, %s160
    %p167 = scmp.eq.s32.totalorder %s19, 1
    %p168 = por %p166, %p167
    %p169 = scmp.ne.s32.totalorder %s160, %s161
    %p170 = scmp.eq.s32.totalorder %s19, 0
    %p171 = por %p169, %p170
    %p172 = scmp.ne.s32.totalorder %s160, %s161
    %p173 = scmp.eq.s32.totalorder %s20, 1
    %p174 = por %p172, %p173
    %p176 = scmp.ne.s32.totalorder %s161, %s175
    %p177 = scmp.eq.s32.totalorder %s20, 0
    %p178 = por %p176, %p177
    %s180 = sadd.s32 %s179, 1
    %p183 = scmp.eq.s32.totalorder %s14, 1
    %p184 = scmp.ne.s32.totalorder %s179, %s181
    %p185 = scmp.eq.s32.totalorder %s14, 0
    %p186 = por %p184, %p185
    %p187 = scmp.ne.s32.totalorder %s179, %s181
    %p188 = scmp.eq.s32.totalorder %s19, 1
    %p189 = por %p187, %p188
    %p190 = scmp.ne.s32.totalorder %s181, %s182
    %p191 = scmp.eq.s32.totalorder %s19, 0
    %p192 = por %p190, %p191
    %p193 = scmp.ne.s32.totalorder %s181, %s182
    %p194 = scmp.eq.s32.totalorder %s20, 1
    %p195 = por %p193, %p194
    %p197 = scmp.ne.s32.totalorder %s182, %s196
    %p198 = scmp.eq.s32.totalorder %s20, 0
    %p199 = por %p197, %p198
    %s200 = ssub.s32 %s14, %s21
    %p201 = scmp.eq.s32.totalorder %s200, 0
    %s203 = sadd.s32 %s202, 1
    %s204 = scalar_select %p201, %s202, %s203
    %p207 = pneg %p201
    %p208 = scmp.eq.s32.totalorder %s14, 1
    %p209 = por %p207, %p208
    %p210 = scmp.ne.s32.totalorder %s202, %s205
    %p211 = scmp.eq.s32.totalorder %s14, 0
    %p212 = por %p210, %p211
    %p213 = scmp.ne.s32.totalorder %s202, %s205
    %p214 = scmp.eq.s32.totalorder %s19, 1
    %p215 = por %p213, %p214
    %p216 = scmp.ne.s32.totalorder %s205, %s206
    %p217 = scmp.eq.s32.totalorder %s19, 0
    %p218 = por %p216, %p217
    %p219 = scmp.ne.s32.totalorder %s205, %s206
    %p220 = scmp.eq.s32.totalorder %s20, 1
    %p221 = por %p219, %p220
    %p223 = scmp.ne.s32.totalorder %s206, %s222
    %p224 = scmp.eq.s32.totalorder %s20, 0
    %p225 = por %p223, %p224
    %p226 = scmp.le.s32.totalorder 1, %s14
    %p227 = scmp.lt.s32.totalorder %s14, 3
    %p228 = pnand %p226, %p227
    %p229 = pneg %p228
    // Predicated region
    $region9: #{up_forward.3} parent=5 // pred_check
      _
    $region10: #{up_forward.3} parent=5 // pred_check_branch
      %231 = sbr.rel (%p228) target = $region12
    $region11: #{up_forward.3} parent=5 // pred_region
      %s232 = ssub.s32 %s14, 1
      // Predicated region
      $region13: #{up_forward.3} parent=11 // pred_check
        %p233 = pneg %p87
      $region14: #{up_forward.3} parent=11 // pred_check_branch
        %235 = sbr.rel (%p233) target = $region16
      $region15: #{up_forward.3} parent=11 // pred_region
        _
      $region16: #{up_forward.3} parent=11 // pred_fallthru
        _
      // Predicated region
      $region17: #{up_forward.3} parent=11 // pred_check
        %p236 = pneg %p108
      $region18: #{up_forward.3} parent=11 // pred_check_branch
        %238 = sbr.rel (%p236) target = $region20
      $region19: #{up_forward.3} parent=11 // pred_region
        _
      $region20: #{up_forward.3} parent=11 // pred_fallthru
        _
      // Predicated region
      $region21: #{up_forward.3} parent=11 // pred_check
        %p239 = pneg %p129
      $region22: #{up_forward.3} parent=11 // pred_check_branch
        %241 = sbr.rel (%p239) target = $region24
      $region23: #{up_forward.3} parent=11 // pred_region
        _
      $region24: #{up_forward.3} parent=11 // pred_fallthru
        _
      // Predicated region
      $region25: #{up_forward.3} parent=11 // pred_check
        %p242 = pneg %p150
      $region26: #{up_forward.3} parent=11 // pred_check_branch
        %244 = sbr.rel (%p242) target = $region28
      $region27: #{up_forward.3} parent=11 // pred_region
        _
      $region28: #{up_forward.3} parent=11 // pred_fallthru
        _
      // Predicated region
      $region29: #{up_forward.3} parent=11 // pred_check
        %p245 = pneg %p171
      $region30: #{up_forward.3} parent=11 // pred_check_branch
        %247 = sbr.rel (%p245) target = $region32
      $region31: #{up_forward.3} parent=11 // pred_region
        _
      $region32: #{up_forward.3} parent=11 // pred_fallthru
        _
      // Predicated region
      $region33: #{up_forward.3} parent=11 // pred_check
        %p248 = pneg %p192
      $region34: #{up_forward.3} parent=11 // pred_check_branch
        %250 = sbr.rel (%p248) target = $region36
      $region35: #{up_forward.3} parent=11 // pred_region
        _
      $region36: #{up_forward.3} parent=11 // pred_fallthru
        _
    $region12: #{up_forward.3} parent=5 // pred_fallthru
      _
    %p251 = scmp.lt.s32.totalorder %s14, 2
    // Predicated region
    $region37: #{up_forward.3} parent=5 // pred_check
      %p252 = pneg %p251
    $region38: #{up_forward.3} parent=5 // pred_check_branch
      %254 = sbr.rel (%p252) target = $region40
    $region39: #{up_forward.3} parent=5 // pred_region
      // Predicated region
      $region41: #{up_forward.3} parent=39 // pred_check
        %p255 = pneg %p34
      $region42: #{up_forward.3} parent=39 // pred_check_branch
        %257 = sbr.rel (%p255) target = $region44
      $region43: #{up_forward.3} parent=39 // pred_region
        %p258 = scmp.lt.s32.totalorder %s14, 1
        %s259 = scalar_select %p258, %s14, 1
        %s260 = smul.addr %s259, 32
        %s261 = smul.addr %s260, 8
        %s262 = scalar_lea.vmem %s0, %s261
      $region44: #{up_forward.3} parent=39 // pred_fallthru
        _
      // Predicated region
      $region45: #{up_forward.3} parent=39 // pred_check
        %p263 = pneg %p60
      $region46: #{up_forward.3} parent=39 // pred_check_branch
        %265 = sbr.rel (%p263) target = $region48
      $region47: #{up_forward.3} parent=39 // pred_region
        %p266 = scmp.lt.s32.totalorder %s14, 1
        %s267 = scalar_select %p266, %s14, 1
        %s268 = smul.addr %s267, 32
        %s269 = smul.addr %s268, 8
        %s270 = scalar_lea.vmem %s1, %s269
      $region48: #{up_forward.3} parent=39 // pred_fallthru
        _
    $region40: #{up_forward.3} parent=5 // pred_fallthru
      _
    %p271 = scmp.le.s32.totalorder 1, %s14
    %p272 = scmp.lt.s32.totalorder %s14, 3
    %p273 = pnand %p271, %p272
    %p274 = pneg %p273
    // Predicated region
    $region49: #{up_forward.3} parent=5 // pred_check
      _
    $region50: #{up_forward.3} parent=5 // pred_check_branch
      %276 = sbr.rel (%p273) target = $region52
    $region51: #{up_forward.3} parent=5 // pred_region
      %s277 = ssub.s32 %s14, 1
      %p278 = scmp.lt.s32.totalorder %s19, 1
      %s279 = scalar_select %p278, %s19, 1
      %s280 = smul.addr %s279, 32
      %s281 = smul.addr %s280, 8
      %s282 = scalar_lea.vmem %s0, %s281
      %p283 = pneg %p40
      %p284 = pneg %p37
      %p285 = scmp.lt.s32.totalorder %s19, 1
      %s286 = scalar_select %p285, %s19, 1
      %s287 = smul.addr %s286, 32
      %s288 = smul.addr %s287, 8
      %s289 = scalar_lea.vmem %s1, %s288
      %p290 = pneg %p66
      %p291 = pneg %p63
      %p292 = pneg %p87
      %p293 = pneg %p84
      %p294 = pneg %p108
      %p295 = pneg %p105
      %p296 = pneg %p129
      %p297 = pneg %p126
      %p298 = pneg %p150
      %p299 = pneg %p147
      %p300 = pneg %p171
      %p301 = pneg %p168
      %p302 = pneg %p192
      %p303 = pneg %p189
      %p304 = pneg %p218
      %p305 = pneg %p215
      %p306 = scmp.lt.s32.totalorder %s19, 1
      %s307 = scalar_select %p306, %s19, 1
      %s308 = smul.addr %s307, 2
      %s309 = smul.addr %s308, 8
      %s310 = scalar_lea.vmem %s8, %s309
      %p311 = scmp.lt.s32.totalorder %s19, 1
      %s312 = scalar_select %p311, %s19, 1
      %s313 = smul.addr %s312, 32
      %s314 = smul.addr %s313, 8
      %s315 = scalar_lea.vmem %s0, %s314
      %p316 = scmp.lt.s32.totalorder %s19, 1
      %s317 = scalar_select %p316, %s19, 1
      %s318 = smul.addr %s317, 32
      %s319 = smul.addr %s318, 8
      %s320 = scalar_lea.vmem %s1, %s319
      %p321 = scmp.lt.s32.totalorder %s19, 1
      %s322 = scalar_select %p321, %s19, 1
      %s323 = smul.addr %s322, 2
      %s324 = smul.addr %s323, 8
      %s325 = scalar_lea.vmem %s8, %s324
      %vm326 = vcmask 130048
      %327 = vst.msk [vmem:[#allocation2] sm:$0xff] %vm326, 0.0
      %328 = vst.msk [vmem:[#allocation2 + $0x8] sm:$0xff] %vm326, 0.0
      %vm329 = vcmask 123904
      %330 = vst.msk [vmem:[#allocation2 + $0x10] sm:$0x3] %vm329, 0.0
      %s331 = scalar_lea.vmem [#allocation2], 408
      %332 = vst.msk [vmem:[%s331] sm:$0xff] %vm326, 0.0
      %333 = vst.msk [vmem:[%s331 + $0x8] sm:$0xff] %vm326, 0.0
      %334 = vst.msk [vmem:[%s331 + $0x10] sm:$0x3] %vm329, 0.0
      %vm335 = vcmask 122880
      %336 = vst.msk [vmem:[#allocation2] sm:$0x1] %vm335, 0.0
      %337 = vst.msk [vmem:[#allocation2 + $0x18] sm:$0x1] %vm335, 0.0
      %338 = vst.msk [vmem:[#allocation2 + $0x30] sm:$0x1] %vm335, 0.0
      %339 = vst.msk [vmem:[#allocation2 + $0x48] sm:$0x1] %vm335, 0.0
      %340 = vst.msk [vmem:[#allocation2 + $0x60] sm:$0x1] %vm335, 0.0
      %341 = vst.msk [vmem:[#allocation2 + $0x78] sm:$0x1] %vm335, 0.0
      %342 = vst.msk [vmem:[#allocation2 + $0x90] sm:$0x1] %vm335, 0.0
      %343 = vst.msk [vmem:[#allocation2 + $0xa8] sm:$0x1] %vm335, 0.0
      %344 = vst.msk [vmem:[#allocation2 + $0xc0] sm:$0x1] %vm335, 0.0
      %345 = vst.msk [vmem:[#allocation2 + $0xd8] sm:$0x1] %vm335, 0.0
      %346 = vst.msk [vmem:[#allocation2 + $0xf0] sm:$0x1] %vm335, 0.0
      %347 = vst.msk [vmem:[#allocation2 + $0x108] sm:$0x1] %vm335, 0.0
      %348 = vst.msk [vmem:[#allocation2 + $0x120] sm:$0x1] %vm335, 0.0
      %349 = vst.msk [vmem:[#allocation2 + $0x138] sm:$0x1] %vm335, 0.0
      %350 = vst.msk [vmem:[#allocation2 + $0x150] sm:$0x1] %vm335, 0.0
      %351 = vst.msk [vmem:[#allocation2 + $0x168] sm:$0x1] %vm335, 0.0
      %352 = vst.msk [vmem:[#allocation2 + $0x180] sm:$0x1] %vm335, 0.0
      %353 = vst.msk [vmem:[#allocation2 + $0x198] sm:$0x1] %vm335, 0.0
      %354 = vst.msk [vmem:[#allocation2 + $0x11] sm:$0x1] %vm335, 0.0
      %355 = vst.msk [vmem:[#allocation2 + $0x29] sm:$0x1] %vm335, 0.0
      %356 = vst.msk [vmem:[#allocation2 + $0x41] sm:$0x1] %vm335, 0.0
      %357 = vst.msk [vmem:[#allocation2 + $0x59] sm:$0x1] %vm335, 0.0
      %358 = vst.msk [vmem:[#allocation2 + $0x71] sm:$0x1] %vm335, 0.0
      %359 = vst.msk [vmem:[#allocation2 + $0x89] sm:$0x1] %vm335, 0.0
      %360 = vst.msk [vmem:[#allocation2 + $0xa1] sm:$0x1] %vm335, 0.0
      %361 = vst.msk [vmem:[#allocation2 + $0xb9] sm:$0x1] %vm335, 0.0
      %362 = vst.msk [vmem:[#allocation2 + $0xd1] sm:$0x1] %vm335, 0.0
      %363 = vst.msk [vmem:[#allocation2 + $0xe9] sm:$0x1] %vm335, 0.0
      %364 = vst.msk [vmem:[#allocation2 + $0x101] sm:$0x1] %vm335, 0.0
      %365 = vst.msk [vmem:[#allocation2 + $0x119] sm:$0x1] %vm335, 0.0
      %366 = vst.msk [vmem:[#allocation2 + $0x131] sm:$0x1] %vm335, 0.0
      %367 = vst.msk [vmem:[#allocation2 + $0x149] sm:$0x1] %vm335, 0.0
      %368 = vst.msk [vmem:[#allocation2 + $0x161] sm:$0x1] %vm335, 0.0
      %369 = vst.msk [vmem:[#allocation2 + $0x179] sm:$0x1] %vm335, 0.0
      %370 = vst.msk [vmem:[#allocation2 + $0x191] sm:$0x1] %vm335, 0.0
      %371 = vst.msk [vmem:[#allocation2 + $0x1a9] sm:$0x1] %vm335, 0.0
      %v372 = vld [vmem:[%s315] sm:$0xff]
      %v373 = vld [vmem:[%s315 + $0x8] sm:$0xff]
      %v374 = vld [vmem:[%s315 + $0x10] sm:$0xff]
      %v375 = vld [vmem:[%s315 + $0x18] sm:$0xff]
      %v376 = vld [vmem:[%s315 + $0x20] sm:$0xff]
      %v377 = vld [vmem:[%s315 + $0x28] sm:$0xff]
      %v378 = vld [vmem:[%s315 + $0x30] sm:$0xff]
      %v379 = vld [vmem:[%s315 + $0x38] sm:$0xff]
      %v380 = vld [vmem:[%s315 + $0x40] sm:$0xff]
      %v381 = vld [vmem:[%s315 + $0x48] sm:$0xff]
      %v382 = vld [vmem:[%s315 + $0x50] sm:$0xff]
      %v383 = vld [vmem:[%s315 + $0x58] sm:$0xff]
      %v384 = vld [vmem:[%s315 + $0x60] sm:$0xff]
      %v385 = vld [vmem:[%s315 + $0x68] sm:$0xff]
      %v386 = vld [vmem:[%s315 + $0x70] sm:$0xff]
      %v387 = vld [vmem:[%s315 + $0x78] sm:$0xff]
      %v388 = vld [vmem:[%s315 + $0x80] sm:$0xff]
      %v389 = vld [vmem:[%s315 + $0x88] sm:$0xff]
      %v390 = vld [vmem:[%s315 + $0x90] sm:$0xff]
      %v391 = vld [vmem:[%s315 + $0x98] sm:$0xff]
      %v392 = vld [vmem:[%s315 + $0xa0] sm:$0xff]
      %v393 = vld [vmem:[%s315 + $0xa8] sm:$0xff]
      %v394 = vld [vmem:[%s315 + $0xb0] sm:$0xff]
      %v395 = vld [vmem:[%s315 + $0xb8] sm:$0xff]
      %v396 = vld [vmem:[%s315 + $0xc0] sm:$0xff]
      %v397 = vld [vmem:[%s315 + $0xc8] sm:$0xff]
      %v398 = vld [vmem:[%s315 + $0xd0] sm:$0xff]
      %v399 = vld [vmem:[%s315 + $0xd8] sm:$0xff]
      %v400 = vld [vmem:[%s315 + $0xe0] sm:$0xff]
      %v401 = vld [vmem:[%s315 + $0xe8] sm:$0xff]
      %v402 = vld [vmem:[%s315 + $0xf0] sm:$0xff]
      %v403 = vld [vmem:[%s315 + $0xf8] sm:$0xff]
      %s404 = scalar_lea.vmem [#allocation2], 24
      %vm405 = vcmask 64512
      %406 = vst.msk [vmem:[%s404 + $0x1] sm:$0xff] %vm405, %v372
      %407 = vst.msk [vmem:[%s404 + $0x9] sm:$0xff] %vm405, %v373
      %408 = vst.msk [vmem:[%s404 + $0x19] sm:$0xff] %vm405, %v374
      %409 = vst.msk [vmem:[%s404 + $0x21] sm:$0xff] %vm405, %v375
      %410 = vst.msk [vmem:[%s404 + $0x31] sm:$0xff] %vm405, %v376
      %411 = vst.msk [vmem:[%s404 + $0x39] sm:$0xff] %vm405, %v377
      %412 = vst.msk [vmem:[%s404 + $0x49] sm:$0xff] %vm405, %v378
      %413 = vst.msk [vmem:[%s404 + $0x51] sm:$0xff] %vm405, %v379
      %414 = vst.msk [vmem:[%s404 + $0x61] sm:$0xff] %vm405, %v380
      %415 = vst.msk [vmem:[%s404 + $0x69] sm:$0xff] %vm405, %v381
      %416 = vst.msk [vmem:[%s404 + $0x79] sm:$0xff] %vm405, %v382
      %417 = vst.msk [vmem:[%s404 + $0x81] sm:$0xff] %vm405, %v383
      %418 = vst.msk [vmem:[%s404 + $0x91] sm:$0xff] %vm405, %v384
      %419 = vst.msk [vmem:[%s404 + $0x99] sm:$0xff] %vm405, %v385
      %420 = vst.msk [vmem:[%s404 + $0xa9] sm:$0xff] %vm405, %v386
      %421 = vst.msk [vmem:[%s404 + $0xb1] sm:$0xff] %vm405, %v387
      %422 = vst.msk [vmem:[%s404 + $0xc1] sm:$0xff] %vm405, %v388
      %423 = vst.msk [vmem:[%s404 + $0xc9] sm:$0xff] %vm405, %v389
      %424 = vst.msk [vmem:[%s404 + $0xd9] sm:$0xff] %vm405, %v390
      %425 = vst.msk [vmem:[%s404 + $0xe1] sm:$0xff] %vm405, %v391
      %426 = vst.msk [vmem:[%s404 + $0xf1] sm:$0xff] %vm405, %v392
      %427 = vst.msk [vmem:[%s404 + $0xf9] sm:$0xff] %vm405, %v393
      %428 = vst.msk [vmem:[%s404 + $0x109] sm:$0xff] %vm405, %v394
      %429 = vst.msk [vmem:[%s404 + $0x111] sm:$0xff] %vm405, %v395
      %430 = vst.msk [vmem:[%s404 + $0x121] sm:$0xff] %vm405, %v396
      %431 = vst.msk [vmem:[%s404 + $0x129] sm:$0xff] %vm405, %v397
      %432 = vst.msk [vmem:[%s404 + $0x139] sm:$0xff] %vm405, %v398
      %433 = vst.msk [vmem:[%s404 + $0x141] sm:$0xff] %vm405, %v399
      %434 = vst.msk [vmem:[%s404 + $0x151] sm:$0xff] %vm405, %v400
      %435 = vst.msk [vmem:[%s404 + $0x159] sm:$0xff] %vm405, %v401
      %436 = vst.msk [vmem:[%s404 + $0x169] sm:$0xff] %vm405, %v402
      %437 = vst.msk [vmem:[%s404 + $0x171] sm:$0xff] %vm405, %v403
      %v438 = vld [vmem:[%s320] sm:$0xff]
      %v439 = vld [vmem:[%s320 + $0x8] sm:$0xff]
      %v440 = vld [vmem:[%s320 + $0x10] sm:$0xff]
      %v441 = vld [vmem:[%s320 + $0x18] sm:$0xff]
      %v442 = vld [vmem:[%s320 + $0x20] sm:$0xff]
      %v443 = vld [vmem:[%s320 + $0x28] sm:$0xff]
      %v444 = vld [vmem:[%s320 + $0x30] sm:$0xff]
      %v445 = vld [vmem:[%s320 + $0x38] sm:$0xff]
      %v446 = vld [vmem:[%s320 + $0x40] sm:$0xff]
      %v447 = vld [vmem:[%s320 + $0x48] sm:$0xff]
      %v448 = vld [vmem:[%s320 + $0x50] sm:$0xff]
      %v449 = vld [vmem:[%s320 + $0x58] sm:$0xff]
      %v450 = vld [vmem:[%s320 + $0x60] sm:$0xff]
      %v451 = vld [vmem:[%s320 + $0x68] sm:$0xff]
      %v452 = vld [vmem:[%s320 + $0x70] sm:$0xff]
      %v453 = vld [vmem:[%s320 + $0x78] sm:$0xff]
      %v454 = vld [vmem:[%s320 + $0x80] sm:$0xff]
      %v455 = vld [vmem:[%s320 + $0x88] sm:$0xff]
      %v456 = vld [vmem:[%s320 + $0x90] sm:$0xff]
      %v457 = vld [vmem:[%s320 + $0x98] sm:$0xff]
      %v458 = vld [vmem:[%s320 + $0xa0] sm:$0xff]
      %v459 = vld [vmem:[%s320 + $0xa8] sm:$0xff]
      %v460 = vld [vmem:[%s320 + $0xb0] sm:$0xff]
      %v461 = vld [vmem:[%s320 + $0xb8] sm:$0xff]
      %v462 = vld [vmem:[%s320 + $0xc0] sm:$0xff]
      %v463 = vld [vmem:[%s320 + $0xc8] sm:$0xff]
      %v464 = vld [vmem:[%s320 + $0xd0] sm:$0xff]
      %v465 = vld [vmem:[%s320 + $0xd8] sm:$0xff]
      %v466 = vld [vmem:[%s320 + $0xe0] sm:$0xff]
      %v467 = vld [vmem:[%s320 + $0xe8] sm:$0xff]
      %v468 = vld [vmem:[%s320 + $0xf0] sm:$0xff]
      %v469 = vld [vmem:[%s320 + $0xf8] sm:$0xff]
      %502 = vrot.lane.b32.xlu0 %v438, 8
      %v503 = vpop.permute.xlu0 %502
      %504 = vrot.lane.b32.xlu0 %v439, 8
      %v505 = vpop.permute.xlu0 %504
      %506 = vrot.lane.b32.xlu0 %v440, 8
      %v507 = vpop.permute.xlu0 %506
      %508 = vrot.lane.b32.xlu0 %v441, 8
      %v509 = vpop.permute.xlu0 %508
      %510 = vrot.lane.b32.xlu0 %v442, 8
      %v511 = vpop.permute.xlu0 %510
      %512 = vrot.lane.b32.xlu0 %v443, 8
      %v513 = vpop.permute.xlu0 %512
      %514 = vrot.lane.b32.xlu0 %v444, 8
      %v515 = vpop.permute.xlu0 %514
      %516 = vrot.lane.b32.xlu0 %v445, 8
      %v517 = vpop.permute.xlu0 %516
      %518 = vrot.lane.b32.xlu0 %v446, 8
      %v519 = vpop.permute.xlu0 %518
      %520 = vrot.lane.b32.xlu0 %v447, 8
      %v521 = vpop.permute.xlu0 %520
      %522 = vrot.lane.b32.xlu0 %v448, 8
      %v523 = vpop.permute.xlu0 %522
      %524 = vrot.lane.b32.xlu0 %v449, 8
      %v525 = vpop.permute.xlu0 %524
      %526 = vrot.lane.b32.xlu0 %v450, 8
      %v527 = vpop.permute.xlu0 %526
      %528 = vrot.lane.b32.xlu0 %v451, 8
      %v529 = vpop.permute.xlu0 %528
      %530 = vrot.lane.b32.xlu0 %v452, 8
      %v531 = vpop.permute.xlu0 %530
      %532 = vrot.lane.b32.xlu0 %v453, 8
      %v533 = vpop.permute.xlu0 %532
      %534 = vrot.lane.b32.xlu0 %v454, 8
      %v535 = vpop.permute.xlu0 %534
      %536 = vrot.lane.b32.xlu0 %v455, 8
      %v537 = vpop.permute.xlu0 %536
      %538 = vrot.lane.b32.xlu0 %v456, 8
      %v539 = vpop.permute.xlu0 %538
      %540 = vrot.lane.b32.xlu0 %v457, 8
      %v541 = vpop.permute.xlu0 %540
      %542 = vrot.lane.b32.xlu0 %v458, 8
      %v543 = vpop.permute.xlu0 %542
      %544 = vrot.lane.b32.xlu0 %v459, 8
      %v545 = vpop.permute.xlu0 %544
      %546 = vrot.lane.b32.xlu0 %v460, 8
      %v547 = vpop.permute.xlu0 %546
      %548 = vrot.lane.b32.xlu0 %v461, 8
      %v549 = vpop.permute.xlu0 %548
      %550 = vrot.lane.b32.xlu0 %v462, 8
      %v551 = vpop.permute.xlu0 %550
      %552 = vrot.lane.b32.xlu0 %v463, 8
      %v553 = vpop.permute.xlu0 %552
      %554 = vrot.lane.b32.xlu0 %v464, 8
      %v555 = vpop.permute.xlu0 %554
      %556 = vrot.lane.b32.xlu0 %v465, 8
      %v557 = vpop.permute.xlu0 %556
      %558 = vrot.lane.b32.xlu0 %v466, 8
      %v559 = vpop.permute.xlu0 %558
      %560 = vrot.lane.b32.xlu0 %v467, 8
      %v561 = vpop.permute.xlu0 %560
      %562 = vrot.lane.b32.xlu0 %v468, 8
      %v563 = vpop.permute.xlu0 %562
      %564 = vrot.lane.b32.xlu0 %v469, 8
      %v565 = vpop.permute.xlu0 %564
      %vm598 = vcmask 130112
      %599 = vst.msk [vmem:[%s404 + $0x1] sm:$0xff] %vm598, %v503
      %600 = vst.msk [vmem:[%s404 + $0x9] sm:$0xff] %vm598, %v505
      %601 = vst.msk [vmem:[%s404 + $0x19] sm:$0xff] %vm598, %v507
      %602 = vst.msk [vmem:[%s404 + $0x21] sm:$0xff] %vm598, %v509
      %603 = vst.msk [vmem:[%s404 + $0x31] sm:$0xff] %vm598, %v511
      %604 = vst.msk [vmem:[%s404 + $0x39] sm:$0xff] %vm598, %v513
      %605 = vst.msk [vmem:[%s404 + $0x49] sm:$0xff] %vm598, %v515
      %606 = vst.msk [vmem:[%s404 + $0x51] sm:$0xff] %vm598, %v517
      %607 = vst.msk [vmem:[%s404 + $0x61] sm:$0xff] %vm598, %v519
      %608 = vst.msk [vmem:[%s404 + $0x69] sm:$0xff] %vm598, %v521
      %609 = vst.msk [vmem:[%s404 + $0x79] sm:$0xff] %vm598, %v523
      %610 = vst.msk [vmem:[%s404 + $0x81] sm:$0xff] %vm598, %v525
      %611 = vst.msk [vmem:[%s404 + $0x91] sm:$0xff] %vm598, %v527
      %612 = vst.msk [vmem:[%s404 + $0x99] sm:$0xff] %vm598, %v529
      %613 = vst.msk [vmem:[%s404 + $0xa9] sm:$0xff] %vm598, %v531
      %614 = vst.msk [vmem:[%s404 + $0xb1] sm:$0xff] %vm598, %v533
      %615 = vst.msk [vmem:[%s404 + $0xc1] sm:$0xff] %vm598, %v535
      %616 = vst.msk [vmem:[%s404 + $0xc9] sm:$0xff] %vm598, %v537
      %617 = vst.msk [vmem:[%s404 + $0xd9] sm:$0xff] %vm598, %v539
      %618 = vst.msk [vmem:[%s404 + $0xe1] sm:$0xff] %vm598, %v541
      %619 = vst.msk [vmem:[%s404 + $0xf1] sm:$0xff] %vm598, %v543
      %620 = vst.msk [vmem:[%s404 + $0xf9] sm:$0xff] %vm598, %v545
      %621 = vst.msk [vmem:[%s404 + $0x109] sm:$0xff] %vm598, %v547
      %622 = vst.msk [vmem:[%s404 + $0x111] sm:$0xff] %vm598, %v549
      %623 = vst.msk [vmem:[%s404 + $0x121] sm:$0xff] %vm598, %v551
      %624 = vst.msk [vmem:[%s404 + $0x129] sm:$0xff] %vm598, %v553
      %625 = vst.msk [vmem:[%s404 + $0x139] sm:$0xff] %vm598, %v555
      %626 = vst.msk [vmem:[%s404 + $0x141] sm:$0xff] %vm598, %v557
      %627 = vst.msk [vmem:[%s404 + $0x151] sm:$0xff] %vm598, %v559
      %628 = vst.msk [vmem:[%s404 + $0x159] sm:$0xff] %vm598, %v561
      %629 = vst.msk [vmem:[%s404 + $0x169] sm:$0xff] %vm598, %v563
      %630 = vst.msk [vmem:[%s404 + $0x171] sm:$0xff] %vm598, %v565
      %v631 = vld [vmem:[#allocation2] sm:$0xff]
      %v632 = vld [vmem:[#allocation2 + $0x8] sm:$0xff]
      %v633 = vld [vmem:[#allocation2 + $0x10] sm:$0x3]
      %v634 = vld [vmem:[#allocation2 + $0x18] sm:$0xff]
      %v635 = vld [vmem:[#allocation2 + $0x20] sm:$0xff]
      %v636 = vld [vmem:[#allocation2 + $0x28] sm:$0x3]
      %v637 = vld [vmem:[#allocation2 + $0x30] sm:$0xff]
      %v638 = vld [vmem:[#allocation2 + $0x38] sm:$0xff]
      %v639 = vld [vmem:[#allocation2 + $0x40] sm:$0x3]
      %v640 = vld [vmem:[#allocation2 + $0x48] sm:$0xff]
      %v641 = vld [vmem:[#allocation2 + $0x50] sm:$0xff]
      %v642 = vld [vmem:[#allocation2 + $0x58] sm:$0x3]
      %v643 = vld [vmem:[#allocation2 + $0x60] sm:$0xff]
      %v644 = vld [vmem:[#allocation2 + $0x68] sm:$0xff]
      %v645 = vld [vmem:[#allocation2 + $0x70] sm:$0x3]
      %v646 = vld [vmem:[#allocation2 + $0x78] sm:$0xff]
      %v647 = vld [vmem:[#allocation2 + $0x80] sm:$0xff]
      %v648 = vld [vmem:[#allocation2 + $0x88] sm:$0x3]
      %v649 = vld [vmem:[#allocation2 + $0x90] sm:$0xff]
      %v650 = vld [vmem:[#allocation2 + $0x98] sm:$0xff]
      %v651 = vld [vmem:[#allocation2 + $0xa0] sm:$0x3]
      %v652 = vld [vmem:[#allocation2 + $0xa8] sm:$0xff]
      %v653 = vld [vmem:[#allocation2 + $0xb0] sm:$0xff]
      %v654 = vld [vmem:[#allocation2 + $0xb8] sm:$0x3]
      %v655 = vld [vmem:[#allocation2 + $0xc0] sm:$0xff]
      %v656 = vld [vmem:[#allocation2 + $0xc8] sm:$0xff]
      %v657 = vld [vmem:[#allocation2 + $0xd0] sm:$0x3]
      %v658 = vld [vmem:[#allocation2 + $0xd8] sm:$0xff]
      %v659 = vld [vmem:[#allocation2 + $0xe0] sm:$0xff]
      %v660 = vld [vmem:[#allocation2 + $0xe8] sm:$0x3]
      %v661 = vld [vmem:[#allocation2 + $0xf0] sm:$0xff]
      %v662 = vld [vmem:[#allocation2 + $0xf8] sm:$0xff]
      %v663 = vld [vmem:[#allocation2 + $0x100] sm:$0x3]
      %v664 = vld [vmem:[#allocation2 + $0x108] sm:$0xff]
      %v665 = vld [vmem:[#allocation2 + $0x110] sm:$0xff]
      %v666 = vld [vmem:[#allocation2 + $0x118] sm:$0x3]
      %v667 = vld [vmem:[#allocation2 + $0x120] sm:$0xff]
      %v668 = vld [vmem:[#allocation2 + $0x128] sm:$0xff]
      %v669 = vld [vmem:[#allocation2 + $0x130] sm:$0x3]
      %v670 = vld [vmem:[#allocation2 + $0x138] sm:$0xff]
      %v671 = vld [vmem:[#allocation2 + $0x140] sm:$0xff]
      %v672 = vld [vmem:[#allocation2 + $0x148] sm:$0x3]
      %v673 = vld [vmem:[#allocation2 + $0x150] sm:$0xff]
      %v674 = vld [vmem:[#allocation2 + $0x158] sm:$0xff]
      %v675 = vld [vmem:[#allocation2 + $0x160] sm:$0x3]
      %v676 = vld [vmem:[#allocation2 + $0x168] sm:$0xff]
      %v677 = vld [vmem:[#allocation2 + $0x170] sm:$0xff]
      %v678 = vld [vmem:[#allocation2 + $0x178] sm:$0x3]
      %v679 = vld [vmem:[%s2] sm:$0xff]
      %v680 = vld [vmem:[%s2 + $0x8] sm:$0xff]
      %s681 = scalar_lea.vmem %s2, 16
      %v682 = vld [vmem:[%s681] sm:$0xff]
      %v683 = vld [vmem:[%s681 + $0x8] sm:$0xff]
      %vm732 = vcmask 1046528
      %v733 = vrot.slane %v631, 1
      %v734 = vrot.slane %v632, 1
      %v735 = vsel %vm732, %v733, %v734
      %v736 = vrot.slane %v633, 1
      %v737 = vsel %vm732, %v734, %v736
      %v738 = vrot.slane %v634, 1
      %v739 = vrot.slane %v635, 1
      %v740 = vsel %vm732, %v738, %v739
      %v741 = vrot.slane %v636, 1
      %v742 = vsel %vm732, %v739, %v741
      %v743 = vrot.slane %v637, 1
      %v744 = vrot.slane %v638, 1
      %v745 = vsel %vm732, %v743, %v744
      %v746 = vrot.slane %v639, 1
      %v747 = vsel %vm732, %v744, %v746
      %v748 = vrot.slane %v640, 1
      %v749 = vrot.slane %v641, 1
      %v750 = vsel %vm732, %v748, %v749
      %v751 = vrot.slane %v642, 1
      %v752 = vsel %vm732, %v749, %v751
      %v753 = vrot.slane %v643, 1
      %v754 = vrot.slane %v644, 1
      %v755 = vsel %vm732, %v753, %v754
      %v756 = vrot.slane %v645, 1
      %v757 = vsel %vm732, %v754, %v756
      %v758 = vrot.slane %v646, 1
      %v759 = vrot.slane %v647, 1
      %v760 = vsel %vm732, %v758, %v759
      %v761 = vrot.slane %v648, 1
      %v762 = vsel %vm732, %v759, %v761
      %v763 = vrot.slane %v649, 1
      %v764 = vrot.slane %v650, 1
      %v765 = vsel %vm732, %v763, %v764
      %v766 = vrot.slane %v651, 1
      %v767 = vsel %vm732, %v764, %v766
      %v768 = vrot.slane %v652, 1
      %v769 = vrot.slane %v653, 1
      %v770 = vsel %vm732, %v768, %v769
      %v771 = vrot.slane %v654, 1
      %v772 = vsel %vm732, %v769, %v771
      %v773 = vrot.slane %v655, 1
      %v774 = vrot.slane %v656, 1
      %v775 = vsel %vm732, %v773, %v774
      %v776 = vrot.slane %v657, 1
      %v777 = vsel %vm732, %v774, %v776
      %v778 = vrot.slane %v658, 1
      %v779 = vrot.slane %v659, 1
      %v780 = vsel %vm732, %v778, %v779
      %v781 = vrot.slane %v660, 1
      %v782 = vsel %vm732, %v779, %v781
      %v783 = vrot.slane %v661, 1
      %v784 = vrot.slane %v662, 1
      %v785 = vsel %vm732, %v783, %v784
      %v786 = vrot.slane %v663, 1
      %v787 = vsel %vm732, %v784, %v786
      %v788 = vrot.slane %v664, 1
      %v789 = vrot.slane %v665, 1
      %v790 = vsel %vm732, %v788, %v789
      %v791 = vrot.slane %v666, 1
      %v792 = vsel %vm732, %v789, %v791
      %v793 = vrot.slane %v667, 1
      %v794 = vrot.slane %v668, 1
      %v795 = vsel %vm732, %v793, %v794
      %v796 = vrot.slane %v669, 1
      %v797 = vsel %vm732, %v794, %v796
      %v798 = vrot.slane %v670, 1
      %v799 = vrot.slane %v671, 1
      %v800 = vsel %vm732, %v798, %v799
      %v801 = vrot.slane %v672, 1
      %v802 = vsel %vm732, %v799, %v801
      %v803 = vrot.slane %v673, 1
      %v804 = vrot.slane %v674, 1
      %v805 = vsel %vm732, %v803, %v804
      %v806 = vrot.slane %v675, 1
      %v807 = vsel %vm732, %v804, %v806
      %v808 = vrot.slane %v676, 1
      %v809 = vrot.slane %v677, 1
      %v810 = vsel %vm732, %v808, %v809
      %v811 = vrot.slane %v678, 1
      %v812 = vsel %vm732, %v809, %v811
      %v813 = vsel %vm326, %v735, 0
      %v815 = vsel %vm326, %v737, 0
      %v817 = vsel %vm326, %v740, 0
      %v819 = vsel %vm326, %v742, 0
      %v821 = vsel %vm326, %v745, 0
      %v823 = vsel %vm326, %v747, 0
      %v825 = vsel %vm326, %v750, 0
      %v827 = vsel %vm326, %v752, 0
      %v829 = vsel %vm326, %v755, 0
      %v831 = vsel %vm326, %v757, 0
      %v833 = vsel %vm326, %v760, 0
      %v835 = vsel %vm326, %v762, 0
      %v837 = vsel %vm326, %v765, 0
      %v839 = vsel %vm326, %v767, 0
      %v841 = vsel %vm326, %v770, 0
      %v843 = vsel %vm326, %v772, 0
      %v845 = vsel %vm326, %v775, 0
      %v847 = vsel %vm326, %v777, 0
      %v849 = vsel %vm326, %v780, 0
      %v851 = vsel %vm326, %v782, 0
      %v853 = vsel %vm326, %v785, 0
      %v855 = vsel %vm326, %v787, 0
      %v857 = vsel %vm326, %v790, 0
      %v859 = vsel %vm326, %v792, 0
      %v861 = vsel %vm326, %v795, 0
      %v863 = vsel %vm326, %v797, 0
      %v865 = vsel %vm326, %v800, 0
      %v867 = vsel %vm326, %v802, 0
      %v869 = vsel %vm326, %v805, 0
      %v871 = vsel %vm326, %v807, 0
      %v873 = vsel %vm326, %v810, 0
      %v875 = vsel %vm326, %v812, 0
      %877 = vmatpush.msra.mxu0 0.0
      %878 = vmatpush.msra.mxu0 0.0
      %879 = vmatpush.msra.mxu0 0.0
      %880 = vmatpush.msra.mxu0 0.0
      %881 = vmatpush.msra.mxu0 0.0
      %882 = vmatpush.msra.mxu0 0.0
      %883 = vmatpush.msra.mxu0 0.0
      %884 = vmatpush.msra.mxu0 0.0
      %885 = vmatpush.msra.mxu0 0.0
      %886 = vmatpush.msra.mxu0 0.0
      %887 = vmatpush.msra.mxu0 0.0
      %888 = vmatpush.msra.mxu0 0.0
      %889 = vmatpush.msra.mxu0 0.0
      %890 = vmatpush.msra.mxu0 0.0
      %891 = vmatpush.msra.mxu0 %v683
      %892 = vmatpush.msra.mxu0 %v682
      %893 = vmatmul.f32.gmra.mxu0 %v813
      %v894 = vpop.f32.mrf.mxu0
      %v895 = vadd.f32 0.0, %v894
      %896 = vmatmul.f32.gmra.mxu0 %v815
      %v897 = vpop.f32.mrf.mxu0
      %v898 = vadd.f32 0.0, %v897
      %899 = vmatmul.f32.gmra.mxu0 %v817
      %v900 = vpop.f32.mrf.mxu0
      %v901 = vadd.f32 0.0, %v900
      %902 = vmatmul.f32.gmra.mxu0 %v819
      %v903 = vpop.f32.mrf.mxu0
      %v904 = vadd.f32 0.0, %v903
      %905 = vmatmul.f32.gmra.mxu0 %v821
      %v906 = vpop.f32.mrf.mxu0
      %v907 = vadd.f32 0.0, %v906
      %908 = vmatmul.f32.gmra.mxu0 %v823
      %v909 = vpop.f32.mrf.mxu0
      %v910 = vadd.f32 0.0, %v909
      %911 = vmatmul.f32.gmra.mxu0 %v825
      %v912 = vpop.f32.mrf.mxu0
      %v913 = vadd.f32 0.0, %v912
      %914 = vmatmul.f32.gmra.mxu0 %v827
      %v915 = vpop.f32.mrf.mxu0
      %v916 = vadd.f32 0.0, %v915
      %917 = vmatmul.f32.gmra.mxu0 %v829
      %v918 = vpop.f32.mrf.mxu0
      %v919 = vadd.f32 0.0, %v918
      %920 = vmatmul.f32.gmra.mxu0 %v831
      %v921 = vpop.f32.mrf.mxu0
      %v922 = vadd.f32 0.0, %v921
      %923 = vmatmul.f32.gmra.mxu0 %v833
      %v924 = vpop.f32.mrf.mxu0
      %v925 = vadd.f32 0.0, %v924
      %926 = vmatmul.f32.gmra.mxu0 %v835
      %v927 = vpop.f32.mrf.mxu0
      %v928 = vadd.f32 0.0, %v927
      %929 = vmatmul.f32.gmra.mxu0 %v837
      %v930 = vpop.f32.mrf.mxu0
      %v931 = vadd.f32 0.0, %v930
      %932 = vmatmul.f32.gmra.mxu0 %v839
      %v933 = vpop.f32.mrf.mxu0
      %v934 = vadd.f32 0.0, %v933
      %935 = vmatmul.f32.gmra.mxu0 %v841
      %v936 = vpop.f32.mrf.mxu0
      %v937 = vadd.f32 0.0, %v936
      %938 = vmatmul.f32.gmra.mxu0 %v843
      %v939 = vpop.f32.mrf.mxu0
      %v940 = vadd.f32 0.0, %v939
      %941 = vmatmul.f32.gmra.mxu0 %v845
      %v942 = vpop.f32.mrf.mxu0
      %v943 = vadd.f32 0.0, %v942
      %944 = vmatmul.f32.gmra.mxu0 %v847
      %v945 = vpop.f32.mrf.mxu0
      %v946 = vadd.f32 0.0, %v945
      %947 = vmatmul.f32.gmra.mxu0 %v849
      %v948 = vpop.f32.mrf.mxu0
      %v949 = vadd.f32 0.0, %v948
      %950 = vmatmul.f32.gmra.mxu0 %v851
      %v951 = vpop.f32.mrf.mxu0
      %v952 = vadd.f32 0.0, %v951
      %953 = vmatmul.f32.gmra.mxu0 %v853
      %v954 = vpop.f32.mrf.mxu0
      %v955 = vadd.f32 0.0, %v954
      %956 = vmatmul.f32.gmra.mxu0 %v855
      %v957 = vpop.f32.mrf.mxu0
      %v958 = vadd.f32 0.0, %v957
      %959 = vmatmul.f32.gmra.mxu0 %v857
      %v960 = vpop.f32.mrf.mxu0
      %v961 = vadd.f32 0.0, %v960
      %962 = vmatmul.f32.gmra.mxu0 %v859
      %v963 = vpop.f32.mrf.mxu0
      %v964 = vadd.f32 0.0, %v963
      %965 = vmatmul.f32.gmra.mxu0 %v861
      %v966 = vpop.f32.mrf.mxu0
      %v967 = vadd.f32 0.0, %v966
      %968 = vmatmul.f32.gmra.mxu0 %v863
      %v969 = vpop.f32.mrf.mxu0
      %v970 = vadd.f32 0.0, %v969
      %971 = vmatmul.f32.gmra.mxu0 %v865
      %v972 = vpop.f32.mrf.mxu0
      %v973 = vadd.f32 0.0, %v972
      %974 = vmatmul.f32.gmra.mxu0 %v867
      %v975 = vpop.f32.mrf.mxu0
      %v976 = vadd.f32 0.0, %v975
      %977 = vmatmul.f32.gmra.mxu0 %v869
      %v978 = vpop.f32.mrf.mxu0
      %v979 = vadd.f32 0.0, %v978
      %980 = vmatmul.f32.gmra.mxu0 %v871
      %v981 = vpop.f32.mrf.mxu0
      %v982 = vadd.f32 0.0, %v981
      %983 = vmatmul.f32.gmra.mxu0 %v873
      %v984 = vpop.f32.mrf.mxu0
      %v985 = vadd.f32 0.0, %v984
      %986 = vmatmul.f32.gmra.mxu0 %v875
      %v987 = vpop.f32.mrf.mxu0
      %v988 = vadd.f32 0.0, %v987
      %989 = vdwg.mxu0
      %v990 = vsel %vm326, %v631, 0
      %v992 = vsel %vm326, %v632, 0
      %v994 = vsel %vm326, %v634, 0
      %v996 = vsel %vm326, %v635, 0
      %v998 = vsel %vm326, %v637, 0
      %v1000 = vsel %vm326, %v638, 0
      %v1002 = vsel %vm326, %v640, 0
      %v1004 = vsel %vm326, %v641, 0
      %v1006 = vsel %vm326, %v643, 0
      %v1008 = vsel %vm326, %v644, 0
      %v1010 = vsel %vm326, %v646, 0
      %v1012 = vsel %vm326, %v647, 0
      %v1014 = vsel %vm326, %v649, 0
      %v1016 = vsel %vm326, %v650, 0
      %v1018 = vsel %vm326, %v652, 0
      %v1020 = vsel %vm326, %v653, 0
      %v1022 = vsel %vm326, %v655, 0
      %v1024 = vsel %vm326, %v656, 0
      %v1026 = vsel %vm326, %v658, 0
      %v1028 = vsel %vm326, %v659, 0
      %v1030 = vsel %vm326, %v661, 0
      %v1032 = vsel %vm326, %v662, 0
      %v1034 = vsel %vm326, %v664, 0
      %v1036 = vsel %vm326, %v665, 0
      %v1038 = vsel %vm326, %v667, 0
      %v1040 = vsel %vm326, %v668, 0
      %v1042 = vsel %vm326, %v670, 0
      %v1044 = vsel %vm326, %v671, 0
      %v1046 = vsel %vm326, %v673, 0
      %v1048 = vsel %vm326, %v674, 0
      %v1050 = vsel %vm326, %v676, 0
      %v1052 = vsel %vm326, %v677, 0
      %1054 = vmatpush.msra.mxu0 0.0
      %1055 = vmatpush.msra.mxu0 0.0
      %1056 = vmatpush.msra.mxu0 0.0
      %1057 = vmatpush.msra.mxu0 0.0
      %1058 = vmatpush.msra.mxu0 0.0
      %1059 = vmatpush.msra.mxu0 0.0
      %1060 = vmatpush.msra.mxu0 0.0
      %1061 = vmatpush.msra.mxu0 0.0
      %1062 = vmatpush.msra.mxu0 0.0
      %1063 = vmatpush.msra.mxu0 0.0
      %1064 = vmatpush.msra.mxu0 0.0
      %1065 = vmatpush.msra.mxu0 0.0
      %1066 = vmatpush.msra.mxu0 0.0
      %1067 = vmatpush.msra.mxu0 0.0
      %1068 = vmatpush.msra.mxu0 %v680
      %1069 = vmatpush.msra.mxu0 %v679
      %1070 = vmatmul.f32.gmra.mxu0 %v990
      %v1071 = vpop.f32.mrf.mxu0
      %v1072 = vadd.f32 %v895, %v1071
      %1073 = vmatmul.f32.gmra.mxu0 %v992
      %v1074 = vpop.f32.mrf.mxu0
      %v1075 = vadd.f32 %v898, %v1074
      %1076 = vmatmul.f32.gmra.mxu0 %v994
      %v1077 = vpop.f32.mrf.mxu0
      %v1078 = vadd.f32 %v901, %v1077
      %1079 = vmatmul.f32.gmra.mxu0 %v996
      %v1080 = vpop.f32.mrf.mxu0
      %v1081 = vadd.f32 %v904, %v1080
      %1082 = vmatmul.f32.gmra.mxu0 %v998
      %v1083 = vpop.f32.mrf.mxu0
      %v1084 = vadd.f32 %v907, %v1083
      %1085 = vmatmul.f32.gmra.mxu0 %v1000
      %v1086 = vpop.f32.mrf.mxu0
      %v1087 = vadd.f32 %v910, %v1086
      %1088 = vmatmul.f32.gmra.mxu0 %v1002
      %v1089 = vpop.f32.mrf.mxu0
      %v1090 = vadd.f32 %v913, %v1089
      %1091 = vmatmul.f32.gmra.mxu0 %v1004
      %v1092 = vpop.f32.mrf.mxu0
      %v1093 = vadd.f32 %v916, %v1092
      %1094 = vmatmul.f32.gmra.mxu0 %v1006
      %v1095 = vpop.f32.mrf.mxu0
      %v1096 = vadd.f32 %v919, %v1095
      %1097 = vmatmul.f32.gmra.mxu0 %v1008
      %v1098 = vpop.f32.mrf.mxu0
      %v1099 = vadd.f32 %v922, %v1098
      %1100 = vmatmul.f32.gmra.mxu0 %v1010
      %v1101 = vpop.f32.mrf.mxu0
      %v1102 = vadd.f32 %v925, %v1101
      %1103 = vmatmul.f32.gmra.mxu0 %v1012
      %v1104 = vpop.f32.mrf.mxu0
      %v1105 = vadd.f32 %v928, %v1104
      %1106 = vmatmul.f32.gmra.mxu0 %v1014
      %v1107 = vpop.f32.mrf.mxu0
      %v1108 = vadd.f32 %v931, %v1107
      %1109 = vmatmul.f32.gmra.mxu0 %v1016
      %v1110 = vpop.f32.mrf.mxu0
      %v1111 = vadd.f32 %v934, %v1110
      %1112 = vmatmul.f32.gmra.mxu0 %v1018
      %v1113 = vpop.f32.mrf.mxu0
      %v1114 = vadd.f32 %v937, %v1113
      %1115 = vmatmul.f32.gmra.mxu0 %v1020
      %v1116 = vpop.f32.mrf.mxu0
      %v1117 = vadd.f32 %v940, %v1116
      %1118 = vmatmul.f32.gmra.mxu0 %v1022
      %v1119 = vpop.f32.mrf.mxu0
      %v1120 = vadd.f32 %v943, %v1119
      %1121 = vmatmul.f32.gmra.mxu0 %v1024
      %v1122 = vpop.f32.mrf.mxu0
      %v1123 = vadd.f32 %v946, %v1122
      %1124 = vmatmul.f32.gmra.mxu0 %v1026
      %v1125 = vpop.f32.mrf.mxu0
      %v1126 = vadd.f32 %v949, %v1125
      %1127 = vmatmul.f32.gmra.mxu0 %v1028
      %v1128 = vpop.f32.mrf.mxu0
      %v1129 = vadd.f32 %v952, %v1128
      %1130 = vmatmul.f32.gmra.mxu0 %v1030
      %v1131 = vpop.f32.mrf.mxu0
      %v1132 = vadd.f32 %v955, %v1131
      %1133 = vmatmul.f32.gmra.mxu0 %v1032
      %v1134 = vpop.f32.mrf.mxu0
      %v1135 = vadd.f32 %v958, %v1134
      %1136 = vmatmul.f32.gmra.mxu0 %v1034
      %v1137 = vpop.f32.mrf.mxu0
      %v1138 = vadd.f32 %v961, %v1137
      %1139 = vmatmul.f32.gmra.mxu0 %v1036
      %v1140 = vpop.f32.mrf.mxu0
      %v1141 = vadd.f32 %v964, %v1140
      %1142 = vmatmul.f32.gmra.mxu0 %v1038
      %v1143 = vpop.f32.mrf.mxu0
      %v1144 = vadd.f32 %v967, %v1143
      %1145 = vmatmul.f32.gmra.mxu0 %v1040
      %v1146 = vpop.f32.mrf.mxu0
      %v1147 = vadd.f32 %v970, %v1146
      %1148 = vmatmul.f32.gmra.mxu0 %v1042
      %v1149 = vpop.f32.mrf.mxu0
      %v1150 = vadd.f32 %v973, %v1149
      %1151 = vmatmul.f32.gmra.mxu0 %v1044
      %v1152 = vpop.f32.mrf.mxu0
      %v1153 = vadd.f32 %v976, %v1152
      %1154 = vmatmul.f32.gmra.mxu0 %v1046
      %v1155 = vpop.f32.mrf.mxu0
      %v1156 = vadd.f32 %v979, %v1155
      %1157 = vmatmul.f32.gmra.mxu0 %v1048
      %v1158 = vpop.f32.mrf.mxu0
      %v1159 = vadd.f32 %v982, %v1158
      %1160 = vmatmul.f32.gmra.mxu0 %v1050
      %v1161 = vpop.f32.mrf.mxu0
      %v1162 = vadd.f32 %v985, %v1161
      %1163 = vmatmul.f32.gmra.mxu0 %v1052
      %v1164 = vpop.f32.mrf.mxu0
      %v1165 = vadd.f32 %v988, %v1164
      %1166 = vdwg.mxu0
      %s1167 = scalar_lea.vmem %s2, 32
      %v1168 = vld [vmem:[%s1167] sm:$0xff]
      %v1169 = vld [vmem:[%s1167 + $0x8] sm:$0xff]
      %vm1170 = vcmask 1045504
      %v1171 = vrot.slane %v631, 2
      %v1172 = vrot.slane %v632, 2
      %v1173 = vsel %vm1170, %v1171, %v1172
      %v1174 = vrot.slane %v633, 2
      %v1175 = vsel %vm1170, %v1172, %v1174
      %v1176 = vrot.slane %v634, 2
      %v1177 = vrot.slane %v635, 2
      %v1178 = vsel %vm1170, %v1176, %v1177
      %v1179 = vrot.slane %v636, 2
      %v1180 = vsel %vm1170, %v1177, %v1179
      %v1181 = vrot.slane %v637, 2
      %v1182 = vrot.slane %v638, 2
      %v1183 = vsel %vm1170, %v1181, %v1182
      %v1184 = vrot.slane %v639, 2
      %v1185 = vsel %vm1170, %v1182, %v1184
      %v1186 = vrot.slane %v640, 2
      %v1187 = vrot.slane %v641, 2
      %v1188 = vsel %vm1170, %v1186, %v1187
      %v1189 = vrot.slane %v642, 2
      %v1190 = vsel %vm1170, %v1187, %v1189
      %v1191 = vrot.slane %v643, 2
      %v1192 = vrot.slane %v644, 2
      %v1193 = vsel %vm1170, %v1191, %v1192
      %v1194 = vrot.slane %v645, 2
      %v1195 = vsel %vm1170, %v1192, %v1194
      %v1196 = vrot.slane %v646, 2
      %v1197 = vrot.slane %v647, 2
      %v1198 = vsel %vm1170, %v1196, %v1197
      %v1199 = vrot.slane %v648, 2
      %v1200 = vsel %vm1170, %v1197, %v1199
      %v1201 = vrot.slane %v649, 2
      %v1202 = vrot.slane %v650, 2
      %v1203 = vsel %vm1170, %v1201, %v1202
      %v1204 = vrot.slane %v651, 2
      %v1205 = vsel %vm1170, %v1202, %v1204
      %v1206 = vrot.slane %v652, 2
      %v1207 = vrot.slane %v653, 2
      %v1208 = vsel %vm1170, %v1206, %v1207
      %v1209 = vrot.slane %v654, 2
      %v1210 = vsel %vm1170, %v1207, %v1209
      %v1211 = vrot.slane %v655, 2
      %v1212 = vrot.slane %v656, 2
      %v1213 = vsel %vm1170, %v1211, %v1212
      %v1214 = vrot.slane %v657, 2
      %v1215 = vsel %vm1170, %v1212, %v1214
      %v1216 = vrot.slane %v658, 2
      %v1217 = vrot.slane %v659, 2
      %v1218 = vsel %vm1170, %v1216, %v1217
      %v1219 = vrot.slane %v660, 2
      %v1220 = vsel %vm1170, %v1217, %v1219
      %v1221 = vrot.slane %v661, 2
      %v1222 = vrot.slane %v662, 2
      %v1223 = vsel %vm1170, %v1221, %v1222
      %v1224 = vrot.slane %v663, 2
      %v1225 = vsel %vm1170, %v1222, %v1224
      %v1226 = vrot.slane %v664, 2
      %v1227 = vrot.slane %v665, 2
      %v1228 = vsel %vm1170, %v1226, %v1227
      %v1229 = vrot.slane %v666, 2
      %v1230 = vsel %vm1170, %v1227, %v1229
      %v1231 = vrot.slane %v667, 2
      %v1232 = vrot.slane %v668, 2
      %v1233 = vsel %vm1170, %v1231, %v1232
      %v1234 = vrot.slane %v669, 2
      %v1235 = vsel %vm1170, %v1232, %v1234
      %v1236 = vrot.slane %v670, 2
      %v1237 = vrot.slane %v671, 2
      %v1238 = vsel %vm1170, %v1236, %v1237
      %v1239 = vrot.slane %v672, 2
      %v1240 = vsel %vm1170, %v1237, %v1239
      %v1241 = vrot.slane %v673, 2
      %v1242 = vrot.slane %v674, 2
      %v1243 = vsel %vm1170, %v1241, %v1242
      %v1244 = vrot.slane %v675, 2
      %v1245 = vsel %vm1170, %v1242, %v1244
      %v1246 = vrot.slane %v676, 2
      %v1247 = vrot.slane %v677, 2
      %v1248 = vsel %vm1170, %v1246, %v1247
      %v1249 = vrot.slane %v678, 2
      %v1250 = vsel %vm1170, %v1247, %v1249
      %v1251 = vsel %vm326, %v1173, 0
      %v1253 = vsel %vm326, %v1175, 0
      %v1255 = vsel %vm326, %v1178, 0
      %v1257 = vsel %vm326, %v1180, 0
      %v1259 = vsel %vm326, %v1183, 0
      %v1261 = vsel %vm326, %v1185, 0
      %v1263 = vsel %vm326, %v1188, 0
      %v1265 = vsel %vm326, %v1190, 0
      %v1267 = vsel %vm326, %v1193, 0
      %v1269 = vsel %vm326, %v1195, 0
      %v1271 = vsel %vm326, %v1198, 0
      %v1273 = vsel %vm326, %v1200, 0
      %v1275 = vsel %vm326, %v1203, 0
      %v1277 = vsel %vm326, %v1205, 0
      %v1279 = vsel %vm326, %v1208, 0
      %v1281 = vsel %vm326, %v1210, 0
      %v1283 = vsel %vm326, %v1213, 0
      %v1285 = vsel %vm326, %v1215, 0
      %v1287 = vsel %vm326, %v1218, 0
      %v1289 = vsel %vm326, %v1220, 0
      %v1291 = vsel %vm326, %v1223, 0
      %v1293 = vsel %vm326, %v1225, 0
      %v1295 = vsel %vm326, %v1228, 0
      %v1297 = vsel %vm326, %v1230, 0
      %v1299 = vsel %vm326, %v1233, 0
      %v1301 = vsel %vm326, %v1235, 0
      %v1303 = vsel %vm326, %v1238, 0
      %v1305 = vsel %vm326, %v1240, 0
      %v1307 = vsel %vm326, %v1243, 0
      %v1309 = vsel %vm326, %v1245, 0
      %v1311 = vsel %vm326, %v1248, 0
      %v1313 = vsel %vm326, %v1250, 0
      %1315 = vmatpush.msra.mxu0 0.0
      %1316 = vmatpush.msra.mxu0 0.0
      %1317 = vmatpush.msra.mxu0 0.0
      %1318 = vmatpush.msra.mxu0 0.0
      %1319 = vmatpush.msra.mxu0 0.0
      %1320 = vmatpush.msra.mxu0 0.0
      %1321 = vmatpush.msra.mxu0 0.0
      %1322 = vmatpush.msra.mxu0 0.0
      %1323 = vmatpush.msra.mxu0 0.0
      %1324 = vmatpush.msra.mxu0 0.0
      %1325 = vmatpush.msra.mxu0 0.0
      %1326 = vmatpush.msra.mxu0 0.0
      %1327 = vmatpush.msra.mxu0 0.0
      %1328 = vmatpush.msra.mxu0 0.0
      %1329 = vmatpush.msra.mxu0 %v1169
      %1330 = vmatpush.msra.mxu0 %v1168
      %1331 = vmatmul.f32.gmra.mxu0 %v1251
      %v1332 = vpop.f32.mrf.mxu0
      %v1333 = vadd.f32 0.0, %v1332
      %1334 = vmatmul.f32.gmra.mxu0 %v1253
      %v1335 = vpop.f32.mrf.mxu0
      %v1336 = vadd.f32 0.0, %v1335
      %1337 = vmatmul.f32.gmra.mxu0 %v1255
      %v1338 = vpop.f32.mrf.mxu0
      %v1339 = vadd.f32 0.0, %v1338
      %1340 = vmatmul.f32.gmra.mxu0 %v1257
      %v1341 = vpop.f32.mrf.mxu0
      %v1342 = vadd.f32 0.0, %v1341
      %1343 = vmatmul.f32.gmra.mxu0 %v1259
      %v1344 = vpop.f32.mrf.mxu0
      %v1345 = vadd.f32 0.0, %v1344
      %1346 = vmatmul.f32.gmra.mxu0 %v1261
      %v1347 = vpop.f32.mrf.mxu0
      %v1348 = vadd.f32 0.0, %v1347
      %1349 = vmatmul.f32.gmra.mxu0 %v1263
      %v1350 = vpop.f32.mrf.mxu0
      %v1351 = vadd.f32 0.0, %v1350
      %1352 = vmatmul.f32.gmra.mxu0 %v1265
      %v1353 = vpop.f32.mrf.mxu0
      %v1354 = vadd.f32 0.0, %v1353
      %1355 = vmatmul.f32.gmra.mxu0 %v1267
      %v1356 = vpop.f32.mrf.mxu0
      %v1357 = vadd.f32 0.0, %v1356
      %1358 = vmatmul.f32.gmra.mxu0 %v1269
      %v1359 = vpop.f32.mrf.mxu0
      %v1360 = vadd.f32 0.0, %v1359
      %1361 = vmatmul.f32.gmra.mxu0 %v1271
      %v1362 = vpop.f32.mrf.mxu0
      %v1363 = vadd.f32 0.0, %v1362
      %1364 = vmatmul.f32.gmra.mxu0 %v1273
      %v1365 = vpop.f32.mrf.mxu0
      %v1366 = vadd.f32 0.0, %v1365
      %1367 = vmatmul.f32.gmra.mxu0 %v1275
      %v1368 = vpop.f32.mrf.mxu0
      %v1369 = vadd.f32 0.0, %v1368
      %1370 = vmatmul.f32.gmra.mxu0 %v1277
      %v1371 = vpop.f32.mrf.mxu0
      %v1372 = vadd.f32 0.0, %v1371
      %1373 = vmatmul.f32.gmra.mxu0 %v1279
      %v1374 = vpop.f32.mrf.mxu0
      %v1375 = vadd.f32 0.0, %v1374
      %1376 = vmatmul.f32.gmra.mxu0 %v1281
      %v1377 = vpop.f32.mrf.mxu0
      %v1378 = vadd.f32 0.0, %v1377
      %1379 = vmatmul.f32.gmra.mxu0 %v1283
      %v1380 = vpop.f32.mrf.mxu0
      %v1381 = vadd.f32 0.0, %v1380
      %1382 = vmatmul.f32.gmra.mxu0 %v1285
      %v1383 = vpop.f32.mrf.mxu0
      %v1384 = vadd.f32 0.0, %v1383
      %1385 = vmatmul.f32.gmra.mxu0 %v1287
      %v1386 = vpop.f32.mrf.mxu0
      %v1387 = vadd.f32 0.0, %v1386
      %1388 = vmatmul.f32.gmra.mxu0 %v1289
      %v1389 = vpop.f32.mrf.mxu0
      %v1390 = vadd.f32 0.0, %v1389
      %1391 = vmatmul.f32.gmra.mxu0 %v1291
      %v1392 = vpop.f32.mrf.mxu0
      %v1393 = vadd.f32 0.0, %v1392
      %1394 = vmatmul.f32.gmra.mxu0 %v1293
      %v1395 = vpop.f32.mrf.mxu0
      %v1396 = vadd.f32 0.0, %v1395
      %1397 = vmatmul.f32.gmra.mxu0 %v1295
      %v1398 = vpop.f32.mrf.mxu0
      %v1399 = vadd.f32 0.0, %v1398
      %1400 = vmatmul.f32.gmra.mxu0 %v1297
      %v1401 = vpop.f32.mrf.mxu0
      %v1402 = vadd.f32 0.0, %v1401
      %1403 = vmatmul.f32.gmra.mxu0 %v1299
      %v1404 = vpop.f32.mrf.mxu0
      %v1405 = vadd.f32 0.0, %v1404
      %1406 = vmatmul.f32.gmra.mxu0 %v1301
      %v1407 = vpop.f32.mrf.mxu0
      %v1408 = vadd.f32 0.0, %v1407
      %1409 = vmatmul.f32.gmra.mxu0 %v1303
      %v1410 = vpop.f32.mrf.mxu0
      %v1411 = vadd.f32 0.0, %v1410
      %1412 = vmatmul.f32.gmra.mxu0 %v1305
      %v1413 = vpop.f32.mrf.mxu0
      %v1414 = vadd.f32 0.0, %v1413
      %1415 = vmatmul.f32.gmra.mxu0 %v1307
      %v1416 = vpop.f32.mrf.mxu0
      %v1417 = vadd.f32 0.0, %v1416
      %1418 = vmatmul.f32.gmra.mxu0 %v1309
      %v1419 = vpop.f32.mrf.mxu0
      %v1420 = vadd.f32 0.0, %v1419
      %1421 = vmatmul.f32.gmra.mxu0 %v1311
      %v1422 = vpop.f32.mrf.mxu0
      %v1423 = vadd.f32 0.0, %v1422
      %1424 = vmatmul.f32.gmra.mxu0 %v1313
      %v1425 = vpop.f32.mrf.mxu0
      %v1426 = vadd.f32 0.0, %v1425
      %1427 = vdwg.mxu0
      %v1428 = vadd.f32 %v1072, %v1333
      %v1429 = vadd.f32 %v1075, %v1336
      %v1430 = vadd.f32 %v1078, %v1339
      %v1431 = vadd.f32 %v1081, %v1342
      %v1432 = vadd.f32 %v1084, %v1345
      %v1433 = vadd.f32 %v1087, %v1348
      %v1434 = vadd.f32 %v1090, %v1351
      %v1435 = vadd.f32 %v1093, %v1354
      %v1436 = vadd.f32 %v1096, %v1357
      %v1437 = vadd.f32 %v1099, %v1360
      %v1438 = vadd.f32 %v1102, %v1363
      %v1439 = vadd.f32 %v1105, %v1366
      %v1440 = vadd.f32 %v1108, %v1369
      %v1441 = vadd.f32 %v1111, %v1372
      %v1442 = vadd.f32 %v1114, %v1375
      %v1443 = vadd.f32 %v1117, %v1378
      %v1444 = vadd.f32 %v1120, %v1381
      %v1445 = vadd.f32 %v1123, %v1384
      %v1446 = vadd.f32 %v1126, %v1387
      %v1447 = vadd.f32 %v1129, %v1390
      %v1448 = vadd.f32 %v1132, %v1393
      %v1449 = vadd.f32 %v1135, %v1396
      %v1450 = vadd.f32 %v1138, %v1399
      %v1451 = vadd.f32 %v1141, %v1402
      %v1452 = vadd.f32 %v1144, %v1405
      %v1453 = vadd.f32 %v1147, %v1408
      %v1454 = vadd.f32 %v1150, %v1411
      %v1455 = vadd.f32 %v1153, %v1414
      %v1456 = vadd.f32 %v1156, %v1417
      %v1457 = vadd.f32 %v1159, %v1420
      %v1458 = vadd.f32 %v1162, %v1423
      %v1459 = vadd.f32 %v1165, %v1426
      %v1460 = vld [vmem:[%s404] sm:$0xff]
      %v1461 = vld [vmem:[%s404 + $0x8] sm:$0xff]
      %v1462 = vld [vmem:[%s404 + $0x10] sm:$0x3]
      %v1463 = vld [vmem:[%s404 + $0x18] sm:$0xff]
      %v1464 = vld [vmem:[%s404 + $0x20] sm:$0xff]
      %v1465 = vld [vmem:[%s404 + $0x28] sm:$0x3]
      %v1466 = vld [vmem:[%s404 + $0x30] sm:$0xff]
      %v1467 = vld [vmem:[%s404 + $0x38] sm:$0xff]
      %v1468 = vld [vmem:[%s404 + $0x40] sm:$0x3]
      %v1469 = vld [vmem:[%s404 + $0x48] sm:$0xff]
      %v1470 = vld [vmem:[%s404 + $0x50] sm:$0xff]
      %v1471 = vld [vmem:[%s404 + $0x58] sm:$0x3]
      %v1472 = vld [vmem:[%s404 + $0x60] sm:$0xff]
      %v1473 = vld [vmem:[%s404 + $0x68] sm:$0xff]
      %v1474 = vld [vmem:[%s404 + $0x70] sm:$0x3]
      %v1475 = vld [vmem:[%s404 + $0x78] sm:$0xff]
      %v1476 = vld [vmem:[%s404 + $0x80] sm:$0xff]
      %v1477 = vld [vmem:[%s404 + $0x88] sm:$0x3]
      %v1478 = vld [vmem:[%s404 + $0x90] sm:$0xff]
      %v1479 = vld [vmem:[%s404 + $0x98] sm:$0xff]
      %v1480 = vld [vmem:[%s404 + $0xa0] sm:$0x3]
      %v1481 = vld [vmem:[%s404 + $0xa8] sm:$0xff]
      %v1482 = vld [vmem:[%s404 + $0xb0] sm:$0xff]
      %v1483 = vld [vmem:[%s404 + $0xb8] sm:$0x3]
      %v1484 = vld [vmem:[%s404 + $0xc0] sm:$0xff]
      %v1485 = vld [vmem:[%s404 + $0xc8] sm:$0xff]
      %v1486 = vld [vmem:[%s404 + $0xd0] sm:$0x3]
      %v1487 = vld [vmem:[%s404 + $0xd8] sm:$0xff]
      %v1488 = vld [vmem:[%s404 + $0xe0] sm:$0xff]
      %v1489 = vld [vmem:[%s404 + $0xe8] sm:$0x3]
      %v1490 = vld [vmem:[%s404 + $0xf0] sm:$0xff]
      %v1491 = vld [vmem:[%s404 + $0xf8] sm:$0xff]
      %v1492 = vld [vmem:[%s404 + $0x100] sm:$0x3]
      %v1493 = vld [vmem:[%s404 + $0x108] sm:$0xff]
      %v1494 = vld [vmem:[%s404 + $0x110] sm:$0xff]
      %v1495 = vld [vmem:[%s404 + $0x118] sm:$0x3]
      %v1496 = vld [vmem:[%s404 + $0x120] sm:$0xff]
      %v1497 = vld [vmem:[%s404 + $0x128] sm:$0xff]
      %v1498 = vld [vmem:[%s404 + $0x130] sm:$0x3]
      %v1499 = vld [vmem:[%s404 + $0x138] sm:$0xff]
      %v1500 = vld [vmem:[%s404 + $0x140] sm:$0xff]
      %v1501 = vld [vmem:[%s404 + $0x148] sm:$0x3]
      %v1502 = vld [vmem:[%s404 + $0x150] sm:$0xff]
      %v1503 = vld [vmem:[%s404 + $0x158] sm:$0xff]
      %v1504 = vld [vmem:[%s404 + $0x160] sm:$0x3]
      %v1505 = vld [vmem:[%s404 + $0x168] sm:$0xff]
      %v1506 = vld [vmem:[%s404 + $0x170] sm:$0xff]
      %v1507 = vld [vmem:[%s404 + $0x178] sm:$0x3]
      %s1508 = scalar_lea.vmem %s2, 48
      %v1509 = vld [vmem:[%s1508] sm:$0xff]
      %v1510 = vld [vmem:[%s1508 + $0x8] sm:$0xff]
      %v1512 = vsel %vm326, %v1460, 0
      %v1515 = vsel %vm326, %v1461, 0
      %v1518 = vsel %vm326, %v1463, 0
      %v1521 = vsel %vm326, %v1464, 0
      %v1524 = vsel %vm326, %v1466, 0
      %v1527 = vsel %vm326, %v1467, 0
      %v1530 = vsel %vm326, %v1469, 0
      %v1533 = vsel %vm326, %v1470, 0
      %v1536 = vsel %vm326, %v1472, 0
      %v1539 = vsel %vm326, %v1473, 0
      %v1542 = vsel %vm326, %v1475, 0
      %v1545 = vsel %vm326, %v1476, 0
      %v1548 = vsel %vm326, %v1478, 0
      %v1551 = vsel %vm326, %v1479, 0
      %v1554 = vsel %vm326, %v1481, 0
      %v1557 = vsel %vm326, %v1482, 0
      %v1560 = vsel %vm326, %v1484, 0
      %v1563 = vsel %vm326, %v1485, 0
      %v1566 = vsel %vm326, %v1487, 0
      %v1569 = vsel %vm326, %v1488, 0
      %v1572 = vsel %vm326, %v1490, 0
      %v1575 = vsel %vm326, %v1491, 0
      %v1578 = vsel %vm326, %v1493, 0
      %v1581 = vsel %vm326, %v1494, 0
      %v1584 = vsel %vm326, %v1496, 0
      %v1587 = vsel %vm326, %v1497, 0
      %v1590 = vsel %vm326, %v1499, 0
      %v1593 = vsel %vm326, %v1500, 0
      %v1596 = vsel %vm326, %v1502, 0
      %v1599 = vsel %vm326, %v1503, 0
      %v1602 = vsel %vm326, %v1505, 0
      %v1605 = vsel %vm326, %v1506, 0
      %1607 = vmatpush.msra.mxu0 0.0
      %1608 = vmatpush.msra.mxu0 0.0
      %1609 = vmatpush.msra.mxu0 0.0
      %1610 = vmatpush.msra.mxu0 0.0
      %1611 = vmatpush.msra.mxu0 0.0
      %1612 = vmatpush.msra.mxu0 0.0
      %1613 = vmatpush.msra.mxu0 0.0
      %1614 = vmatpush.msra.mxu0 0.0
      %1615 = vmatpush.msra.mxu0 0.0
      %1616 = vmatpush.msra.mxu0 0.0
      %1617 = vmatpush.msra.mxu0 0.0
      %1618 = vmatpush.msra.mxu0 0.0
      %1619 = vmatpush.msra.mxu0 0.0
      %1620 = vmatpush.msra.mxu0 0.0
      %1621 = vmatpush.msra.mxu0 %v1510
      %1622 = vmatpush.msra.mxu0 %v1509
      %1623 = vmatmul.f32.gmra.mxu0 %v1512
      %v1624 = vpop.f32.mrf.mxu0
      %v1625 = vadd.f32 0.0, %v1624
      %1626 = vmatmul.f32.gmra.mxu0 %v1515
      %v1627 = vpop.f32.mrf.mxu0
      %v1628 = vadd.f32 0.0, %v1627
      %1629 = vmatmul.f32.gmra.mxu0 %v1518
      %v1630 = vpop.f32.mrf.mxu0
      %v1631 = vadd.f32 0.0, %v1630
      %1632 = vmatmul.f32.gmra.mxu0 %v1521
      %v1633 = vpop.f32.mrf.mxu0
      %v1634 = vadd.f32 0.0, %v1633
      %1635 = vmatmul.f32.gmra.mxu0 %v1524
      %v1636 = vpop.f32.mrf.mxu0
      %v1637 = vadd.f32 0.0, %v1636
      %1638 = vmatmul.f32.gmra.mxu0 %v1527
      %v1639 = vpop.f32.mrf.mxu0
      %v1640 = vadd.f32 0.0, %v1639
      %1641 = vmatmul.f32.gmra.mxu0 %v1530
      %v1642 = vpop.f32.mrf.mxu0
      %v1643 = vadd.f32 0.0, %v1642
      %1644 = vmatmul.f32.gmra.mxu0 %v1533
      %v1645 = vpop.f32.mrf.mxu0
      %v1646 = vadd.f32 0.0, %v1645
      %1647 = vmatmul.f32.gmra.mxu0 %v1536
      %v1648 = vpop.f32.mrf.mxu0
      %v1649 = vadd.f32 0.0, %v1648
      %1650 = vmatmul.f32.gmra.mxu0 %v1539
      %v1651 = vpop.f32.mrf.mxu0
      %v1652 = vadd.f32 0.0, %v1651
      %1653 = vmatmul.f32.gmra.mxu0 %v1542
      %v1654 = vpop.f32.mrf.mxu0
      %v1655 = vadd.f32 0.0, %v1654
      %1656 = vmatmul.f32.gmra.mxu0 %v1545
      %v1657 = vpop.f32.mrf.mxu0
      %v1658 = vadd.f32 0.0, %v1657
      %1659 = vmatmul.f32.gmra.mxu0 %v1548
      %v1660 = vpop.f32.mrf.mxu0
      %v1661 = vadd.f32 0.0, %v1660
      %1662 = vmatmul.f32.gmra.mxu0 %v1551
      %v1663 = vpop.f32.mrf.mxu0
      %v1664 = vadd.f32 0.0, %v1663
      %1665 = vmatmul.f32.gmra.mxu0 %v1554
      %v1666 = vpop.f32.mrf.mxu0
      %v1667 = vadd.f32 0.0, %v1666
      %1668 = vmatmul.f32.gmra.mxu0 %v1557
      %v1669 = vpop.f32.mrf.mxu0
      %v1670 = vadd.f32 0.0, %v1669
      %1671 = vmatmul.f32.gmra.mxu0 %v1560
      %v1672 = vpop.f32.mrf.mxu0
      %v1673 = vadd.f32 0.0, %v1672
      %1674 = vmatmul.f32.gmra.mxu0 %v1563
      %v1675 = vpop.f32.mrf.mxu0
      %v1676 = vadd.f32 0.0, %v1675
      %1677 = vmatmul.f32.gmra.mxu0 %v1566
      %v1678 = vpop.f32.mrf.mxu0
      %v1679 = vadd.f32 0.0, %v1678
      %1680 = vmatmul.f32.gmra.mxu0 %v1569
      %v1681 = vpop.f32.mrf.mxu0
      %v1682 = vadd.f32 0.0, %v1681
      %1683 = vmatmul.f32.gmra.mxu0 %v1572
      %v1684 = vpop.f32.mrf.mxu0
      %v1685 = vadd.f32 0.0, %v1684
      %1686 = vmatmul.f32.gmra.mxu0 %v1575
      %v1687 = vpop.f32.mrf.mxu0
      %v1688 = vadd.f32 0.0, %v1687
      %1689 = vmatmul.f32.gmra.mxu0 %v1578
      %v1690 = vpop.f32.mrf.mxu0
      %v1691 = vadd.f32 0.0, %v1690
      %1692 = vmatmul.f32.gmra.mxu0 %v1581
      %v1693 = vpop.f32.mrf.mxu0
      %v1694 = vadd.f32 0.0, %v1693
      %1695 = vmatmul.f32.gmra.mxu0 %v1584
      %v1696 = vpop.f32.mrf.mxu0
      %v1697 = vadd.f32 0.0, %v1696
      %1698 = vmatmul.f32.gmra.mxu0 %v1587
      %v1699 = vpop.f32.mrf.mxu0
      %v1700 = vadd.f32 0.0, %v1699
      %1701 = vmatmul.f32.gmra.mxu0 %v1590
      %v1702 = vpop.f32.mrf.mxu0
      %v1703 = vadd.f32 0.0, %v1702
      %1704 = vmatmul.f32.gmra.mxu0 %v1593
      %v1705 = vpop.f32.mrf.mxu0
      %v1706 = vadd.f32 0.0, %v1705
      %1707 = vmatmul.f32.gmra.mxu0 %v1596
      %v1708 = vpop.f32.mrf.mxu0
      %v1709 = vadd.f32 0.0, %v1708
      %1710 = vmatmul.f32.gmra.mxu0 %v1599
      %v1711 = vpop.f32.mrf.mxu0
      %v1712 = vadd.f32 0.0, %v1711
      %1713 = vmatmul.f32.gmra.mxu0 %v1602
      %v1714 = vpop.f32.mrf.mxu0
      %v1715 = vadd.f32 0.0, %v1714
      %1716 = vmatmul.f32.gmra.mxu0 %v1605
      %v1717 = vpop.f32.mrf.mxu0
      %v1718 = vadd.f32 0.0, %v1717
      %1719 = vdwg.mxu0
      %v1720 = vadd.f32 %v1428, %v1625
      %v1721 = vadd.f32 %v1429, %v1628
      %v1722 = vadd.f32 %v1430, %v1631
      %v1723 = vadd.f32 %v1431, %v1634
      %v1724 = vadd.f32 %v1432, %v1637
      %v1725 = vadd.f32 %v1433, %v1640
      %v1726 = vadd.f32 %v1434, %v1643
      %v1727 = vadd.f32 %v1435, %v1646
      %v1728 = vadd.f32 %v1436, %v1649
      %v1729 = vadd.f32 %v1437, %v1652
      %v1730 = vadd.f32 %v1438, %v1655
      %v1731 = vadd.f32 %v1439, %v1658
      %v1732 = vadd.f32 %v1440, %v1661
      %v1733 = vadd.f32 %v1441, %v1664
      %v1734 = vadd.f32 %v1442, %v1667
      %v1735 = vadd.f32 %v1443, %v1670
      %v1736 = vadd.f32 %v1444, %v1673
      %v1737 = vadd.f32 %v1445, %v1676
      %v1738 = vadd.f32 %v1446, %v1679
      %v1739 = vadd.f32 %v1447, %v1682
      %v1740 = vadd.f32 %v1448, %v1685
      %v1741 = vadd.f32 %v1449, %v1688
      %v1742 = vadd.f32 %v1450, %v1691
      %v1743 = vadd.f32 %v1451, %v1694
      %v1744 = vadd.f32 %v1452, %v1697
      %v1745 = vadd.f32 %v1453, %v1700
      %v1746 = vadd.f32 %v1454, %v1703
      %v1747 = vadd.f32 %v1455, %v1706
      %v1748 = vadd.f32 %v1456, %v1709
      %v1749 = vadd.f32 %v1457, %v1712
      %v1750 = vadd.f32 %v1458, %v1715
      %v1751 = vadd.f32 %v1459, %v1718
      %s1752 = scalar_lea.vmem %s2, 64
      %v1753 = vld [vmem:[%s1752] sm:$0xff]
      %v1754 = vld [vmem:[%s1752 + $0x8] sm:$0xff]
      %v1771 = vrot.slane %v1460, 1
      %v1772 = vrot.slane %v1461, 1
      %v1773 = vsel %vm732, %v1771, %v1772
      %v1774 = vrot.slane %v1462, 1
      %v1775 = vsel %vm732, %v1772, %v1774
      %v1776 = vrot.slane %v1463, 1
      %v1777 = vrot.slane %v1464, 1
      %v1778 = vsel %vm732, %v1776, %v1777
      %v1779 = vrot.slane %v1465, 1
      %v1780 = vsel %vm732, %v1777, %v1779
      %v1781 = vrot.slane %v1466, 1
      %v1782 = vrot.slane %v1467, 1
      %v1783 = vsel %vm732, %v1781, %v1782
      %v1784 = vrot.slane %v1468, 1
      %v1785 = vsel %vm732, %v1782, %v1784
      %v1786 = vrot.slane %v1469, 1
      %v1787 = vrot.slane %v1470, 1
      %v1788 = vsel %vm732, %v1786, %v1787
      %v1789 = vrot.slane %v1471, 1
      %v1790 = vsel %vm732, %v1787, %v1789
      %v1791 = vrot.slane %v1472, 1
      %v1792 = vrot.slane %v1473, 1
      %v1793 = vsel %vm732, %v1791, %v1792
      %v1794 = vrot.slane %v1474, 1
      %v1795 = vsel %vm732, %v1792, %v1794
      %v1796 = vrot.slane %v1475, 1
      %v1797 = vrot.slane %v1476, 1
      %v1798 = vsel %vm732, %v1796, %v1797
      %v1799 = vrot.slane %v1477, 1
      %v1800 = vsel %vm732, %v1797, %v1799
      %v1801 = vrot.slane %v1478, 1
      %v1802 = vrot.slane %v1479, 1
      %v1803 = vsel %vm732, %v1801, %v1802
      %v1804 = vrot.slane %v1480, 1
      %v1805 = vsel %vm732, %v1802, %v1804
      %v1806 = vrot.slane %v1481, 1
      %v1807 = vrot.slane %v1482, 1
      %v1808 = vsel %vm732, %v1806, %v1807
      %v1809 = vrot.slane %v1483, 1
      %v1810 = vsel %vm732, %v1807, %v1809
      %v1811 = vrot.slane %v1484, 1
      %v1812 = vrot.slane %v1485, 1
      %v1813 = vsel %vm732, %v1811, %v1812
      %v1814 = vrot.slane %v1486, 1
      %v1815 = vsel %vm732, %v1812, %v1814
      %v1816 = vrot.slane %v1487, 1
      %v1817 = vrot.slane %v1488, 1
      %v1818 = vsel %vm732, %v1816, %v1817
      %v1819 = vrot.slane %v1489, 1
      %v1820 = vsel %vm732, %v1817, %v1819
      %v1821 = vrot.slane %v1490, 1
      %v1822 = vrot.slane %v1491, 1
      %v1823 = vsel %vm732, %v1821, %v1822
      %v1824 = vrot.slane %v1492, 1
      %v1825 = vsel %vm732, %v1822, %v1824
      %v1826 = vrot.slane %v1493, 1
      %v1827 = vrot.slane %v1494, 1
      %v1828 = vsel %vm732, %v1826, %v1827
      %v1829 = vrot.slane %v1495, 1
      %v1830 = vsel %vm732, %v1827, %v1829
      %v1831 = vrot.slane %v1496, 1
      %v1832 = vrot.slane %v1497, 1
      %v1833 = vsel %vm732, %v1831, %v1832
      %v1834 = vrot.slane %v1498, 1
      %v1835 = vsel %vm732, %v1832, %v1834
      %v1836 = vrot.slane %v1499, 1
      %v1837 = vrot.slane %v1500, 1
      %v1838 = vsel %vm732, %v1836, %v1837
      %v1839 = vrot.slane %v1501, 1
      %v1840 = vsel %vm732, %v1837, %v1839
      %v1841 = vrot.slane %v1502, 1
      %v1842 = vrot.slane %v1503, 1
      %v1843 = vsel %vm732, %v1841, %v1842
      %v1844 = vrot.slane %v1504, 1
      %v1845 = vsel %vm732, %v1842, %v1844
      %v1846 = vrot.slane %v1505, 1
      %v1847 = vrot.slane %v1506, 1
      %v1848 = vsel %vm732, %v1846, %v1847
      %v1849 = vrot.slane %v1507, 1
      %v1850 = vsel %vm732, %v1847, %v1849
      %v1851 = vsel %vm326, %v1773, 0
      %v1853 = vsel %vm326, %v1775, 0
      %v1855 = vsel %vm326, %v1778, 0
      %v1857 = vsel %vm326, %v1780, 0
      %v1859 = vsel %vm326, %v1783, 0
      %v1861 = vsel %vm326, %v1785, 0
      %v1863 = vsel %vm326, %v1788, 0
      %v1865 = vsel %vm326, %v1790, 0
      %v1867 = vsel %vm326, %v1793, 0
      %v1869 = vsel %vm326, %v1795, 0
      %v1871 = vsel %vm326, %v1798, 0
      %v1873 = vsel %vm326, %v1800, 0
      %v1875 = vsel %vm326, %v1803, 0
      %v1877 = vsel %vm326, %v1805, 0
      %v1879 = vsel %vm326, %v1808, 0
      %v1881 = vsel %vm326, %v1810, 0
      %v1883 = vsel %vm326, %v1813, 0
      %v1885 = vsel %vm326, %v1815, 0
      %v1887 = vsel %vm326, %v1818, 0
      %v1889 = vsel %vm326, %v1820, 0
      %v1891 = vsel %vm326, %v1823, 0
      %v1893 = vsel %vm326, %v1825, 0
      %v1895 = vsel %vm326, %v1828, 0
      %v1897 = vsel %vm326, %v1830, 0
      %v1899 = vsel %vm326, %v1833, 0
      %v1901 = vsel %vm326, %v1835, 0
      %v1903 = vsel %vm326, %v1838, 0
      %v1905 = vsel %vm326, %v1840, 0
      %v1907 = vsel %vm326, %v1843, 0
      %v1909 = vsel %vm326, %v1845, 0
      %v1911 = vsel %vm326, %v1848, 0
      %v1913 = vsel %vm326, %v1850, 0
      %1915 = vmatpush.msra.mxu0 0.0
      %1916 = vmatpush.msra.mxu0 0.0
      %1917 = vmatpush.msra.mxu0 0.0
      %1918 = vmatpush.msra.mxu0 0.0
      %1919 = vmatpush.msra.mxu0 0.0
      %1920 = vmatpush.msra.mxu0 0.0
      %1921 = vmatpush.msra.mxu0 0.0
      %1922 = vmatpush.msra.mxu0 0.0
      %1923 = vmatpush.msra.mxu0 0.0
      %1924 = vmatpush.msra.mxu0 0.0
      %1925 = vmatpush.msra.mxu0 0.0
      %1926 = vmatpush.msra.mxu0 0.0
      %1927 = vmatpush.msra.mxu0 0.0
      %1928 = vmatpush.msra.mxu0 0.0
      %1929 = vmatpush.msra.mxu0 %v1754
      %1930 = vmatpush.msra.mxu0 %v1753
      %1931 = vmatmul.f32.gmra.mxu0 %v1851
      %v1932 = vpop.f32.mrf.mxu0
      %v1933 = vadd.f32 0.0, %v1932
      %1934 = vmatmul.f32.gmra.mxu0 %v1853
      %v1935 = vpop.f32.mrf.mxu0
      %v1936 = vadd.f32 0.0, %v1935
      %1937 = vmatmul.f32.gmra.mxu0 %v1855
      %v1938 = vpop.f32.mrf.mxu0
      %v1939 = vadd.f32 0.0, %v1938
      %1940 = vmatmul.f32.gmra.mxu0 %v1857
      %v1941 = vpop.f32.mrf.mxu0
      %v1942 = vadd.f32 0.0, %v1941
      %1943 = vmatmul.f32.gmra.mxu0 %v1859
      %v1944 = vpop.f32.mrf.mxu0
      %v1945 = vadd.f32 0.0, %v1944
      %1946 = vmatmul.f32.gmra.mxu0 %v1861
      %v1947 = vpop.f32.mrf.mxu0
      %v1948 = vadd.f32 0.0, %v1947
      %1949 = vmatmul.f32.gmra.mxu0 %v1863
      %v1950 = vpop.f32.mrf.mxu0
      %v1951 = vadd.f32 0.0, %v1950
      %1952 = vmatmul.f32.gmra.mxu0 %v1865
      %v1953 = vpop.f32.mrf.mxu0
      %v1954 = vadd.f32 0.0, %v1953
      %1955 = vmatmul.f32.gmra.mxu0 %v1867
      %v1956 = vpop.f32.mrf.mxu0
      %v1957 = vadd.f32 0.0, %v1956
      %1958 = vmatmul.f32.gmra.mxu0 %v1869
      %v1959 = vpop.f32.mrf.mxu0
      %v1960 = vadd.f32 0.0, %v1959
      %1961 = vmatmul.f32.gmra.mxu0 %v1871
      %v1962 = vpop.f32.mrf.mxu0
      %v1963 = vadd.f32 0.0, %v1962
      %1964 = vmatmul.f32.gmra.mxu0 %v1873
      %v1965 = vpop.f32.mrf.mxu0
      %v1966 = vadd.f32 0.0, %v1965
      %1967 = vmatmul.f32.gmra.mxu0 %v1875
      %v1968 = vpop.f32.mrf.mxu0
      %v1969 = vadd.f32 0.0, %v1968
      %1970 = vmatmul.f32.gmra.mxu0 %v1877
      %v1971 = vpop.f32.mrf.mxu0
      %v1972 = vadd.f32 0.0, %v1971
      %1973 = vmatmul.f32.gmra.mxu0 %v1879
      %v1974 = vpop.f32.mrf.mxu0
      %v1975 = vadd.f32 0.0, %v1974
      %1976 = vmatmul.f32.gmra.mxu0 %v1881
      %v1977 = vpop.f32.mrf.mxu0
      %v1978 = vadd.f32 0.0, %v1977
      %1979 = vmatmul.f32.gmra.mxu0 %v1883
      %v1980 = vpop.f32.mrf.mxu0
      %v1981 = vadd.f32 0.0, %v1980
      %1982 = vmatmul.f32.gmra.mxu0 %v1885
      %v1983 = vpop.f32.mrf.mxu0
      %v1984 = vadd.f32 0.0, %v1983
      %1985 = vmatmul.f32.gmra.mxu0 %v1887
      %v1986 = vpop.f32.mrf.mxu0
      %v1987 = vadd.f32 0.0, %v1986
      %1988 = vmatmul.f32.gmra.mxu0 %v1889
      %v1989 = vpop.f32.mrf.mxu0
      %v1990 = vadd.f32 0.0, %v1989
      %1991 = vmatmul.f32.gmra.mxu0 %v1891
      %v1992 = vpop.f32.mrf.mxu0
      %v1993 = vadd.f32 0.0, %v1992
      %1994 = vmatmul.f32.gmra.mxu0 %v1893
      %v1995 = vpop.f32.mrf.mxu0
      %v1996 = vadd.f32 0.0, %v1995
      %1997 = vmatmul.f32.gmra.mxu0 %v1895
      %v1998 = vpop.f32.mrf.mxu0
      %v1999 = vadd.f32 0.0, %v1998
      %2000 = vmatmul.f32.gmra.mxu0 %v1897
      %v2001 = vpop.f32.mrf.mxu0
      %v2002 = vadd.f32 0.0, %v2001
      %2003 = vmatmul.f32.gmra.mxu0 %v1899
      %v2004 = vpop.f32.mrf.mxu0
      %v2005 = vadd.f32 0.0, %v2004
      %2006 = vmatmul.f32.gmra.mxu0 %v1901
      %v2007 = vpop.f32.mrf.mxu0
      %v2008 = vadd.f32 0.0, %v2007
      %2009 = vmatmul.f32.gmra.mxu0 %v1903
      %v2010 = vpop.f32.mrf.mxu0
      %v2011 = vadd.f32 0.0, %v2010
      %2012 = vmatmul.f32.gmra.mxu0 %v1905
      %v2013 = vpop.f32.mrf.mxu0
      %v2014 = vadd.f32 0.0, %v2013
      %2015 = vmatmul.f32.gmra.mxu0 %v1907
      %v2016 = vpop.f32.mrf.mxu0
      %v2017 = vadd.f32 0.0, %v2016
      %2018 = vmatmul.f32.gmra.mxu0 %v1909
      %v2019 = vpop.f32.mrf.mxu0
      %v2020 = vadd.f32 0.0, %v2019
      %2021 = vmatmul.f32.gmra.mxu0 %v1911
      %v2022 = vpop.f32.mrf.mxu0
      %v2023 = vadd.f32 0.0, %v2022
      %2024 = vmatmul.f32.gmra.mxu0 %v1913
      %v2025 = vpop.f32.mrf.mxu0
      %v2026 = vadd.f32 0.0, %v2025
      %2027 = vdwg.mxu0
      %v2028 = vadd.f32 %v1720, %v1933
      %v2029 = vadd.f32 %v1721, %v1936
      %v2030 = vadd.f32 %v1722, %v1939
      %v2031 = vadd.f32 %v1723, %v1942
      %v2032 = vadd.f32 %v1724, %v1945
      %v2033 = vadd.f32 %v1725, %v1948
      %v2034 = vadd.f32 %v1726, %v1951
      %v2035 = vadd.f32 %v1727, %v1954
      %v2036 = vadd.f32 %v1728, %v1957
      %v2037 = vadd.f32 %v1729, %v1960
      %v2038 = vadd.f32 %v1730, %v1963
      %v2039 = vadd.f32 %v1731, %v1966
      %v2040 = vadd.f32 %v1732, %v1969
      %v2041 = vadd.f32 %v1733, %v1972
      %v2042 = vadd.f32 %v1734, %v1975
      %v2043 = vadd.f32 %v1735, %v1978
      %v2044 = vadd.f32 %v1736, %v1981
      %v2045 = vadd.f32 %v1737, %v1984
      %v2046 = vadd.f32 %v1738, %v1987
      %v2047 = vadd.f32 %v1739, %v1990
      %v2048 = vadd.f32 %v1740, %v1993
      %v2049 = vadd.f32 %v1741, %v1996
      %v2050 = vadd.f32 %v1742, %v1999
      %v2051 = vadd.f32 %v1743, %v2002
      %v2052 = vadd.f32 %v1744, %v2005
      %v2053 = vadd.f32 %v1745, %v2008
      %v2054 = vadd.f32 %v1746, %v2011
      %v2055 = vadd.f32 %v1747, %v2014
      %v2056 = vadd.f32 %v1748, %v2017
      %v2057 = vadd.f32 %v1749, %v2020
      %v2058 = vadd.f32 %v1750, %v2023
      %v2059 = vadd.f32 %v1751, %v2026
      %s2060 = scalar_lea.vmem %s2, 80
      %v2061 = vld [vmem:[%s2060] sm:$0xff]
      %v2062 = vld [vmem:[%s2060 + $0x8] sm:$0xff]
      %v2063 = vrot.slane %v1460, 2
      %v2064 = vrot.slane %v1461, 2
      %v2065 = vsel %vm1170, %v2063, %v2064
      %v2066 = vrot.slane %v1462, 2
      %v2067 = vsel %vm1170, %v2064, %v2066
      %v2068 = vrot.slane %v1463, 2
      %v2069 = vrot.slane %v1464, 2
      %v2070 = vsel %vm1170, %v2068, %v2069
      %v2071 = vrot.slane %v1465, 2
      %v2072 = vsel %vm1170, %v2069, %v2071
      %v2073 = vrot.slane %v1466, 2
      %v2074 = vrot.slane %v1467, 2
      %v2075 = vsel %vm1170, %v2073, %v2074
      %v2076 = vrot.slane %v1468, 2
      %v2077 = vsel %vm1170, %v2074, %v2076
      %v2078 = vrot.slane %v1469, 2
      %v2079 = vrot.slane %v1470, 2
      %v2080 = vsel %vm1170, %v2078, %v2079
      %v2081 = vrot.slane %v1471, 2
      %v2082 = vsel %vm1170, %v2079, %v2081
      %v2083 = vrot.slane %v1472, 2
      %v2084 = vrot.slane %v1473, 2
      %v2085 = vsel %vm1170, %v2083, %v2084
      %v2086 = vrot.slane %v1474, 2
      %v2087 = vsel %vm1170, %v2084, %v2086
      %v2088 = vrot.slane %v1475, 2
      %v2089 = vrot.slane %v1476, 2
      %v2090 = vsel %vm1170, %v2088, %v2089
      %v2091 = vrot.slane %v1477, 2
      %v2092 = vsel %vm1170, %v2089, %v2091
      %v2093 = vrot.slane %v1478, 2
      %v2094 = vrot.slane %v1479, 2
      %v2095 = vsel %vm1170, %v2093, %v2094
      %v2096 = vrot.slane %v1480, 2
      %v2097 = vsel %vm1170, %v2094, %v2096
      %v2098 = vrot.slane %v1481, 2
      %v2099 = vrot.slane %v1482, 2
      %v2100 = vsel %vm1170, %v2098, %v2099
      %v2101 = vrot.slane %v1483, 2
      %v2102 = vsel %vm1170, %v2099, %v2101
      %v2103 = vrot.slane %v1484, 2
      %v2104 = vrot.slane %v1485, 2
      %v2105 = vsel %vm1170, %v2103, %v2104
      %v2106 = vrot.slane %v1486, 2
      %v2107 = vsel %vm1170, %v2104, %v2106
      %v2108 = vrot.slane %v1487, 2
      %v2109 = vrot.slane %v1488, 2
      %v2110 = vsel %vm1170, %v2108, %v2109
      %v2111 = vrot.slane %v1489, 2
      %v2112 = vsel %vm1170, %v2109, %v2111
      %v2113 = vrot.slane %v1490, 2
      %v2114 = vrot.slane %v1491, 2
      %v2115 = vsel %vm1170, %v2113, %v2114
      %v2116 = vrot.slane %v1492, 2
      %v2117 = vsel %vm1170, %v2114, %v2116
      %v2118 = vrot.slane %v1493, 2
      %v2119 = vrot.slane %v1494, 2
      %v2120 = vsel %vm1170, %v2118, %v2119
      %v2121 = vrot.slane %v1495, 2
      %v2122 = vsel %vm1170, %v2119, %v2121
      %v2123 = vrot.slane %v1496, 2
      %v2124 = vrot.slane %v1497, 2
      %v2125 = vsel %vm1170, %v2123, %v2124
      %v2126 = vrot.slane %v1498, 2
      %v2127 = vsel %vm1170, %v2124, %v2126
      %v2128 = vrot.slane %v1499, 2
      %v2129 = vrot.slane %v1500, 2
      %v2130 = vsel %vm1170, %v2128, %v2129
      %v2131 = vrot.slane %v1501, 2
      %v2132 = vsel %vm1170, %v2129, %v2131
      %v2133 = vrot.slane %v1502, 2
      %v2134 = vrot.slane %v1503, 2
      %v2135 = vsel %vm1170, %v2133, %v2134
      %v2136 = vrot.slane %v1504, 2
      %v2137 = vsel %vm1170, %v2134, %v2136
      %v2138 = vrot.slane %v1505, 2
      %v2139 = vrot.slane %v1506, 2
      %v2140 = vsel %vm1170, %v2138, %v2139
      %v2141 = vrot.slane %v1507, 2
      %v2142 = vsel %vm1170, %v2139, %v2141
      %v2143 = vsel %vm326, %v2065, 0
      %v2145 = vsel %vm326, %v2067, 0
      %v2147 = vsel %vm326, %v2070, 0
      %v2149 = vsel %vm326, %v2072, 0
      %v2151 = vsel %vm326, %v2075, 0
      %v2153 = vsel %vm326, %v2077, 0
      %v2155 = vsel %vm326, %v2080, 0
      %v2157 = vsel %vm326, %v2082, 0
      %v2159 = vsel %vm326, %v2085, 0
      %v2161 = vsel %vm326, %v2087, 0
      %v2163 = vsel %vm326, %v2090, 0
      %v2165 = vsel %vm326, %v2092, 0
      %v2167 = vsel %vm326, %v2095, 0
      %v2169 = vsel %vm326, %v2097, 0
      %v2171 = vsel %vm326, %v2100, 0
      %v2173 = vsel %vm326, %v2102, 0
      %v2175 = vsel %vm326, %v2105, 0
      %v2177 = vsel %vm326, %v2107, 0
      %v2179 = vsel %vm326, %v2110, 0
      %v2181 = vsel %vm326, %v2112, 0
      %v2183 = vsel %vm326, %v2115, 0
      %v2185 = vsel %vm326, %v2117, 0
      %v2187 = vsel %vm326, %v2120, 0
      %v2189 = vsel %vm326, %v2122, 0
      %v2191 = vsel %vm326, %v2125, 0
      %v2193 = vsel %vm326, %v2127, 0
      %v2195 = vsel %vm326, %v2130, 0
      %v2197 = vsel %vm326, %v2132, 0
      %v2199 = vsel %vm326, %v2135, 0
      %v2201 = vsel %vm326, %v2137, 0
      %v2203 = vsel %vm326, %v2140, 0
      %v2205 = vsel %vm326, %v2142, 0
      %2207 = vmatpush.msra.mxu0 0.0
      %2208 = vmatpush.msra.mxu0 0.0
      %2209 = vmatpush.msra.mxu0 0.0
      %2210 = vmatpush.msra.mxu0 0.0
      %2211 = vmatpush.msra.mxu0 0.0
      %2212 = vmatpush.msra.mxu0 0.0
      %2213 = vmatpush.msra.mxu0 0.0
      %2214 = vmatpush.msra.mxu0 0.0
      %2215 = vmatpush.msra.mxu0 0.0
      %2216 = vmatpush.msra.mxu0 0.0
      %2217 = vmatpush.msra.mxu0 0.0
      %2218 = vmatpush.msra.mxu0 0.0
      %2219 = vmatpush.msra.mxu0 0.0
      %2220 = vmatpush.msra.mxu0 0.0
      %2221 = vmatpush.msra.mxu0 %v2062
      %2222 = vmatpush.msra.mxu0 %v2061
      %2223 = vmatmul.f32.gmra.mxu0 %v2143
      %v2224 = vpop.f32.mrf.mxu0
      %v2225 = vadd.f32 0.0, %v2224
      %2226 = vmatmul.f32.gmra.mxu0 %v2145
      %v2227 = vpop.f32.mrf.mxu0
      %v2228 = vadd.f32 0.0, %v2227
      %2229 = vmatmul.f32.gmra.mxu0 %v2147
      %v2230 = vpop.f32.mrf.mxu0
      %v2231 = vadd.f32 0.0, %v2230
      %2232 = vmatmul.f32.gmra.mxu0 %v2149
      %v2233 = vpop.f32.mrf.mxu0
      %v2234 = vadd.f32 0.0, %v2233
      %2235 = vmatmul.f32.gmra.mxu0 %v2151
      %v2236 = vpop.f32.mrf.mxu0
      %v2237 = vadd.f32 0.0, %v2236
      %2238 = vmatmul.f32.gmra.mxu0 %v2153
      %v2239 = vpop.f32.mrf.mxu0
      %v2240 = vadd.f32 0.0, %v2239
      %2241 = vmatmul.f32.gmra.mxu0 %v2155
      %v2242 = vpop.f32.mrf.mxu0
      %v2243 = vadd.f32 0.0, %v2242
      %2244 = vmatmul.f32.gmra.mxu0 %v2157
      %v2245 = vpop.f32.mrf.mxu0
      %v2246 = vadd.f32 0.0, %v2245
      %2247 = vmatmul.f32.gmra.mxu0 %v2159
      %v2248 = vpop.f32.mrf.mxu0
      %v2249 = vadd.f32 0.0, %v2248
      %2250 = vmatmul.f32.gmra.mxu0 %v2161
      %v2251 = vpop.f32.mrf.mxu0
      %v2252 = vadd.f32 0.0, %v2251
      %2253 = vmatmul.f32.gmra.mxu0 %v2163
      %v2254 = vpop.f32.mrf.mxu0
      %v2255 = vadd.f32 0.0, %v2254
      %2256 = vmatmul.f32.gmra.mxu0 %v2165
      %v2257 = vpop.f32.mrf.mxu0
      %v2258 = vadd.f32 0.0, %v2257
      %2259 = vmatmul.f32.gmra.mxu0 %v2167
      %v2260 = vpop.f32.mrf.mxu0
      %v2261 = vadd.f32 0.0, %v2260
      %2262 = vmatmul.f32.gmra.mxu0 %v2169
      %v2263 = vpop.f32.mrf.mxu0
      %v2264 = vadd.f32 0.0, %v2263
      %2265 = vmatmul.f32.gmra.mxu0 %v2171
      %v2266 = vpop.f32.mrf.mxu0
      %v2267 = vadd.f32 0.0, %v2266
      %2268 = vmatmul.f32.gmra.mxu0 %v2173
      %v2269 = vpop.f32.mrf.mxu0
      %v2270 = vadd.f32 0.0, %v2269
      %2271 = vmatmul.f32.gmra.mxu0 %v2175
      %v2272 = vpop.f32.mrf.mxu0
      %v2273 = vadd.f32 0.0, %v2272
      %2274 = vmatmul.f32.gmra.mxu0 %v2177
      %v2275 = vpop.f32.mrf.mxu0
      %v2276 = vadd.f32 0.0, %v2275
      %2277 = vmatmul.f32.gmra.mxu0 %v2179
      %v2278 = vpop.f32.mrf.mxu0
      %v2279 = vadd.f32 0.0, %v2278
      %2280 = vmatmul.f32.gmra.mxu0 %v2181
      %v2281 = vpop.f32.mrf.mxu0
      %v2282 = vadd.f32 0.0, %v2281
      %2283 = vmatmul.f32.gmra.mxu0 %v2183
      %v2284 = vpop.f32.mrf.mxu0
      %v2285 = vadd.f32 0.0, %v2284
      %2286 = vmatmul.f32.gmra.mxu0 %v2185
      %v2287 = vpop.f32.mrf.mxu0
      %v2288 = vadd.f32 0.0, %v2287
      %2289 = vmatmul.f32.gmra.mxu0 %v2187
      %v2290 = vpop.f32.mrf.mxu0
      %v2291 = vadd.f32 0.0, %v2290
      %2292 = vmatmul.f32.gmra.mxu0 %v2189
      %v2293 = vpop.f32.mrf.mxu0
      %v2294 = vadd.f32 0.0, %v2293
      %2295 = vmatmul.f32.gmra.mxu0 %v2191
      %v2296 = vpop.f32.mrf.mxu0
      %v2297 = vadd.f32 0.0, %v2296
      %2298 = vmatmul.f32.gmra.mxu0 %v2193
      %v2299 = vpop.f32.mrf.mxu0
      %v2300 = vadd.f32 0.0, %v2299
      %2301 = vmatmul.f32.gmra.mxu0 %v2195
      %v2302 = vpop.f32.mrf.mxu0
      %v2303 = vadd.f32 0.0, %v2302
      %2304 = vmatmul.f32.gmra.mxu0 %v2197
      %v2305 = vpop.f32.mrf.mxu0
      %v2306 = vadd.f32 0.0, %v2305
      %2307 = vmatmul.f32.gmra.mxu0 %v2199
      %v2308 = vpop.f32.mrf.mxu0
      %v2309 = vadd.f32 0.0, %v2308
      %2310 = vmatmul.f32.gmra.mxu0 %v2201
      %v2311 = vpop.f32.mrf.mxu0
      %v2312 = vadd.f32 0.0, %v2311
      %2313 = vmatmul.f32.gmra.mxu0 %v2203
      %v2314 = vpop.f32.mrf.mxu0
      %v2315 = vadd.f32 0.0, %v2314
      %2316 = vmatmul.f32.gmra.mxu0 %v2205
      %v2317 = vpop.f32.mrf.mxu0
      %v2318 = vadd.f32 0.0, %v2317
      %2319 = vdwg.mxu0
      %v2320 = vadd.f32 %v2028, %v2225
      %v2321 = vadd.f32 %v2029, %v2228
      %v2322 = vadd.f32 %v2030, %v2231
      %v2323 = vadd.f32 %v2031, %v2234
      %v2324 = vadd.f32 %v2032, %v2237
      %v2325 = vadd.f32 %v2033, %v2240
      %v2326 = vadd.f32 %v2034, %v2243
      %v2327 = vadd.f32 %v2035, %v2246
      %v2328 = vadd.f32 %v2036, %v2249
      %v2329 = vadd.f32 %v2037, %v2252
      %v2330 = vadd.f32 %v2038, %v2255
      %v2331 = vadd.f32 %v2039, %v2258
      %v2332 = vadd.f32 %v2040, %v2261
      %v2333 = vadd.f32 %v2041, %v2264
      %v2334 = vadd.f32 %v2042, %v2267
      %v2335 = vadd.f32 %v2043, %v2270
      %v2336 = vadd.f32 %v2044, %v2273
      %v2337 = vadd.f32 %v2045, %v2276
      %v2338 = vadd.f32 %v2046, %v2279
      %v2339 = vadd.f32 %v2047, %v2282
      %v2340 = vadd.f32 %v2048, %v2285
      %v2341 = vadd.f32 %v2049, %v2288
      %v2342 = vadd.f32 %v2050, %v2291
      %v2343 = vadd.f32 %v2051, %v2294
      %v2344 = vadd.f32 %v2052, %v2297
      %v2345 = vadd.f32 %v2053, %v2300
      %v2346 = vadd.f32 %v2054, %v2303
      %v2347 = vadd.f32 %v2055, %v2306
      %v2348 = vadd.f32 %v2056, %v2309
      %v2349 = vadd.f32 %v2057, %v2312
      %v2350 = vadd.f32 %v2058, %v2315
      %v2351 = vadd.f32 %v2059, %v2318
      %s2352 = scalar_lea.vmem [#allocation2], 48
      %v2353 = vld [vmem:[%s2352] sm:$0xff]
      %v2354 = vld [vmem:[%s2352 + $0x8] sm:$0xff]
      %v2355 = vld [vmem:[%s2352 + $0x10] sm:$0x3]
      %v2356 = vld [vmem:[%s2352 + $0x18] sm:$0xff]
      %v2357 = vld [vmem:[%s2352 + $0x20] sm:$0xff]
      %v2358 = vld [vmem:[%s2352 + $0x28] sm:$0x3]
      %v2359 = vld [vmem:[%s2352 + $0x30] sm:$0xff]
      %v2360 = vld [vmem:[%s2352 + $0x38] sm:$0xff]
      %v2361 = vld [vmem:[%s2352 + $0x40] sm:$0x3]
      %v2362 = vld [vmem:[%s2352 + $0x48] sm:$0xff]
      %v2363 = vld [vmem:[%s2352 + $0x50] sm:$0xff]
      %v2364 = vld [vmem:[%s2352 + $0x58] sm:$0x3]
      %v2365 = vld [vmem:[%s2352 + $0x60] sm:$0xff]
      %v2366 = vld [vmem:[%s2352 + $0x68] sm:$0xff]
      %v2367 = vld [vmem:[%s2352 + $0x70] sm:$0x3]
      %v2368 = vld [vmem:[%s2352 + $0x78] sm:$0xff]
      %v2369 = vld [vmem:[%s2352 + $0x80] sm:$0xff]
      %v2370 = vld [vmem:[%s2352 + $0x88] sm:$0x3]
      %v2371 = vld [vmem:[%s2352 + $0x90] sm:$0xff]
      %v2372 = vld [vmem:[%s2352 + $0x98] sm:$0xff]
      %v2373 = vld [vmem:[%s2352 + $0xa0] sm:$0x3]
      %v2374 = vld [vmem:[%s2352 + $0xa8] sm:$0xff]
      %v2375 = vld [vmem:[%s2352 + $0xb0] sm:$0xff]
      %v2376 = vld [vmem:[%s2352 + $0xb8] sm:$0x3]
      %v2377 = vld [vmem:[%s2352 + $0xc0] sm:$0xff]
      %v2378 = vld [vmem:[%s2352 + $0xc8] sm:$0xff]
      %v2379 = vld [vmem:[%s2352 + $0xd0] sm:$0x3]
      %v2380 = vld [vmem:[%s2352 + $0xd8] sm:$0xff]
      %v2381 = vld [vmem:[%s2352 + $0xe0] sm:$0xff]
      %v2382 = vld [vmem:[%s2352 + $0xe8] sm:$0x3]
      %v2383 = vld [vmem:[%s2352 + $0xf0] sm:$0xff]
      %v2384 = vld [vmem:[%s2352 + $0xf8] sm:$0xff]
      %v2385 = vld [vmem:[%s2352 + $0x100] sm:$0x3]
      %v2386 = vld [vmem:[%s2352 + $0x108] sm:$0xff]
      %v2387 = vld [vmem:[%s2352 + $0x110] sm:$0xff]
      %v2388 = vld [vmem:[%s2352 + $0x118] sm:$0x3]
      %v2389 = vld [vmem:[%s2352 + $0x120] sm:$0xff]
      %v2390 = vld [vmem:[%s2352 + $0x128] sm:$0xff]
      %v2391 = vld [vmem:[%s2352 + $0x130] sm:$0x3]
      %v2392 = vld [vmem:[%s2352 + $0x138] sm:$0xff]
      %v2393 = vld [vmem:[%s2352 + $0x140] sm:$0xff]
      %v2394 = vld [vmem:[%s2352 + $0x148] sm:$0x3]
      %v2395 = vld [vmem:[%s2352 + $0x150] sm:$0xff]
      %v2396 = vld [vmem:[%s2352 + $0x158] sm:$0xff]
      %v2397 = vld [vmem:[%s2352 + $0x160] sm:$0x3]
      %v2398 = vld [vmem:[%s2352 + $0x168] sm:$0xff]
      %v2399 = vld [vmem:[%s2352 + $0x170] sm:$0xff]
      %v2400 = vld [vmem:[%s2352 + $0x178] sm:$0x3]
      %s2401 = scalar_lea.vmem %s2, 96
      %v2402 = vld [vmem:[%s2401] sm:$0xff]
      %v2403 = vld [vmem:[%s2401 + $0x8] sm:$0xff]
      %v2405 = vsel %vm326, %v2353, 0
      %v2408 = vsel %vm326, %v2354, 0
      %v2411 = vsel %vm326, %v2356, 0
      %v2414 = vsel %vm326, %v2357, 0
      %v2417 = vsel %vm326, %v2359, 0
      %v2420 = vsel %vm326, %v2360, 0
      %v2423 = vsel %vm326, %v2362, 0
      %v2426 = vsel %vm326, %v2363, 0
      %v2429 = vsel %vm326, %v2365, 0
      %v2432 = vsel %vm326, %v2366, 0
      %v2435 = vsel %vm326, %v2368, 0
      %v2438 = vsel %vm326, %v2369, 0
      %v2441 = vsel %vm326, %v2371, 0
      %v2444 = vsel %vm326, %v2372, 0
      %v2447 = vsel %vm326, %v2374, 0
      %v2450 = vsel %vm326, %v2375, 0
      %v2453 = vsel %vm326, %v2377, 0
      %v2456 = vsel %vm326, %v2378, 0
      %v2459 = vsel %vm326, %v2380, 0
      %v2462 = vsel %vm326, %v2381, 0
      %v2465 = vsel %vm326, %v2383, 0
      %v2468 = vsel %vm326, %v2384, 0
      %v2471 = vsel %vm326, %v2386, 0
      %v2474 = vsel %vm326, %v2387, 0
      %v2477 = vsel %vm326, %v2389, 0
      %v2480 = vsel %vm326, %v2390, 0
      %v2483 = vsel %vm326, %v2392, 0
      %v2486 = vsel %vm326, %v2393, 0
      %v2489 = vsel %vm326, %v2395, 0
      %v2492 = vsel %vm326, %v2396, 0
      %v2495 = vsel %vm326, %v2398, 0
      %v2498 = vsel %vm326, %v2399, 0
      %2500 = vmatpush.msra.mxu0 0.0
      %2501 = vmatpush.msra.mxu0 0.0
      %2502 = vmatpush.msra.mxu0 0.0
      %2503 = vmatpush.msra.mxu0 0.0
      %2504 = vmatpush.msra.mxu0 0.0
      %2505 = vmatpush.msra.mxu0 0.0
      %2506 = vmatpush.msra.mxu0 0.0
      %2507 = vmatpush.msra.mxu0 0.0
      %2508 = vmatpush.msra.mxu0 0.0
      %2509 = vmatpush.msra.mxu0 0.0
      %2510 = vmatpush.msra.mxu0 0.0
      %2511 = vmatpush.msra.mxu0 0.0
      %2512 = vmatpush.msra.mxu0 0.0
      %2513 = vmatpush.msra.mxu0 0.0
      %2514 = vmatpush.msra.mxu0 %v2403
      %2515 = vmatpush.msra.mxu0 %v2402
      %2516 = vmatmul.f32.gmra.mxu0 %v2405
      %v2517 = vpop.f32.mrf.mxu0
      %v2518 = vadd.f32 0.0, %v2517
      %2519 = vmatmul.f32.gmra.mxu0 %v2408
      %v2520 = vpop.f32.mrf.mxu0
      %v2521 = vadd.f32 0.0, %v2520
      %2522 = vmatmul.f32.gmra.mxu0 %v2411
      %v2523 = vpop.f32.mrf.mxu0
      %v2524 = vadd.f32 0.0, %v2523
      %2525 = vmatmul.f32.gmra.mxu0 %v2414
      %v2526 = vpop.f32.mrf.mxu0
      %v2527 = vadd.f32 0.0, %v2526
      %2528 = vmatmul.f32.gmra.mxu0 %v2417
      %v2529 = vpop.f32.mrf.mxu0
      %v2530 = vadd.f32 0.0, %v2529
      %2531 = vmatmul.f32.gmra.mxu0 %v2420
      %v2532 = vpop.f32.mrf.mxu0
      %v2533 = vadd.f32 0.0, %v2532
      %2534 = vmatmul.f32.gmra.mxu0 %v2423
      %v2535 = vpop.f32.mrf.mxu0
      %v2536 = vadd.f32 0.0, %v2535
      %2537 = vmatmul.f32.gmra.mxu0 %v2426
      %v2538 = vpop.f32.mrf.mxu0
      %v2539 = vadd.f32 0.0, %v2538
      %2540 = vmatmul.f32.gmra.mxu0 %v2429
      %v2541 = vpop.f32.mrf.mxu0
      %v2542 = vadd.f32 0.0, %v2541
      %2543 = vmatmul.f32.gmra.mxu0 %v2432
      %v2544 = vpop.f32.mrf.mxu0
      %v2545 = vadd.f32 0.0, %v2544
      %2546 = vmatmul.f32.gmra.mxu0 %v2435
      %v2547 = vpop.f32.mrf.mxu0
      %v2548 = vadd.f32 0.0, %v2547
      %2549 = vmatmul.f32.gmra.mxu0 %v2438
      %v2550 = vpop.f32.mrf.mxu0
      %v2551 = vadd.f32 0.0, %v2550
      %2552 = vmatmul.f32.gmra.mxu0 %v2441
      %v2553 = vpop.f32.mrf.mxu0
      %v2554 = vadd.f32 0.0, %v2553
      %2555 = vmatmul.f32.gmra.mxu0 %v2444
      %v2556 = vpop.f32.mrf.mxu0
      %v2557 = vadd.f32 0.0, %v2556
      %2558 = vmatmul.f32.gmra.mxu0 %v2447
      %v2559 = vpop.f32.mrf.mxu0
      %v2560 = vadd.f32 0.0, %v2559
      %2561 = vmatmul.f32.gmra.mxu0 %v2450
      %v2562 = vpop.f32.mrf.mxu0
      %v2563 = vadd.f32 0.0, %v2562
      %2564 = vmatmul.f32.gmra.mxu0 %v2453
      %v2565 = vpop.f32.mrf.mxu0
      %v2566 = vadd.f32 0.0, %v2565
      %2567 = vmatmul.f32.gmra.mxu0 %v2456
      %v2568 = vpop.f32.mrf.mxu0
      %v2569 = vadd.f32 0.0, %v2568
      %2570 = vmatmul.f32.gmra.mxu0 %v2459
      %v2571 = vpop.f32.mrf.mxu0
      %v2572 = vadd.f32 0.0, %v2571
      %2573 = vmatmul.f32.gmra.mxu0 %v2462
      %v2574 = vpop.f32.mrf.mxu0
      %v2575 = vadd.f32 0.0, %v2574
      %2576 = vmatmul.f32.gmra.mxu0 %v2465
      %v2577 = vpop.f32.mrf.mxu0
      %v2578 = vadd.f32 0.0, %v2577
      %2579 = vmatmul.f32.gmra.mxu0 %v2468
      %v2580 = vpop.f32.mrf.mxu0
      %v2581 = vadd.f32 0.0, %v2580
      %2582 = vmatmul.f32.gmra.mxu0 %v2471
      %v2583 = vpop.f32.mrf.mxu0
      %v2584 = vadd.f32 0.0, %v2583
      %2585 = vmatmul.f32.gmra.mxu0 %v2474
      %v2586 = vpop.f32.mrf.mxu0
      %v2587 = vadd.f32 0.0, %v2586
      %2588 = vmatmul.f32.gmra.mxu0 %v2477
      %v2589 = vpop.f32.mrf.mxu0
      %v2590 = vadd.f32 0.0, %v2589
      %2591 = vmatmul.f32.gmra.mxu0 %v2480
      %v2592 = vpop.f32.mrf.mxu0
      %v2593 = vadd.f32 0.0, %v2592
      %2594 = vmatmul.f32.gmra.mxu0 %v2483
      %v2595 = vpop.f32.mrf.mxu0
      %v2596 = vadd.f32 0.0, %v2595
      %2597 = vmatmul.f32.gmra.mxu0 %v2486
      %v2598 = vpop.f32.mrf.mxu0
      %v2599 = vadd.f32 0.0, %v2598
      %2600 = vmatmul.f32.gmra.mxu0 %v2489
      %v2601 = vpop.f32.mrf.mxu0
      %v2602 = vadd.f32 0.0, %v2601
      %2603 = vmatmul.f32.gmra.mxu0 %v2492
      %v2604 = vpop.f32.mrf.mxu0
      %v2605 = vadd.f32 0.0, %v2604
      %2606 = vmatmul.f32.gmra.mxu0 %v2495
      %v2607 = vpop.f32.mrf.mxu0
      %v2608 = vadd.f32 0.0, %v2607
      %2609 = vmatmul.f32.gmra.mxu0 %v2498
      %v2610 = vpop.f32.mrf.mxu0
      %v2611 = vadd.f32 0.0, %v2610
      %2612 = vdwg.mxu0
      %v2613 = vadd.f32 %v2320, %v2518
      %v2614 = vadd.f32 %v2321, %v2521
      %v2615 = vadd.f32 %v2322, %v2524
      %v2616 = vadd.f32 %v2323, %v2527
      %v2617 = vadd.f32 %v2324, %v2530
      %v2618 = vadd.f32 %v2325, %v2533
      %v2619 = vadd.f32 %v2326, %v2536
      %v2620 = vadd.f32 %v2327, %v2539
      %v2621 = vadd.f32 %v2328, %v2542
      %v2622 = vadd.f32 %v2329, %v2545
      %v2623 = vadd.f32 %v2330, %v2548
      %v2624 = vadd.f32 %v2331, %v2551
      %v2625 = vadd.f32 %v2332, %v2554
      %v2626 = vadd.f32 %v2333, %v2557
      %v2627 = vadd.f32 %v2334, %v2560
      %v2628 = vadd.f32 %v2335, %v2563
      %v2629 = vadd.f32 %v2336, %v2566
      %v2630 = vadd.f32 %v2337, %v2569
      %v2631 = vadd.f32 %v2338, %v2572
      %v2632 = vadd.f32 %v2339, %v2575
      %v2633 = vadd.f32 %v2340, %v2578
      %v2634 = vadd.f32 %v2341, %v2581
      %v2635 = vadd.f32 %v2342, %v2584
      %v2636 = vadd.f32 %v2343, %v2587
      %v2637 = vadd.f32 %v2344, %v2590
      %v2638 = vadd.f32 %v2345, %v2593
      %v2639 = vadd.f32 %v2346, %v2596
      %v2640 = vadd.f32 %v2347, %v2599
      %v2641 = vadd.f32 %v2348, %v2602
      %v2642 = vadd.f32 %v2349, %v2605
      %v2643 = vadd.f32 %v2350, %v2608
      %v2644 = vadd.f32 %v2351, %v2611
      %s2645 = scalar_lea.vmem %s2, 112
      %v2646 = vld [vmem:[%s2645] sm:$0xff]
      %v2647 = vld [vmem:[%s2645 + $0x8] sm:$0xff]
      %v2664 = vrot.slane %v2353, 1
      %v2665 = vrot.slane %v2354, 1
      %v2666 = vsel %vm732, %v2664, %v2665
      %v2667 = vrot.slane %v2355, 1
      %v2668 = vsel %vm732, %v2665, %v2667
      %v2669 = vrot.slane %v2356, 1
      %v2670 = vrot.slane %v2357, 1
      %v2671 = vsel %vm732, %v2669, %v2670
      %v2672 = vrot.slane %v2358, 1
      %v2673 = vsel %vm732, %v2670, %v2672
      %v2674 = vrot.slane %v2359, 1
      %v2675 = vrot.slane %v2360, 1
      %v2676 = vsel %vm732, %v2674, %v2675
      %v2677 = vrot.slane %v2361, 1
      %v2678 = vsel %vm732, %v2675, %v2677
      %v2679 = vrot.slane %v2362, 1
      %v2680 = vrot.slane %v2363, 1
      %v2681 = vsel %vm732, %v2679, %v2680
      %v2682 = vrot.slane %v2364, 1
      %v2683 = vsel %vm732, %v2680, %v2682
      %v2684 = vrot.slane %v2365, 1
      %v2685 = vrot.slane %v2366, 1
      %v2686 = vsel %vm732, %v2684, %v2685
      %v2687 = vrot.slane %v2367, 1
      %v2688 = vsel %vm732, %v2685, %v2687
      %v2689 = vrot.slane %v2368, 1
      %v2690 = vrot.slane %v2369, 1
      %v2691 = vsel %vm732, %v2689, %v2690
      %v2692 = vrot.slane %v2370, 1
      %v2693 = vsel %vm732, %v2690, %v2692
      %v2694 = vrot.slane %v2371, 1
      %v2695 = vrot.slane %v2372, 1
      %v2696 = vsel %vm732, %v2694, %v2695
      %v2697 = vrot.slane %v2373, 1
      %v2698 = vsel %vm732, %v2695, %v2697
      %v2699 = vrot.slane %v2374, 1
      %v2700 = vrot.slane %v2375, 1
      %v2701 = vsel %vm732, %v2699, %v2700
      %v2702 = vrot.slane %v2376, 1
      %v2703 = vsel %vm732, %v2700, %v2702
      %v2704 = vrot.slane %v2377, 1
      %v2705 = vrot.slane %v2378, 1
      %v2706 = vsel %vm732, %v2704, %v2705
      %v2707 = vrot.slane %v2379, 1
      %v2708 = vsel %vm732, %v2705, %v2707
      %v2709 = vrot.slane %v2380, 1
      %v2710 = vrot.slane %v2381, 1
      %v2711 = vsel %vm732, %v2709, %v2710
      %v2712 = vrot.slane %v2382, 1
      %v2713 = vsel %vm732, %v2710, %v2712
      %v2714 = vrot.slane %v2383, 1
      %v2715 = vrot.slane %v2384, 1
      %v2716 = vsel %vm732, %v2714, %v2715
      %v2717 = vrot.slane %v2385, 1
      %v2718 = vsel %vm732, %v2715, %v2717
      %v2719 = vrot.slane %v2386, 1
      %v2720 = vrot.slane %v2387, 1
      %v2721 = vsel %vm732, %v2719, %v2720
      %v2722 = vrot.slane %v2388, 1
      %v2723 = vsel %vm732, %v2720, %v2722
      %v2724 = vrot.slane %v2389, 1
      %v2725 = vrot.slane %v2390, 1
      %v2726 = vsel %vm732, %v2724, %v2725
      %v2727 = vrot.slane %v2391, 1
      %v2728 = vsel %vm732, %v2725, %v2727
      %v2729 = vrot.slane %v2392, 1
      %v2730 = vrot.slane %v2393, 1
      %v2731 = vsel %vm732, %v2729, %v2730
      %v2732 = vrot.slane %v2394, 1
      %v2733 = vsel %vm732, %v2730, %v2732
      %v2734 = vrot.slane %v2395, 1
      %v2735 = vrot.slane %v2396, 1
      %v2736 = vsel %vm732, %v2734, %v2735
      %v2737 = vrot.slane %v2397, 1
      %v2738 = vsel %vm732, %v2735, %v2737
      %v2739 = vrot.slane %v2398, 1
      %v2740 = vrot.slane %v2399, 1
      %v2741 = vsel %vm732, %v2739, %v2740
      %v2742 = vrot.slane %v2400, 1
      %v2743 = vsel %vm732, %v2740, %v2742
      %v2744 = vsel %vm326, %v2666, 0
      %v2746 = vsel %vm326, %v2668, 0
      %v2748 = vsel %vm326, %v2671, 0
      %v2750 = vsel %vm326, %v2673, 0
      %v2752 = vsel %vm326, %v2676, 0
      %v2754 = vsel %vm326, %v2678, 0
      %v2756 = vsel %vm326, %v2681, 0
      %v2758 = vsel %vm326, %v2683, 0
      %v2760 = vsel %vm326, %v2686, 0
      %v2762 = vsel %vm326, %v2688, 0
      %v2764 = vsel %vm326, %v2691, 0
      %v2766 = vsel %vm326, %v2693, 0
      %v2768 = vsel %vm326, %v2696, 0
      %v2770 = vsel %vm326, %v2698, 0
      %v2772 = vsel %vm326, %v2701, 0
      %v2774 = vsel %vm326, %v2703, 0
      %v2776 = vsel %vm326, %v2706, 0
      %v2778 = vsel %vm326, %v2708, 0
      %v2780 = vsel %vm326, %v2711, 0
      %v2782 = vsel %vm326, %v2713, 0
      %v2784 = vsel %vm326, %v2716, 0
      %v2786 = vsel %vm326, %v2718, 0
      %v2788 = vsel %vm326, %v2721, 0
      %v2790 = vsel %vm326, %v2723, 0
      %v2792 = vsel %vm326, %v2726, 0
      %v2794 = vsel %vm326, %v2728, 0
      %v2796 = vsel %vm326, %v2731, 0
      %v2798 = vsel %vm326, %v2733, 0
      %v2800 = vsel %vm326, %v2736, 0
      %v2802 = vsel %vm326, %v2738, 0
      %v2804 = vsel %vm326, %v2741, 0
      %v2806 = vsel %vm326, %v2743, 0
      %2808 = vmatpush.msra.mxu0 0.0
      %2809 = vmatpush.msra.mxu0 0.0
      %2810 = vmatpush.msra.mxu0 0.0
      %2811 = vmatpush.msra.mxu0 0.0
      %2812 = vmatpush.msra.mxu0 0.0
      %2813 = vmatpush.msra.mxu0 0.0
      %2814 = vmatpush.msra.mxu0 0.0
      %2815 = vmatpush.msra.mxu0 0.0
      %2816 = vmatpush.msra.mxu0 0.0
      %2817 = vmatpush.msra.mxu0 0.0
      %2818 = vmatpush.msra.mxu0 0.0
      %2819 = vmatpush.msra.mxu0 0.0
      %2820 = vmatpush.msra.mxu0 0.0
      %2821 = vmatpush.msra.mxu0 0.0
      %2822 = vmatpush.msra.mxu0 %v2647
      %2823 = vmatpush.msra.mxu0 %v2646
      %2824 = vmatmul.f32.gmra.mxu0 %v2744
      %v2825 = vpop.f32.mrf.mxu0
      %v2826 = vadd.f32 0.0, %v2825
      %2827 = vmatmul.f32.gmra.mxu0 %v2746
      %v2828 = vpop.f32.mrf.mxu0
      %v2829 = vadd.f32 0.0, %v2828
      %2830 = vmatmul.f32.gmra.mxu0 %v2748
      %v2831 = vpop.f32.mrf.mxu0
      %v2832 = vadd.f32 0.0, %v2831
      %2833 = vmatmul.f32.gmra.mxu0 %v2750
      %v2834 = vpop.f32.mrf.mxu0
      %v2835 = vadd.f32 0.0, %v2834
      %2836 = vmatmul.f32.gmra.mxu0 %v2752
      %v2837 = vpop.f32.mrf.mxu0
      %v2838 = vadd.f32 0.0, %v2837
      %2839 = vmatmul.f32.gmra.mxu0 %v2754
      %v2840 = vpop.f32.mrf.mxu0
      %v2841 = vadd.f32 0.0, %v2840
      %2842 = vmatmul.f32.gmra.mxu0 %v2756
      %v2843 = vpop.f32.mrf.mxu0
      %v2844 = vadd.f32 0.0, %v2843
      %2845 = vmatmul.f32.gmra.mxu0 %v2758
      %v2846 = vpop.f32.mrf.mxu0
      %v2847 = vadd.f32 0.0, %v2846
      %2848 = vmatmul.f32.gmra.mxu0 %v2760
      %v2849 = vpop.f32.mrf.mxu0
      %v2850 = vadd.f32 0.0, %v2849
      %2851 = vmatmul.f32.gmra.mxu0 %v2762
      %v2852 = vpop.f32.mrf.mxu0
      %v2853 = vadd.f32 0.0, %v2852
      %2854 = vmatmul.f32.gmra.mxu0 %v2764
      %v2855 = vpop.f32.mrf.mxu0
      %v2856 = vadd.f32 0.0, %v2855
      %2857 = vmatmul.f32.gmra.mxu0 %v2766
      %v2858 = vpop.f32.mrf.mxu0
      %v2859 = vadd.f32 0.0, %v2858
      %2860 = vmatmul.f32.gmra.mxu0 %v2768
      %v2861 = vpop.f32.mrf.mxu0
      %v2862 = vadd.f32 0.0, %v2861
      %2863 = vmatmul.f32.gmra.mxu0 %v2770
      %v2864 = vpop.f32.mrf.mxu0
      %v2865 = vadd.f32 0.0, %v2864
      %2866 = vmatmul.f32.gmra.mxu0 %v2772
      %v2867 = vpop.f32.mrf.mxu0
      %v2868 = vadd.f32 0.0, %v2867
      %2869 = vmatmul.f32.gmra.mxu0 %v2774
      %v2870 = vpop.f32.mrf.mxu0
      %v2871 = vadd.f32 0.0, %v2870
      %2872 = vmatmul.f32.gmra.mxu0 %v2776
      %v2873 = vpop.f32.mrf.mxu0
      %v2874 = vadd.f32 0.0, %v2873
      %2875 = vmatmul.f32.gmra.mxu0 %v2778
      %v2876 = vpop.f32.mrf.mxu0
      %v2877 = vadd.f32 0.0, %v2876
      %2878 = vmatmul.f32.gmra.mxu0 %v2780
      %v2879 = vpop.f32.mrf.mxu0
      %v2880 = vadd.f32 0.0, %v2879
      %2881 = vmatmul.f32.gmra.mxu0 %v2782
      %v2882 = vpop.f32.mrf.mxu0
      %v2883 = vadd.f32 0.0, %v2882
      %2884 = vmatmul.f32.gmra.mxu0 %v2784
      %v2885 = vpop.f32.mrf.mxu0
      %v2886 = vadd.f32 0.0, %v2885
      %2887 = vmatmul.f32.gmra.mxu0 %v2786
      %v2888 = vpop.f32.mrf.mxu0
      %v2889 = vadd.f32 0.0, %v2888
      %2890 = vmatmul.f32.gmra.mxu0 %v2788
      %v2891 = vpop.f32.mrf.mxu0
      %v2892 = vadd.f32 0.0, %v2891
      %2893 = vmatmul.f32.gmra.mxu0 %v2790
      %v2894 = vpop.f32.mrf.mxu0
      %v2895 = vadd.f32 0.0, %v2894
      %2896 = vmatmul.f32.gmra.mxu0 %v2792
      %v2897 = vpop.f32.mrf.mxu0
      %v2898 = vadd.f32 0.0, %v2897
      %2899 = vmatmul.f32.gmra.mxu0 %v2794
      %v2900 = vpop.f32.mrf.mxu0
      %v2901 = vadd.f32 0.0, %v2900
      %2902 = vmatmul.f32.gmra.mxu0 %v2796
      %v2903 = vpop.f32.mrf.mxu0
      %v2904 = vadd.f32 0.0, %v2903
      %2905 = vmatmul.f32.gmra.mxu0 %v2798
      %v2906 = vpop.f32.mrf.mxu0
      %v2907 = vadd.f32 0.0, %v2906
      %2908 = vmatmul.f32.gmra.mxu0 %v2800
      %v2909 = vpop.f32.mrf.mxu0
      %v2910 = vadd.f32 0.0, %v2909
      %2911 = vmatmul.f32.gmra.mxu0 %v2802
      %v2912 = vpop.f32.mrf.mxu0
      %v2913 = vadd.f32 0.0, %v2912
      %2914 = vmatmul.f32.gmra.mxu0 %v2804
      %v2915 = vpop.f32.mrf.mxu0
      %v2916 = vadd.f32 0.0, %v2915
      %2917 = vmatmul.f32.gmra.mxu0 %v2806
      %v2918 = vpop.f32.mrf.mxu0
      %v2919 = vadd.f32 0.0, %v2918
      %2920 = vdwg.mxu0
      %v2921 = vadd.f32 %v2613, %v2826
      %v2922 = vadd.f32 %v2614, %v2829
      %v2923 = vadd.f32 %v2615, %v2832
      %v2924 = vadd.f32 %v2616, %v2835
      %v2925 = vadd.f32 %v2617, %v2838
      %v2926 = vadd.f32 %v2618, %v2841
      %v2927 = vadd.f32 %v2619, %v2844
      %v2928 = vadd.f32 %v2620, %v2847
      %v2929 = vadd.f32 %v2621, %v2850
      %v2930 = vadd.f32 %v2622, %v2853
      %v2931 = vadd.f32 %v2623, %v2856
      %v2932 = vadd.f32 %v2624, %v2859
      %v2933 = vadd.f32 %v2625, %v2862
      %v2934 = vadd.f32 %v2626, %v2865
      %v2935 = vadd.f32 %v2627, %v2868
      %v2936 = vadd.f32 %v2628, %v2871
      %v2937 = vadd.f32 %v2629, %v2874
      %v2938 = vadd.f32 %v2630, %v2877
      %v2939 = vadd.f32 %v2631, %v2880
      %v2940 = vadd.f32 %v2632, %v2883
      %v2941 = vadd.f32 %v2633, %v2886
      %v2942 = vadd.f32 %v2634, %v2889
      %v2943 = vadd.f32 %v2635, %v2892
      %v2944 = vadd.f32 %v2636, %v2895
      %v2945 = vadd.f32 %v2637, %v2898
      %v2946 = vadd.f32 %v2638, %v2901
      %v2947 = vadd.f32 %v2639, %v2904
      %v2948 = vadd.f32 %v2640, %v2907
      %v2949 = vadd.f32 %v2641, %v2910
      %v2950 = vadd.f32 %v2642, %v2913
      %v2951 = vadd.f32 %v2643, %v2916
      %v2952 = vadd.f32 %v2644, %v2919
      %s2953 = scalar_lea.vmem %s2, 128
      %v2954 = vld [vmem:[%s2953] sm:$0xff]
      %v2955 = vld [vmem:[%s2953 + $0x8] sm:$0xff]
      %v2956 = vrot.slane %v2353, 2
      %v2957 = vrot.slane %v2354, 2
      %v2958 = vsel %vm1170, %v2956, %v2957
      %v2959 = vrot.slane %v2355, 2
      %v2960 = vsel %vm1170, %v2957, %v2959
      %v2961 = vrot.slane %v2356, 2
      %v2962 = vrot.slane %v2357, 2
      %v2963 = vsel %vm1170, %v2961, %v2962
      %v2964 = vrot.slane %v2358, 2
      %v2965 = vsel %vm1170, %v2962, %v2964
      %v2966 = vrot.slane %v2359, 2
      %v2967 = vrot.slane %v2360, 2
      %v2968 = vsel %vm1170, %v2966, %v2967
      %v2969 = vrot.slane %v2361, 2
      %v2970 = vsel %vm1170, %v2967, %v2969
      %v2971 = vrot.slane %v2362, 2
      %v2972 = vrot.slane %v2363, 2
      %v2973 = vsel %vm1170, %v2971, %v2972
      %v2974 = vrot.slane %v2364, 2
      %v2975 = vsel %vm1170, %v2972, %v2974
      %v2976 = vrot.slane %v2365, 2
      %v2977 = vrot.slane %v2366, 2
      %v2978 = vsel %vm1170, %v2976, %v2977
      %v2979 = vrot.slane %v2367, 2
      %v2980 = vsel %vm1170, %v2977, %v2979
      %v2981 = vrot.slane %v2368, 2
      %v2982 = vrot.slane %v2369, 2
      %v2983 = vsel %vm1170, %v2981, %v2982
      %v2984 = vrot.slane %v2370, 2
      %v2985 = vsel %vm1170, %v2982, %v2984
      %v2986 = vrot.slane %v2371, 2
      %v2987 = vrot.slane %v2372, 2
      %v2988 = vsel %vm1170, %v2986, %v2987
      %v2989 = vrot.slane %v2373, 2
      %v2990 = vsel %vm1170, %v2987, %v2989
      %v2991 = vrot.slane %v2374, 2
      %v2992 = vrot.slane %v2375, 2
      %v2993 = vsel %vm1170, %v2991, %v2992
      %v2994 = vrot.slane %v2376, 2
      %v2995 = vsel %vm1170, %v2992, %v2994
      %v2996 = vrot.slane %v2377, 2
      %v2997 = vrot.slane %v2378, 2
      %v2998 = vsel %vm1170, %v2996, %v2997
      %v2999 = vrot.slane %v2379, 2
      %v3000 = vsel %vm1170, %v2997, %v2999
      %v3001 = vrot.slane %v2380, 2
      %v3002 = vrot.slane %v2381, 2
      %v3003 = vsel %vm1170, %v3001, %v3002
      %v3004 = vrot.slane %v2382, 2
      %v3005 = vsel %vm1170, %v3002, %v3004
      %v3006 = vrot.slane %v2383, 2
      %v3007 = vrot.slane %v2384, 2
      %v3008 = vsel %vm1170, %v3006, %v3007
      %v3009 = vrot.slane %v2385, 2
      %v3010 = vsel %vm1170, %v3007, %v3009
      %v3011 = vrot.slane %v2386, 2
      %v3012 = vrot.slane %v2387, 2
      %v3013 = vsel %vm1170, %v3011, %v3012
      %v3014 = vrot.slane %v2388, 2
      %v3015 = vsel %vm1170, %v3012, %v3014
      %v3016 = vrot.slane %v2389, 2
      %v3017 = vrot.slane %v2390, 2
      %v3018 = vsel %vm1170, %v3016, %v3017
      %v3019 = vrot.slane %v2391, 2
      %v3020 = vsel %vm1170, %v3017, %v3019
      %v3021 = vrot.slane %v2392, 2
      %v3022 = vrot.slane %v2393, 2
      %v3023 = vsel %vm1170, %v3021, %v3022
      %v3024 = vrot.slane %v2394, 2
      %v3025 = vsel %vm1170, %v3022, %v3024
      %v3026 = vrot.slane %v2395, 2
      %v3027 = vrot.slane %v2396, 2
      %v3028 = vsel %vm1170, %v3026, %v3027
      %v3029 = vrot.slane %v2397, 2
      %v3030 = vsel %vm1170, %v3027, %v3029
      %v3031 = vrot.slane %v2398, 2
      %v3032 = vrot.slane %v2399, 2
      %v3033 = vsel %vm1170, %v3031, %v3032
      %v3034 = vrot.slane %v2400, 2
      %v3035 = vsel %vm1170, %v3032, %v3034
      %v3036 = vsel %vm326, %v2958, 0
      %v3038 = vsel %vm326, %v2960, 0
      %v3040 = vsel %vm326, %v2963, 0
      %v3042 = vsel %vm326, %v2965, 0
      %v3044 = vsel %vm326, %v2968, 0
      %v3046 = vsel %vm326, %v2970, 0
      %v3048 = vsel %vm326, %v2973, 0
      %v3050 = vsel %vm326, %v2975, 0
      %v3052 = vsel %vm326, %v2978, 0
      %v3054 = vsel %vm326, %v2980, 0
      %v3056 = vsel %vm326, %v2983, 0
      %v3058 = vsel %vm326, %v2985, 0
      %v3060 = vsel %vm326, %v2988, 0
      %v3062 = vsel %vm326, %v2990, 0
      %v3064 = vsel %vm326, %v2993, 0
      %v3066 = vsel %vm326, %v2995, 0
      %v3068 = vsel %vm326, %v2998, 0
      %v3070 = vsel %vm326, %v3000, 0
      %v3072 = vsel %vm326, %v3003, 0
      %v3074 = vsel %vm326, %v3005, 0
      %v3076 = vsel %vm326, %v3008, 0
      %v3078 = vsel %vm326, %v3010, 0
      %v3080 = vsel %vm326, %v3013, 0
      %v3082 = vsel %vm326, %v3015, 0
      %v3084 = vsel %vm326, %v3018, 0
      %v3086 = vsel %vm326, %v3020, 0
      %v3088 = vsel %vm326, %v3023, 0
      %v3090 = vsel %vm326, %v3025, 0
      %v3092 = vsel %vm326, %v3028, 0
      %v3094 = vsel %vm326, %v3030, 0
      %v3096 = vsel %vm326, %v3033, 0
      %v3098 = vsel %vm326, %v3035, 0
      %3100 = vmatpush.msra.mxu0 0.0
      %3101 = vmatpush.msra.mxu0 0.0
      %3102 = vmatpush.msra.mxu0 0.0
      %3103 = vmatpush.msra.mxu0 0.0
      %3104 = vmatpush.msra.mxu0 0.0
      %3105 = vmatpush.msra.mxu0 0.0
      %3106 = vmatpush.msra.mxu0 0.0
      %3107 = vmatpush.msra.mxu0 0.0
      %3108 = vmatpush.msra.mxu0 0.0
      %3109 = vmatpush.msra.mxu0 0.0
      %3110 = vmatpush.msra.mxu0 0.0
      %3111 = vmatpush.msra.mxu0 0.0
      %3112 = vmatpush.msra.mxu0 0.0
      %3113 = vmatpush.msra.mxu0 0.0
      %3114 = vmatpush.msra.mxu0 %v2955
      %3115 = vmatpush.msra.mxu0 %v2954
      %3116 = vmatmul.f32.gmra.mxu0 %v3036
      %v3117 = vpop.f32.mrf.mxu0
      %v3118 = vadd.f32 0.0, %v3117
      %3119 = vmatmul.f32.gmra.mxu0 %v3038
      %v3120 = vpop.f32.mrf.mxu0
      %v3121 = vadd.f32 0.0, %v3120
      %3122 = vmatmul.f32.gmra.mxu0 %v3040
      %v3123 = vpop.f32.mrf.mxu0
      %v3124 = vadd.f32 0.0, %v3123
      %3125 = vmatmul.f32.gmra.mxu0 %v3042
      %v3126 = vpop.f32.mrf.mxu0
      %v3127 = vadd.f32 0.0, %v3126
      %3128 = vmatmul.f32.gmra.mxu0 %v3044
      %v3129 = vpop.f32.mrf.mxu0
      %v3130 = vadd.f32 0.0, %v3129
      %3131 = vmatmul.f32.gmra.mxu0 %v3046
      %v3132 = vpop.f32.mrf.mxu0
      %v3133 = vadd.f32 0.0, %v3132
      %3134 = vmatmul.f32.gmra.mxu0 %v3048
      %v3135 = vpop.f32.mrf.mxu0
      %v3136 = vadd.f32 0.0, %v3135
      %3137 = vmatmul.f32.gmra.mxu0 %v3050
      %v3138 = vpop.f32.mrf.mxu0
      %v3139 = vadd.f32 0.0, %v3138
      %3140 = vmatmul.f32.gmra.mxu0 %v3052
      %v3141 = vpop.f32.mrf.mxu0
      %v3142 = vadd.f32 0.0, %v3141
      %3143 = vmatmul.f32.gmra.mxu0 %v3054
      %v3144 = vpop.f32.mrf.mxu0
      %v3145 = vadd.f32 0.0, %v3144
      %3146 = vmatmul.f32.gmra.mxu0 %v3056
      %v3147 = vpop.f32.mrf.mxu0
      %v3148 = vadd.f32 0.0, %v3147
      %3149 = vmatmul.f32.gmra.mxu0 %v3058
      %v3150 = vpop.f32.mrf.mxu0
      %v3151 = vadd.f32 0.0, %v3150
      %3152 = vmatmul.f32.gmra.mxu0 %v3060
      %v3153 = vpop.f32.mrf.mxu0
      %v3154 = vadd.f32 0.0, %v3153
      %3155 = vmatmul.f32.gmra.mxu0 %v3062
      %v3156 = vpop.f32.mrf.mxu0
      %v3157 = vadd.f32 0.0, %v3156
      %3158 = vmatmul.f32.gmra.mxu0 %v3064
      %v3159 = vpop.f32.mrf.mxu0
      %v3160 = vadd.f32 0.0, %v3159
      %3161 = vmatmul.f32.gmra.mxu0 %v3066
      %v3162 = vpop.f32.mrf.mxu0
      %v3163 = vadd.f32 0.0, %v3162
      %3164 = vmatmul.f32.gmra.mxu0 %v3068
      %v3165 = vpop.f32.mrf.mxu0
      %v3166 = vadd.f32 0.0, %v3165
      %3167 = vmatmul.f32.gmra.mxu0 %v3070
      %v3168 = vpop.f32.mrf.mxu0
      %v3169 = vadd.f32 0.0, %v3168
      %3170 = vmatmul.f32.gmra.mxu0 %v3072
      %v3171 = vpop.f32.mrf.mxu0
      %v3172 = vadd.f32 0.0, %v3171
      %3173 = vmatmul.f32.gmra.mxu0 %v3074
      %v3174 = vpop.f32.mrf.mxu0
      %v3175 = vadd.f32 0.0, %v3174
      %3176 = vmatmul.f32.gmra.mxu0 %v3076
      %v3177 = vpop.f32.mrf.mxu0
      %v3178 = vadd.f32 0.0, %v3177
      %3179 = vmatmul.f32.gmra.mxu0 %v3078
      %v3180 = vpop.f32.mrf.mxu0
      %v3181 = vadd.f32 0.0, %v3180
      %3182 = vmatmul.f32.gmra.mxu0 %v3080
      %v3183 = vpop.f32.mrf.mxu0
      %v3184 = vadd.f32 0.0, %v3183
      %3185 = vmatmul.f32.gmra.mxu0 %v3082
      %v3186 = vpop.f32.mrf.mxu0
      %v3187 = vadd.f32 0.0, %v3186
      %3188 = vmatmul.f32.gmra.mxu0 %v3084
      %v3189 = vpop.f32.mrf.mxu0
      %v3190 = vadd.f32 0.0, %v3189
      %3191 = vmatmul.f32.gmra.mxu0 %v3086
      %v3192 = vpop.f32.mrf.mxu0
      %v3193 = vadd.f32 0.0, %v3192
      %3194 = vmatmul.f32.gmra.mxu0 %v3088
      %v3195 = vpop.f32.mrf.mxu0
      %v3196 = vadd.f32 0.0, %v3195
      %3197 = vmatmul.f32.gmra.mxu0 %v3090
      %v3198 = vpop.f32.mrf.mxu0
      %v3199 = vadd.f32 0.0, %v3198
      %3200 = vmatmul.f32.gmra.mxu0 %v3092
      %v3201 = vpop.f32.mrf.mxu0
      %v3202 = vadd.f32 0.0, %v3201
      %3203 = vmatmul.f32.gmra.mxu0 %v3094
      %v3204 = vpop.f32.mrf.mxu0
      %v3205 = vadd.f32 0.0, %v3204
      %3206 = vmatmul.f32.gmra.mxu0 %v3096
      %v3207 = vpop.f32.mrf.mxu0
      %v3208 = vadd.f32 0.0, %v3207
      %3209 = vmatmul.f32.gmra.mxu0 %v3098
      %v3210 = vpop.f32.mrf.mxu0
      %v3211 = vadd.f32 0.0, %v3210
      %3212 = vdwg.mxu0
      %v3213 = vadd.f32 %v2921, %v3118
      %v3214 = vadd.f32 %v2922, %v3121
      %v3215 = vadd.f32 %v2923, %v3124
      %v3216 = vadd.f32 %v2924, %v3127
      %v3217 = vadd.f32 %v2925, %v3130
      %v3218 = vadd.f32 %v2926, %v3133
      %v3219 = vadd.f32 %v2927, %v3136
      %v3220 = vadd.f32 %v2928, %v3139
      %v3221 = vadd.f32 %v2929, %v3142
      %v3222 = vadd.f32 %v2930, %v3145
      %v3223 = vadd.f32 %v2931, %v3148
      %v3224 = vadd.f32 %v2932, %v3151
      %v3225 = vadd.f32 %v2933, %v3154
      %v3226 = vadd.f32 %v2934, %v3157
      %v3227 = vadd.f32 %v2935, %v3160
      %v3228 = vadd.f32 %v2936, %v3163
      %v3229 = vadd.f32 %v2937, %v3166
      %v3230 = vadd.f32 %v2938, %v3169
      %v3231 = vadd.f32 %v2939, %v3172
      %v3232 = vadd.f32 %v2940, %v3175
      %v3233 = vadd.f32 %v2941, %v3178
      %v3234 = vadd.f32 %v2942, %v3181
      %v3235 = vadd.f32 %v2943, %v3184
      %v3236 = vadd.f32 %v2944, %v3187
      %v3237 = vadd.f32 %v2945, %v3190
      %v3238 = vadd.f32 %v2946, %v3193
      %v3239 = vadd.f32 %v2947, %v3196
      %v3240 = vadd.f32 %v2948, %v3199
      %v3241 = vadd.f32 %v2949, %v3202
      %v3242 = vadd.f32 %v2950, %v3205
      %v3243 = vadd.f32 %v2951, %v3208
      %v3244 = vadd.f32 %v2952, %v3211
      %v3245 = vld [vmem:[%s3] sm:$0x1]
      %v3247 = vperm.slane %v3245, 0
      %v3249 = vmul.f32 %v3213, %v3247
      %v3250 = vmul.f32 %v3214, %v3247
      %v3251 = vmul.f32 %v3215, %v3247
      %v3252 = vmul.f32 %v3216, %v3247
      %v3253 = vmul.f32 %v3217, %v3247
      %v3254 = vmul.f32 %v3218, %v3247
      %v3255 = vmul.f32 %v3219, %v3247
      %v3256 = vmul.f32 %v3220, %v3247
      %v3257 = vmul.f32 %v3221, %v3247
      %v3258 = vmul.f32 %v3222, %v3247
      %v3259 = vmul.f32 %v3223, %v3247
      %v3260 = vmul.f32 %v3224, %v3247
      %v3261 = vmul.f32 %v3225, %v3247
      %v3262 = vmul.f32 %v3226, %v3247
      %v3263 = vmul.f32 %v3227, %v3247
      %v3264 = vmul.f32 %v3228, %v3247
      %v3265 = vmul.f32 %v3229, %v3247
      %v3266 = vmul.f32 %v3230, %v3247
      %v3267 = vmul.f32 %v3231, %v3247
      %v3268 = vmul.f32 %v3232, %v3247
      %v3269 = vmul.f32 %v3233, %v3247
      %v3270 = vmul.f32 %v3234, %v3247
      %v3271 = vmul.f32 %v3235, %v3247
      %v3272 = vmul.f32 %v3236, %v3247
      %v3273 = vmul.f32 %v3237, %v3247
      %v3274 = vmul.f32 %v3238, %v3247
      %v3275 = vmul.f32 %v3239, %v3247
      %v3276 = vmul.f32 %v3240, %v3247
      %v3277 = vmul.f32 %v3241, %v3247
      %v3278 = vmul.f32 %v3242, %v3247
      %v3279 = vmul.f32 %v3243, %v3247
      %v3280 = vmul.f32 %v3244, %v3247
      %v3281 = vld [vmem:[%s4] sm:$0x1]
      %v3283 = vperm.slane %v3281, 0
      %v3285 = vadd.f32 %v3249, %v3283
      %v3286 = vadd.f32 %v3250, %v3283
      %v3287 = vadd.f32 %v3251, %v3283
      %v3288 = vadd.f32 %v3252, %v3283
      %v3289 = vadd.f32 %v3253, %v3283
      %v3290 = vadd.f32 %v3254, %v3283
      %v3291 = vadd.f32 %v3255, %v3283
      %v3292 = vadd.f32 %v3256, %v3283
      %v3293 = vadd.f32 %v3257, %v3283
      %v3294 = vadd.f32 %v3258, %v3283
      %v3295 = vadd.f32 %v3259, %v3283
      %v3296 = vadd.f32 %v3260, %v3283
      %v3297 = vadd.f32 %v3261, %v3283
      %v3298 = vadd.f32 %v3262, %v3283
      %v3299 = vadd.f32 %v3263, %v3283
      %v3300 = vadd.f32 %v3264, %v3283
      %v3301 = vadd.f32 %v3265, %v3283
      %v3302 = vadd.f32 %v3266, %v3283
      %v3303 = vadd.f32 %v3267, %v3283
      %v3304 = vadd.f32 %v3268, %v3283
      %v3305 = vadd.f32 %v3269, %v3283
      %v3306 = vadd.f32 %v3270, %v3283
      %v3307 = vadd.f32 %v3271, %v3283
      %v3308 = vadd.f32 %v3272, %v3283
      %v3309 = vadd.f32 %v3273, %v3283
      %v3310 = vadd.f32 %v3274, %v3283
      %v3311 = vadd.f32 %v3275, %v3283
      %v3312 = vadd.f32 %v3276, %v3283
      %v3313 = vadd.f32 %v3277, %v3283
      %v3314 = vadd.f32 %v3278, %v3283
      %v3315 = vadd.f32 %v3279, %v3283
      %v3316 = vadd.f32 %v3280, %v3283
      %vm3317 = vcmp.ge.f32.partialorder %v3285, 0.0
      %vm3318 = vcmp.ge.f32.partialorder %v3286, 0.0
      %vm3319 = vcmp.ge.f32.partialorder %v3287, 0.0
      %vm3320 = vcmp.ge.f32.partialorder %v3288, 0.0
      %vm3321 = vcmp.ge.f32.partialorder %v3289, 0.0
      %vm3322 = vcmp.ge.f32.partialorder %v3290, 0.0
      %vm3323 = vcmp.ge.f32.partialorder %v3291, 0.0
      %vm3324 = vcmp.ge.f32.partialorder %v3292, 0.0
      %vm3325 = vcmp.ge.f32.partialorder %v3293, 0.0
      %vm3326 = vcmp.ge.f32.partialorder %v3294, 0.0
      %vm3327 = vcmp.ge.f32.partialorder %v3295, 0.0
      %vm3328 = vcmp.ge.f32.partialorder %v3296, 0.0
      %vm3329 = vcmp.ge.f32.partialorder %v3297, 0.0
      %vm3330 = vcmp.ge.f32.partialorder %v3298, 0.0
      %vm3331 = vcmp.ge.f32.partialorder %v3299, 0.0
      %vm3332 = vcmp.ge.f32.partialorder %v3300, 0.0
      %vm3333 = vcmp.ge.f32.partialorder %v3301, 0.0
      %vm3334 = vcmp.ge.f32.partialorder %v3302, 0.0
      %vm3335 = vcmp.ge.f32.partialorder %v3303, 0.0
      %vm3336 = vcmp.ge.f32.partialorder %v3304, 0.0
      %vm3337 = vcmp.ge.f32.partialorder %v3305, 0.0
      %vm3338 = vcmp.ge.f32.partialorder %v3306, 0.0
      %vm3339 = vcmp.ge.f32.partialorder %v3307, 0.0
      %vm3340 = vcmp.ge.f32.partialorder %v3308, 0.0
      %vm3341 = vcmp.ge.f32.partialorder %v3309, 0.0
      %vm3342 = vcmp.ge.f32.partialorder %v3310, 0.0
      %vm3343 = vcmp.ge.f32.partialorder %v3311, 0.0
      %vm3344 = vcmp.ge.f32.partialorder %v3312, 0.0
      %vm3345 = vcmp.ge.f32.partialorder %v3313, 0.0
      %vm3346 = vcmp.ge.f32.partialorder %v3314, 0.0
      %vm3347 = vcmp.ge.f32.partialorder %v3315, 0.0
      %vm3348 = vcmp.ge.f32.partialorder %v3316, 0.0
      %v3349 = vmul.f32 %v3285, 0.01
      %v3350 = vmul.f32 %v3286, 0.01
      %v3351 = vmul.f32 %v3287, 0.01
      %v3352 = vmul.f32 %v3288, 0.01
      %v3353 = vmul.f32 %v3289, 0.01
      %v3354 = vmul.f32 %v3290, 0.01
      %v3355 = vmul.f32 %v3291, 0.01
      %v3356 = vmul.f32 %v3292, 0.01
      %v3357 = vmul.f32 %v3293, 0.01
      %v3358 = vmul.f32 %v3294, 0.01
      %v3359 = vmul.f32 %v3295, 0.01
      %v3360 = vmul.f32 %v3296, 0.01
      %v3361 = vmul.f32 %v3297, 0.01
      %v3362 = vmul.f32 %v3298, 0.01
      %v3363 = vmul.f32 %v3299, 0.01
      %v3364 = vmul.f32 %v3300, 0.01
      %v3365 = vmul.f32 %v3301, 0.01
      %v3366 = vmul.f32 %v3302, 0.01
      %v3367 = vmul.f32 %v3303, 0.01
      %v3368 = vmul.f32 %v3304, 0.01
      %v3369 = vmul.f32 %v3305, 0.01
      %v3370 = vmul.f32 %v3306, 0.01
      %v3371 = vmul.f32 %v3307, 0.01
      %v3372 = vmul.f32 %v3308, 0.01
      %v3373 = vmul.f32 %v3309, 0.01
      %v3374 = vmul.f32 %v3310, 0.01
      %v3375 = vmul.f32 %v3311, 0.01
      %v3376 = vmul.f32 %v3312, 0.01
      %v3377 = vmul.f32 %v3313, 0.01
      %v3378 = vmul.f32 %v3314, 0.01
      %v3379 = vmul.f32 %v3315, 0.01
      %v3380 = vmul.f32 %v3316, 0.01
      %v3381 = vsel %vm3317, %v3285, %v3349
      %v3382 = vsel %vm3318, %v3286, %v3350
      %v3383 = vsel %vm3319, %v3287, %v3351
      %v3384 = vsel %vm3320, %v3288, %v3352
      %v3385 = vsel %vm3321, %v3289, %v3353
      %v3386 = vsel %vm3322, %v3290, %v3354
      %v3387 = vsel %vm3323, %v3291, %v3355
      %v3388 = vsel %vm3324, %v3292, %v3356
      %v3389 = vsel %vm3325, %v3293, %v3357
      %v3390 = vsel %vm3326, %v3294, %v3358
      %v3391 = vsel %vm3327, %v3295, %v3359
      %v3392 = vsel %vm3328, %v3296, %v3360
      %v3393 = vsel %vm3329, %v3297, %v3361
      %v3394 = vsel %vm3330, %v3298, %v3362
      %v3395 = vsel %vm3331, %v3299, %v3363
      %v3396 = vsel %vm3332, %v3300, %v3364
      %v3397 = vsel %vm3333, %v3301, %v3365
      %v3398 = vsel %vm3334, %v3302, %v3366
      %v3399 = vsel %vm3335, %v3303, %v3367
      %v3400 = vsel %vm3336, %v3304, %v3368
      %v3401 = vsel %vm3337, %v3305, %v3369
      %v3402 = vsel %vm3338, %v3306, %v3370
      %v3403 = vsel %vm3339, %v3307, %v3371
      %v3404 = vsel %vm3340, %v3308, %v3372
      %v3405 = vsel %vm3341, %v3309, %v3373
      %v3406 = vsel %vm3342, %v3310, %v3374
      %v3407 = vsel %vm3343, %v3311, %v3375
      %v3408 = vsel %vm3344, %v3312, %v3376
      %v3409 = vsel %vm3345, %v3313, %v3377
      %v3410 = vsel %vm3346, %v3314, %v3378
      %v3411 = vsel %vm3347, %v3315, %v3379
      %v3412 = vsel %vm3348, %v3316, %v3380
      %3413 = vst.msk [vmem:[#allocation3] sm:$0xff] %vm405, 0.0
      %3414 = vst.msk [vmem:[#allocation3 + $0x8] sm:$0xff] %vm405, 0.0
      %vm3415 = vcmask 58368
      %3416 = vst.msk [vmem:[#allocation3 + $0x10] sm:$0x3] %vm3415, 0.0
      %s3417 = scalar_lea.vmem [#allocation3], 408
      %3418 = vst.msk [vmem:[%s3417] sm:$0xff] %vm405, 0.0
      %3419 = vst.msk [vmem:[%s3417 + $0x8] sm:$0xff] %vm405, 0.0
      %3420 = vst.msk [vmem:[%s3417 + $0x10] sm:$0x3] %vm3415, 0.0
      %vm3421 = vcmask 57344
      %3422 = vst.msk [vmem:[#allocation3] sm:$0x1] %vm3421, 0.0
      %3423 = vst.msk [vmem:[#allocation3 + $0x18] sm:$0x1] %vm3421, 0.0
      %3424 = vst.msk [vmem:[#allocation3 + $0x30] sm:$0x1] %vm3421, 0.0
      %3425 = vst.msk [vmem:[#allocation3 + $0x48] sm:$0x1] %vm3421, 0.0
      %3426 = vst.msk [vmem:[#allocation3 + $0x60] sm:$0x1] %vm3421, 0.0
      %3427 = vst.msk [vmem:[#allocation3 + $0x78] sm:$0x1] %vm3421, 0.0
      %3428 = vst.msk [vmem:[#allocation3 + $0x90] sm:$0x1] %vm3421, 0.0
      %3429 = vst.msk [vmem:[#allocation3 + $0xa8] sm:$0x1] %vm3421, 0.0
      %3430 = vst.msk [vmem:[#allocation3 + $0xc0] sm:$0x1] %vm3421, 0.0
      %3431 = vst.msk [vmem:[#allocation3 + $0xd8] sm:$0x1] %vm3421, 0.0
      %3432 = vst.msk [vmem:[#allocation3 + $0xf0] sm:$0x1] %vm3421, 0.0
      %3433 = vst.msk [vmem:[#allocation3 + $0x108] sm:$0x1] %vm3421, 0.0
      %3434 = vst.msk [vmem:[#allocation3 + $0x120] sm:$0x1] %vm3421, 0.0
      %3435 = vst.msk [vmem:[#allocation3 + $0x138] sm:$0x1] %vm3421, 0.0
      %3436 = vst.msk [vmem:[#allocation3 + $0x150] sm:$0x1] %vm3421, 0.0
      %3437 = vst.msk [vmem:[#allocation3 + $0x168] sm:$0x1] %vm3421, 0.0
      %3438 = vst.msk [vmem:[#allocation3 + $0x180] sm:$0x1] %vm3421, 0.0
      %3439 = vst.msk [vmem:[#allocation3 + $0x198] sm:$0x1] %vm3421, 0.0
      %3440 = vst.msk [vmem:[#allocation3 + $0x11] sm:$0x1] %vm3421, 0.0
      %3441 = vst.msk [vmem:[#allocation3 + $0x29] sm:$0x1] %vm3421, 0.0
      %3442 = vst.msk [vmem:[#allocation3 + $0x41] sm:$0x1] %vm3421, 0.0
      %3443 = vst.msk [vmem:[#allocation3 + $0x59] sm:$0x1] %vm3421, 0.0
      %3444 = vst.msk [vmem:[#allocation3 + $0x71] sm:$0x1] %vm3421, 0.0
      %3445 = vst.msk [vmem:[#allocation3 + $0x89] sm:$0x1] %vm3421, 0.0
      %3446 = vst.msk [vmem:[#allocation3 + $0xa1] sm:$0x1] %vm3421, 0.0
      %3447 = vst.msk [vmem:[#allocation3 + $0xb9] sm:$0x1] %vm3421, 0.0
      %3448 = vst.msk [vmem:[#allocation3 + $0xd1] sm:$0x1] %vm3421, 0.0
      %3449 = vst.msk [vmem:[#allocation3 + $0xe9] sm:$0x1] %vm3421, 0.0
      %3450 = vst.msk [vmem:[#allocation3 + $0x101] sm:$0x1] %vm3421, 0.0
      %3451 = vst.msk [vmem:[#allocation3 + $0x119] sm:$0x1] %vm3421, 0.0
      %3452 = vst.msk [vmem:[#allocation3 + $0x131] sm:$0x1] %vm3421, 0.0
      %3453 = vst.msk [vmem:[#allocation3 + $0x149] sm:$0x1] %vm3421, 0.0
      %3454 = vst.msk [vmem:[#allocation3 + $0x161] sm:$0x1] %vm3421, 0.0
      %3455 = vst.msk [vmem:[#allocation3 + $0x179] sm:$0x1] %vm3421, 0.0
      %3456 = vst.msk [vmem:[#allocation3 + $0x191] sm:$0x1] %vm3421, 0.0
      %3457 = vst.msk [vmem:[#allocation3 + $0x1a9] sm:$0x1] %vm3421, 0.0
      %s3458 = scalar_lea.vmem [#allocation3], 24
      %3459 = vst.msk [vmem:[%s3458 + $0x1] sm:$0xff] %vm405, %v3381
      %3460 = vst.msk [vmem:[%s3458 + $0x9] sm:$0xff] %vm405, %v3382
      %3461 = vst.msk [vmem:[%s3458 + $0x19] sm:$0xff] %vm405, %v3383
      %3462 = vst.msk [vmem:[%s3458 + $0x21] sm:$0xff] %vm405, %v3384
      %3463 = vst.msk [vmem:[%s3458 + $0x31] sm:$0xff] %vm405, %v3385
      %3464 = vst.msk [vmem:[%s3458 + $0x39] sm:$0xff] %vm405, %v3386
      %3465 = vst.msk [vmem:[%s3458 + $0x49] sm:$0xff] %vm405, %v3387
      %3466 = vst.msk [vmem:[%s3458 + $0x51] sm:$0xff] %vm405, %v3388
      %3467 = vst.msk [vmem:[%s3458 + $0x61] sm:$0xff] %vm405, %v3389
      %3468 = vst.msk [vmem:[%s3458 + $0x69] sm:$0xff] %vm405, %v3390
      %3469 = vst.msk [vmem:[%s3458 + $0x79] sm:$0xff] %vm405, %v3391
      %3470 = vst.msk [vmem:[%s3458 + $0x81] sm:$0xff] %vm405, %v3392
      %3471 = vst.msk [vmem:[%s3458 + $0x91] sm:$0xff] %vm405, %v3393
      %3472 = vst.msk [vmem:[%s3458 + $0x99] sm:$0xff] %vm405, %v3394
      %3473 = vst.msk [vmem:[%s3458 + $0xa9] sm:$0xff] %vm405, %v3395
      %3474 = vst.msk [vmem:[%s3458 + $0xb1] sm:$0xff] %vm405, %v3396
      %3475 = vst.msk [vmem:[%s3458 + $0xc1] sm:$0xff] %vm405, %v3397
      %3476 = vst.msk [vmem:[%s3458 + $0xc9] sm:$0xff] %vm405, %v3398
      %3477 = vst.msk [vmem:[%s3458 + $0xd9] sm:$0xff] %vm405, %v3399
      %3478 = vst.msk [vmem:[%s3458 + $0xe1] sm:$0xff] %vm405, %v3400
      %3479 = vst.msk [vmem:[%s3458 + $0xf1] sm:$0xff] %vm405, %v3401
      %3480 = vst.msk [vmem:[%s3458 + $0xf9] sm:$0xff] %vm405, %v3402
      %3481 = vst.msk [vmem:[%s3458 + $0x109] sm:$0xff] %vm405, %v3403
      %3482 = vst.msk [vmem:[%s3458 + $0x111] sm:$0xff] %vm405, %v3404
      %3483 = vst.msk [vmem:[%s3458 + $0x121] sm:$0xff] %vm405, %v3405
      %3484 = vst.msk [vmem:[%s3458 + $0x129] sm:$0xff] %vm405, %v3406
      %3485 = vst.msk [vmem:[%s3458 + $0x139] sm:$0xff] %vm405, %v3407
      %3486 = vst.msk [vmem:[%s3458 + $0x141] sm:$0xff] %vm405, %v3408
      %3487 = vst.msk [vmem:[%s3458 + $0x151] sm:$0xff] %vm405, %v3409
      %3488 = vst.msk [vmem:[%s3458 + $0x159] sm:$0xff] %vm405, %v3410
      %3489 = vst.msk [vmem:[%s3458 + $0x169] sm:$0xff] %vm405, %v3411
      %3490 = vst.msk [vmem:[%s3458 + $0x171] sm:$0xff] %vm405, %v3412
      %v3491 = vld [vmem:[#allocation3] sm:$0xff]
      %v3492 = vld [vmem:[#allocation3 + $0x8] sm:$0xff]
      %v3493 = vld [vmem:[#allocation3 + $0x10] sm:$0x3]
      %v3494 = vld [vmem:[#allocation3 + $0x18] sm:$0xff]
      %v3495 = vld [vmem:[#allocation3 + $0x20] sm:$0xff]
      %v3496 = vld [vmem:[#allocation3 + $0x28] sm:$0x3]
      %v3497 = vld [vmem:[#allocation3 + $0x30] sm:$0xff]
      %v3498 = vld [vmem:[#allocation3 + $0x38] sm:$0xff]
      %v3499 = vld [vmem:[#allocation3 + $0x40] sm:$0x3]
      %v3500 = vld [vmem:[#allocation3 + $0x48] sm:$0xff]
      %v3501 = vld [vmem:[#allocation3 + $0x50] sm:$0xff]
      %v3502 = vld [vmem:[#allocation3 + $0x58] sm:$0x3]
      %v3503 = vld [vmem:[#allocation3 + $0x60] sm:$0xff]
      %v3504 = vld [vmem:[#allocation3 + $0x68] sm:$0xff]
      %v3505 = vld [vmem:[#allocation3 + $0x70] sm:$0x3]
      %v3506 = vld [vmem:[#allocation3 + $0x78] sm:$0xff]
      %v3507 = vld [vmem:[#allocation3 + $0x80] sm:$0xff]
      %v3508 = vld [vmem:[#allocation3 + $0x88] sm:$0x3]
      %v3509 = vld [vmem:[#allocation3 + $0x90] sm:$0xff]
      %v3510 = vld [vmem:[#allocation3 + $0x98] sm:$0xff]
      %v3511 = vld [vmem:[#allocation3 + $0xa0] sm:$0x3]
      %v3512 = vld [vmem:[#allocation3 + $0xa8] sm:$0xff]
      %v3513 = vld [vmem:[#allocation3 + $0xb0] sm:$0xff]
      %v3514 = vld [vmem:[#allocation3 + $0xb8] sm:$0x3]
      %v3515 = vld [vmem:[#allocation3 + $0xc0] sm:$0xff]
      %v3516 = vld [vmem:[#allocation3 + $0xc8] sm:$0xff]
      %v3517 = vld [vmem:[#allocation3 + $0xd0] sm:$0x3]
      %v3518 = vld [vmem:[#allocation3 + $0xd8] sm:$0xff]
      %v3519 = vld [vmem:[#allocation3 + $0xe0] sm:$0xff]
      %v3520 = vld [vmem:[#allocation3 + $0xe8] sm:$0x3]
      %v3521 = vld [vmem:[#allocation3 + $0xf0] sm:$0xff]
      %v3522 = vld [vmem:[#allocation3 + $0xf8] sm:$0xff]
      %v3523 = vld [vmem:[#allocation3 + $0x100] sm:$0x3]
      %v3524 = vld [vmem:[#allocation3 + $0x108] sm:$0xff]
      %v3525 = vld [vmem:[#allocation3 + $0x110] sm:$0xff]
      %v3526 = vld [vmem:[#allocation3 + $0x118] sm:$0x3]
      %v3527 = vld [vmem:[#allocation3 + $0x120] sm:$0xff]
      %v3528 = vld [vmem:[#allocation3 + $0x128] sm:$0xff]
      %v3529 = vld [vmem:[#allocation3 + $0x130] sm:$0x3]
      %v3530 = vld [vmem:[#allocation3 + $0x138] sm:$0xff]
      %v3531 = vld [vmem:[#allocation3 + $0x140] sm:$0xff]
      %v3532 = vld [vmem:[#allocation3 + $0x148] sm:$0x3]
      %v3533 = vld [vmem:[#allocation3 + $0x150] sm:$0xff]
      %v3534 = vld [vmem:[#allocation3 + $0x158] sm:$0xff]
      %v3535 = vld [vmem:[#allocation3 + $0x160] sm:$0x3]
      %v3536 = vld [vmem:[#allocation3 + $0x168] sm:$0xff]
      %v3537 = vld [vmem:[#allocation3 + $0x170] sm:$0xff]
      %v3538 = vld [vmem:[#allocation3 + $0x178] sm:$0x3]
      %v3539 = vld [vmem:[%s5] sm:$0xff]
      %v3588 = vrot.slane %v3491, 1
      %v3589 = vrot.slane %v3492, 1
      %v3590 = vsel %vm732, %v3588, %v3589
      %v3591 = vrot.slane %v3493, 1
      %v3592 = vsel %vm732, %v3589, %v3591
      %v3593 = vrot.slane %v3494, 1
      %v3594 = vrot.slane %v3495, 1
      %v3595 = vsel %vm732, %v3593, %v3594
      %v3596 = vrot.slane %v3496, 1
      %v3597 = vsel %vm732, %v3594, %v3596
      %v3598 = vrot.slane %v3497, 1
      %v3599 = vrot.slane %v3498, 1
      %v3600 = vsel %vm732, %v3598, %v3599
      %v3601 = vrot.slane %v3499, 1
      %v3602 = vsel %vm732, %v3599, %v3601
      %v3603 = vrot.slane %v3500, 1
      %v3604 = vrot.slane %v3501, 1
      %v3605 = vsel %vm732, %v3603, %v3604
      %v3606 = vrot.slane %v3502, 1
      %v3607 = vsel %vm732, %v3604, %v3606
      %v3608 = vrot.slane %v3503, 1
      %v3609 = vrot.slane %v3504, 1
      %v3610 = vsel %vm732, %v3608, %v3609
      %v3611 = vrot.slane %v3505, 1
      %v3612 = vsel %vm732, %v3609, %v3611
      %v3613 = vrot.slane %v3506, 1
      %v3614 = vrot.slane %v3507, 1
      %v3615 = vsel %vm732, %v3613, %v3614
      %v3616 = vrot.slane %v3508, 1
      %v3617 = vsel %vm732, %v3614, %v3616
      %v3618 = vrot.slane %v3509, 1
      %v3619 = vrot.slane %v3510, 1
      %v3620 = vsel %vm732, %v3618, %v3619
      %v3621 = vrot.slane %v3511, 1
      %v3622 = vsel %vm732, %v3619, %v3621
      %v3623 = vrot.slane %v3512, 1
      %v3624 = vrot.slane %v3513, 1
      %v3625 = vsel %vm732, %v3623, %v3624
      %v3626 = vrot.slane %v3514, 1
      %v3627 = vsel %vm732, %v3624, %v3626
      %v3628 = vrot.slane %v3515, 1
      %v3629 = vrot.slane %v3516, 1
      %v3630 = vsel %vm732, %v3628, %v3629
      %v3631 = vrot.slane %v3517, 1
      %v3632 = vsel %vm732, %v3629, %v3631
      %v3633 = vrot.slane %v3518, 1
      %v3634 = vrot.slane %v3519, 1
      %v3635 = vsel %vm732, %v3633, %v3634
      %v3636 = vrot.slane %v3520, 1
      %v3637 = vsel %vm732, %v3634, %v3636
      %v3638 = vrot.slane %v3521, 1
      %v3639 = vrot.slane %v3522, 1
      %v3640 = vsel %vm732, %v3638, %v3639
      %v3641 = vrot.slane %v3523, 1
      %v3642 = vsel %vm732, %v3639, %v3641
      %v3643 = vrot.slane %v3524, 1
      %v3644 = vrot.slane %v3525, 1
      %v3645 = vsel %vm732, %v3643, %v3644
      %v3646 = vrot.slane %v3526, 1
      %v3647 = vsel %vm732, %v3644, %v3646
      %v3648 = vrot.slane %v3527, 1
      %v3649 = vrot.slane %v3528, 1
      %v3650 = vsel %vm732, %v3648, %v3649
      %v3651 = vrot.slane %v3529, 1
      %v3652 = vsel %vm732, %v3649, %v3651
      %v3653 = vrot.slane %v3530, 1
      %v3654 = vrot.slane %v3531, 1
      %v3655 = vsel %vm732, %v3653, %v3654
      %v3656 = vrot.slane %v3532, 1
      %v3657 = vsel %vm732, %v3654, %v3656
      %v3658 = vrot.slane %v3533, 1
      %v3659 = vrot.slane %v3534, 1
      %v3660 = vsel %vm732, %v3658, %v3659
      %v3661 = vrot.slane %v3535, 1
      %v3662 = vsel %vm732, %v3659, %v3661
      %v3663 = vrot.slane %v3536, 1
      %v3664 = vrot.slane %v3537, 1
      %v3665 = vsel %vm732, %v3663, %v3664
      %v3666 = vrot.slane %v3538, 1
      %v3667 = vsel %vm732, %v3664, %v3666
      %s3668 = scalar_lea.vmem %s5, 8
      %v3669 = vld [vmem:[%s3668] sm:$0xff]
      %v3671 = vsel %vm405, %v3669, 0
      %v3673 = vsel %vm405, %v3590, 0
      %v3675 = vsel %vm405, %v3592, 0
      %v3677 = vsel %vm405, %v3595, 0
      %v3679 = vsel %vm405, %v3597, 0
      %v3681 = vsel %vm405, %v3600, 0
      %v3683 = vsel %vm405, %v3602, 0
      %v3685 = vsel %vm405, %v3605, 0
      %v3687 = vsel %vm405, %v3607, 0
      %v3689 = vsel %vm405, %v3610, 0
      %v3691 = vsel %vm405, %v3612, 0
      %v3693 = vsel %vm405, %v3615, 0
      %v3695 = vsel %vm405, %v3617, 0
      %v3697 = vsel %vm405, %v3620, 0
      %v3699 = vsel %vm405, %v3622, 0
      %v3701 = vsel %vm405, %v3625, 0
      %v3703 = vsel %vm405, %v3627, 0
      %v3705 = vsel %vm405, %v3630, 0
      %v3707 = vsel %vm405, %v3632, 0
      %v3709 = vsel %vm405, %v3635, 0
      %v3711 = vsel %vm405, %v3637, 0
      %v3713 = vsel %vm405, %v3640, 0
      %v3715 = vsel %vm405, %v3642, 0
      %v3717 = vsel %vm405, %v3645, 0
      %v3719 = vsel %vm405, %v3647, 0
      %v3721 = vsel %vm405, %v3650, 0
      %v3723 = vsel %vm405, %v3652, 0
      %v3725 = vsel %vm405, %v3655, 0
      %v3727 = vsel %vm405, %v3657, 0
      %v3729 = vsel %vm405, %v3660, 0
      %v3731 = vsel %vm405, %v3662, 0
      %v3733 = vsel %vm405, %v3665, 0
      %v3735 = vsel %vm405, %v3667, 0
      %3737 = vmatpush.xpose.msra.mxu0 %v3703
      %3738 = vmatpush.xpose.msra.mxu0 %v3701
      %3739 = vmatpush.xpose.msra.mxu0 %v3699
      %3740 = vmatpush.xpose.msra.mxu0 %v3697
      %3741 = vmatpush.xpose.msra.mxu0 %v3695
      %3742 = vmatpush.xpose.msra.mxu0 %v3693
      %3743 = vmatpush.xpose.msra.mxu0 %v3691
      %3744 = vmatpush.xpose.msra.mxu0 %v3689
      %3745 = vmatpush.xpose.msra.mxu0 %v3687
      %3746 = vmatpush.xpose.msra.mxu0 %v3685
      %3747 = vmatpush.xpose.msra.mxu0 %v3683
      %3748 = vmatpush.xpose.msra.mxu0 %v3681
      %3749 = vmatpush.xpose.msra.mxu0 %v3679
      %3750 = vmatpush.xpose.msra.mxu0 %v3677
      %3751 = vmatpush.xpose.msra.mxu0 %v3675
      %3752 = vmatpush.xpose.msra.mxu0 %v3673
      %3753 = vmatmul.f32.gmra.mxu0 %v3671
      %v3754 = vpop.f32.mrf.mxu0
      %v3755 = vadd.f32 0.0, %v3754
      %3756 = vdwg.mxu0
      %3757 = vmatpush.xpose.msra.mxu0 %v3735
      %3758 = vmatpush.xpose.msra.mxu0 %v3733
      %3759 = vmatpush.xpose.msra.mxu0 %v3731
      %3760 = vmatpush.xpose.msra.mxu0 %v3729
      %3761 = vmatpush.xpose.msra.mxu0 %v3727
      %3762 = vmatpush.xpose.msra.mxu0 %v3725
      %3763 = vmatpush.xpose.msra.mxu0 %v3723
      %3764 = vmatpush.xpose.msra.mxu0 %v3721
      %3765 = vmatpush.xpose.msra.mxu0 %v3719
      %3766 = vmatpush.xpose.msra.mxu0 %v3717
      %3767 = vmatpush.xpose.msra.mxu0 %v3715
      %3768 = vmatpush.xpose.msra.mxu0 %v3713
      %3769 = vmatpush.xpose.msra.mxu0 %v3711
      %3770 = vmatpush.xpose.msra.mxu0 %v3709
      %3771 = vmatpush.xpose.msra.mxu0 %v3707
      %3772 = vmatpush.xpose.msra.mxu0 %v3705
      %3773 = vmatmul.f32.gmra.mxu0 %v3671
      %v3774 = vpop.f32.mrf.mxu0
      %v3775 = vadd.f32 0.0, %v3774
      %3776 = vdwg.mxu0
      %v3778 = vsel %vm405, %v3539, 0
      %v3780 = vsel %vm405, %v3491, 0
      %v3782 = vsel %vm405, %v3492, 0
      %v3784 = vsel %vm405, %v3494, 0
      %v3786 = vsel %vm405, %v3495, 0
      %v3788 = vsel %vm405, %v3497, 0
      %v3790 = vsel %vm405, %v3498, 0
      %v3792 = vsel %vm405, %v3500, 0
      %v3794 = vsel %vm405, %v3501, 0
      %v3796 = vsel %vm405, %v3503, 0
      %v3798 = vsel %vm405, %v3504, 0
      %v3800 = vsel %vm405, %v3506, 0
      %v3802 = vsel %vm405, %v3507, 0
      %v3804 = vsel %vm405, %v3509, 0
      %v3806 = vsel %vm405, %v3510, 0
      %v3808 = vsel %vm405, %v3512, 0
      %v3810 = vsel %vm405, %v3513, 0
      %v3812 = vsel %vm405, %v3515, 0
      %v3814 = vsel %vm405, %v3516, 0
      %v3816 = vsel %vm405, %v3518, 0
      %v3818 = vsel %vm405, %v3519, 0
      %v3820 = vsel %vm405, %v3521, 0
      %v3822 = vsel %vm405, %v3522, 0
      %v3824 = vsel %vm405, %v3524, 0
      %v3826 = vsel %vm405, %v3525, 0
      %v3828 = vsel %vm405, %v3527, 0
      %v3830 = vsel %vm405, %v3528, 0
      %v3832 = vsel %vm405, %v3530, 0
      %v3834 = vsel %vm405, %v3531, 0
      %v3836 = vsel %vm405, %v3533, 0
      %v3838 = vsel %vm405, %v3534, 0
      %v3840 = vsel %vm405, %v3536, 0
      %v3842 = vsel %vm405, %v3537, 0
      %3844 = vmatpush.xpose.msra.mxu0 %v3810
      %3845 = vmatpush.xpose.msra.mxu0 %v3808
      %3846 = vmatpush.xpose.msra.mxu0 %v3806
      %3847 = vmatpush.xpose.msra.mxu0 %v3804
      %3848 = vmatpush.xpose.msra.mxu0 %v3802
      %3849 = vmatpush.xpose.msra.mxu0 %v3800
      %3850 = vmatpush.xpose.msra.mxu0 %v3798
      %3851 = vmatpush.xpose.msra.mxu0 %v3796
      %3852 = vmatpush.xpose.msra.mxu0 %v3794
      %3853 = vmatpush.xpose.msra.mxu0 %v3792
      %3854 = vmatpush.xpose.msra.mxu0 %v3790
      %3855 = vmatpush.xpose.msra.mxu0 %v3788
      %3856 = vmatpush.xpose.msra.mxu0 %v3786
      %3857 = vmatpush.xpose.msra.mxu0 %v3784
      %3858 = vmatpush.xpose.msra.mxu0 %v3782
      %3859 = vmatpush.xpose.msra.mxu0 %v3780
      %3860 = vmatmul.f32.gmra.mxu0 %v3778
      %v3861 = vpop.f32.mrf.mxu0
      %v3862 = vadd.f32 %v3755, %v3861
      %3863 = vdwg.mxu0
      %3864 = vmatpush.xpose.msra.mxu0 %v3842
      %3865 = vmatpush.xpose.msra.mxu0 %v3840
      %3866 = vmatpush.xpose.msra.mxu0 %v3838
      %3867 = vmatpush.xpose.msra.mxu0 %v3836
      %3868 = vmatpush.xpose.msra.mxu0 %v3834
      %3869 = vmatpush.xpose.msra.mxu0 %v3832
      %3870 = vmatpush.xpose.msra.mxu0 %v3830
      %3871 = vmatpush.xpose.msra.mxu0 %v3828
      %3872 = vmatpush.xpose.msra.mxu0 %v3826
      %3873 = vmatpush.xpose.msra.mxu0 %v3824
      %3874 = vmatpush.xpose.msra.mxu0 %v3822
      %3875 = vmatpush.xpose.msra.mxu0 %v3820
      %3876 = vmatpush.xpose.msra.mxu0 %v3818
      %3877 = vmatpush.xpose.msra.mxu0 %v3816
      %3878 = vmatpush.xpose.msra.mxu0 %v3814
      %3879 = vmatpush.xpose.msra.mxu0 %v3812
      %3880 = vmatmul.f32.gmra.mxu0 %v3778
      %v3881 = vpop.f32.mrf.mxu0
      %v3882 = vadd.f32 %v3775, %v3881
      %3883 = vdwg.mxu0
      %v3884 = vrot.slane %v3491, 2
      %v3885 = vrot.slane %v3492, 2
      %v3886 = vsel %vm1170, %v3884, %v3885
      %v3887 = vrot.slane %v3493, 2
      %v3888 = vsel %vm1170, %v3885, %v3887
      %v3889 = vrot.slane %v3494, 2
      %v3890 = vrot.slane %v3495, 2
      %v3891 = vsel %vm1170, %v3889, %v3890
      %v3892 = vrot.slane %v3496, 2
      %v3893 = vsel %vm1170, %v3890, %v3892
      %v3894 = vrot.slane %v3497, 2
      %v3895 = vrot.slane %v3498, 2
      %v3896 = vsel %vm1170, %v3894, %v3895
      %v3897 = vrot.slane %v3499, 2
      %v3898 = vsel %vm1170, %v3895, %v3897
      %v3899 = vrot.slane %v3500, 2
      %v3900 = vrot.slane %v3501, 2
      %v3901 = vsel %vm1170, %v3899, %v3900
      %v3902 = vrot.slane %v3502, 2
      %v3903 = vsel %vm1170, %v3900, %v3902
      %v3904 = vrot.slane %v3503, 2
      %v3905 = vrot.slane %v3504, 2
      %v3906 = vsel %vm1170, %v3904, %v3905
      %v3907 = vrot.slane %v3505, 2
      %v3908 = vsel %vm1170, %v3905, %v3907
      %v3909 = vrot.slane %v3506, 2
      %v3910 = vrot.slane %v3507, 2
      %v3911 = vsel %vm1170, %v3909, %v3910
      %v3912 = vrot.slane %v3508, 2
      %v3913 = vsel %vm1170, %v3910, %v3912
      %v3914 = vrot.slane %v3509, 2
      %v3915 = vrot.slane %v3510, 2
      %v3916 = vsel %vm1170, %v3914, %v3915
      %v3917 = vrot.slane %v3511, 2
      %v3918 = vsel %vm1170, %v3915, %v3917
      %v3919 = vrot.slane %v3512, 2
      %v3920 = vrot.slane %v3513, 2
      %v3921 = vsel %vm1170, %v3919, %v3920
      %v3922 = vrot.slane %v3514, 2
      %v3923 = vsel %vm1170, %v3920, %v3922
      %v3924 = vrot.slane %v3515, 2
      %v3925 = vrot.slane %v3516, 2
      %v3926 = vsel %vm1170, %v3924, %v3925
      %v3927 = vrot.slane %v3517, 2
      %v3928 = vsel %vm1170, %v3925, %v3927
      %v3929 = vrot.slane %v3518, 2
      %v3930 = vrot.slane %v3519, 2
      %v3931 = vsel %vm1170, %v3929, %v3930
      %v3932 = vrot.slane %v3520, 2
      %v3933 = vsel %vm1170, %v3930, %v3932
      %v3934 = vrot.slane %v3521, 2
      %v3935 = vrot.slane %v3522, 2
      %v3936 = vsel %vm1170, %v3934, %v3935
      %v3937 = vrot.slane %v3523, 2
      %v3938 = vsel %vm1170, %v3935, %v3937
      %v3939 = vrot.slane %v3524, 2
      %v3940 = vrot.slane %v3525, 2
      %v3941 = vsel %vm1170, %v3939, %v3940
      %v3942 = vrot.slane %v3526, 2
      %v3943 = vsel %vm1170, %v3940, %v3942
      %v3944 = vrot.slane %v3527, 2
      %v3945 = vrot.slane %v3528, 2
      %v3946 = vsel %vm1170, %v3944, %v3945
      %v3947 = vrot.slane %v3529, 2
      %v3948 = vsel %vm1170, %v3945, %v3947
      %v3949 = vrot.slane %v3530, 2
      %v3950 = vrot.slane %v3531, 2
      %v3951 = vsel %vm1170, %v3949, %v3950
      %v3952 = vrot.slane %v3532, 2
      %v3953 = vsel %vm1170, %v3950, %v3952
      %v3954 = vrot.slane %v3533, 2
      %v3955 = vrot.slane %v3534, 2
      %v3956 = vsel %vm1170, %v3954, %v3955
      %v3957 = vrot.slane %v3535, 2
      %v3958 = vsel %vm1170, %v3955, %v3957
      %v3959 = vrot.slane %v3536, 2
      %v3960 = vrot.slane %v3537, 2
      %v3961 = vsel %vm1170, %v3959, %v3960
      %v3962 = vrot.slane %v3538, 2
      %v3963 = vsel %vm1170, %v3960, %v3962
      %s3964 = scalar_lea.vmem %s5, 16
      %v3965 = vld [vmem:[%s3964] sm:$0xff]
      %v3967 = vsel %vm405, %v3965, 0
      %v3969 = vsel %vm405, %v3886, 0
      %v3971 = vsel %vm405, %v3888, 0
      %v3973 = vsel %vm405, %v3891, 0
      %v3975 = vsel %vm405, %v3893, 0
      %v3977 = vsel %vm405, %v3896, 0
      %v3979 = vsel %vm405, %v3898, 0
      %v3981 = vsel %vm405, %v3901, 0
      %v3983 = vsel %vm405, %v3903, 0
      %v3985 = vsel %vm405, %v3906, 0
      %v3987 = vsel %vm405, %v3908, 0
      %v3989 = vsel %vm405, %v3911, 0
      %v3991 = vsel %vm405, %v3913, 0
      %v3993 = vsel %vm405, %v3916, 0
      %v3995 = vsel %vm405, %v3918, 0
      %v3997 = vsel %vm405, %v3921, 0
      %v3999 = vsel %vm405, %v3923, 0
      %v4001 = vsel %vm405, %v3926, 0
      %v4003 = vsel %vm405, %v3928, 0
      %v4005 = vsel %vm405, %v3931, 0
      %v4007 = vsel %vm405, %v3933, 0
      %v4009 = vsel %vm405, %v3936, 0
      %v4011 = vsel %vm405, %v3938, 0
      %v4013 = vsel %vm405, %v3941, 0
      %v4015 = vsel %vm405, %v3943, 0
      %v4017 = vsel %vm405, %v3946, 0
      %v4019 = vsel %vm405, %v3948, 0
      %v4021 = vsel %vm405, %v3951, 0
      %v4023 = vsel %vm405, %v3953, 0
      %v4025 = vsel %vm405, %v3956, 0
      %v4027 = vsel %vm405, %v3958, 0
      %v4029 = vsel %vm405, %v3961, 0
      %v4031 = vsel %vm405, %v3963, 0
      %4033 = vmatpush.xpose.msra.mxu0 %v3999
      %4034 = vmatpush.xpose.msra.mxu0 %v3997
      %4035 = vmatpush.xpose.msra.mxu0 %v3995
      %4036 = vmatpush.xpose.msra.mxu0 %v3993
      %4037 = vmatpush.xpose.msra.mxu0 %v3991
      %4038 = vmatpush.xpose.msra.mxu0 %v3989
      %4039 = vmatpush.xpose.msra.mxu0 %v3987
      %4040 = vmatpush.xpose.msra.mxu0 %v3985
      %4041 = vmatpush.xpose.msra.mxu0 %v3983
      %4042 = vmatpush.xpose.msra.mxu0 %v3981
      %4043 = vmatpush.xpose.msra.mxu0 %v3979
      %4044 = vmatpush.xpose.msra.mxu0 %v3977
      %4045 = vmatpush.xpose.msra.mxu0 %v3975
      %4046 = vmatpush.xpose.msra.mxu0 %v3973
      %4047 = vmatpush.xpose.msra.mxu0 %v3971
      %4048 = vmatpush.xpose.msra.mxu0 %v3969
      %4049 = vmatmul.f32.gmra.mxu0 %v3967
      %v4050 = vpop.f32.mrf.mxu0
      %v4051 = vadd.f32 0.0, %v4050
      %4052 = vdwg.mxu0
      %4053 = vmatpush.xpose.msra.mxu0 %v4031
      %4054 = vmatpush.xpose.msra.mxu0 %v4029
      %4055 = vmatpush.xpose.msra.mxu0 %v4027
      %4056 = vmatpush.xpose.msra.mxu0 %v4025
      %4057 = vmatpush.xpose.msra.mxu0 %v4023
      %4058 = vmatpush.xpose.msra.mxu0 %v4021
      %4059 = vmatpush.xpose.msra.mxu0 %v4019
      %4060 = vmatpush.xpose.msra.mxu0 %v4017
      %4061 = vmatpush.xpose.msra.mxu0 %v4015
      %4062 = vmatpush.xpose.msra.mxu0 %v4013
      %4063 = vmatpush.xpose.msra.mxu0 %v4011
      %4064 = vmatpush.xpose.msra.mxu0 %v4009
      %4065 = vmatpush.xpose.msra.mxu0 %v4007
      %4066 = vmatpush.xpose.msra.mxu0 %v4005
      %4067 = vmatpush.xpose.msra.mxu0 %v4003
      %4068 = vmatpush.xpose.msra.mxu0 %v4001
      %4069 = vmatmul.f32.gmra.mxu0 %v3967
      %v4070 = vpop.f32.mrf.mxu0
      %v4071 = vadd.f32 0.0, %v4070
      %4072 = vdwg.mxu0
      %v4073 = vadd.f32 %v3862, %v4051
      %v4074 = vadd.f32 %v3882, %v4071
      %v4075 = vld [vmem:[%s3458] sm:$0xff]
      %v4076 = vld [vmem:[%s3458 + $0x8] sm:$0xff]
      %v4077 = vld [vmem:[%s3458 + $0x10] sm:$0x3]
      %v4078 = vld [vmem:[%s3458 + $0x18] sm:$0xff]
      %v4079 = vld [vmem:[%s3458 + $0x20] sm:$0xff]
      %v4080 = vld [vmem:[%s3458 + $0x28] sm:$0x3]
      %v4081 = vld [vmem:[%s3458 + $0x30] sm:$0xff]
      %v4082 = vld [vmem:[%s3458 + $0x38] sm:$0xff]
      %v4083 = vld [vmem:[%s3458 + $0x40] sm:$0x3]
      %v4084 = vld [vmem:[%s3458 + $0x48] sm:$0xff]
      %v4085 = vld [vmem:[%s3458 + $0x50] sm:$0xff]
      %v4086 = vld [vmem:[%s3458 + $0x58] sm:$0x3]
      %v4087 = vld [vmem:[%s3458 + $0x60] sm:$0xff]
      %v4088 = vld [vmem:[%s3458 + $0x68] sm:$0xff]
      %v4089 = vld [vmem:[%s3458 + $0x70] sm:$0x3]
      %v4090 = vld [vmem:[%s3458 + $0x78] sm:$0xff]
      %v4091 = vld [vmem:[%s3458 + $0x80] sm:$0xff]
      %v4092 = vld [vmem:[%s3458 + $0x88] sm:$0x3]
      %v4093 = vld [vmem:[%s3458 + $0x90] sm:$0xff]
      %v4094 = vld [vmem:[%s3458 + $0x98] sm:$0xff]
      %v4095 = vld [vmem:[%s3458 + $0xa0] sm:$0x3]
      %v4096 = vld [vmem:[%s3458 + $0xa8] sm:$0xff]
      %v4097 = vld [vmem:[%s3458 + $0xb0] sm:$0xff]
      %v4098 = vld [vmem:[%s3458 + $0xb8] sm:$0x3]
      %v4099 = vld [vmem:[%s3458 + $0xc0] sm:$0xff]
      %v4100 = vld [vmem:[%s3458 + $0xc8] sm:$0xff]
      %v4101 = vld [vmem:[%s3458 + $0xd0] sm:$0x3]
      %v4102 = vld [vmem:[%s3458 + $0xd8] sm:$0xff]
      %v4103 = vld [vmem:[%s3458 + $0xe0] sm:$0xff]
      %v4104 = vld [vmem:[%s3458 + $0xe8] sm:$0x3]
      %v4105 = vld [vmem:[%s3458 + $0xf0] sm:$0xff]
      %v4106 = vld [vmem:[%s3458 + $0xf8] sm:$0xff]
      %v4107 = vld [vmem:[%s3458 + $0x100] sm:$0x3]
      %v4108 = vld [vmem:[%s3458 + $0x108] sm:$0xff]
      %v4109 = vld [vmem:[%s3458 + $0x110] sm:$0xff]
      %v4110 = vld [vmem:[%s3458 + $0x118] sm:$0x3]
      %v4111 = vld [vmem:[%s3458 + $0x120] sm:$0xff]
      %v4112 = vld [vmem:[%s3458 + $0x128] sm:$0xff]
      %v4113 = vld [vmem:[%s3458 + $0x130] sm:$0x3]
      %v4114 = vld [vmem:[%s3458 + $0x138] sm:$0xff]
      %v4115 = vld [vmem:[%s3458 + $0x140] sm:$0xff]
      %v4116 = vld [vmem:[%s3458 + $0x148] sm:$0x3]
      %v4117 = vld [vmem:[%s3458 + $0x150] sm:$0xff]
      %v4118 = vld [vmem:[%s3458 + $0x158] sm:$0xff]
      %v4119 = vld [vmem:[%s3458 + $0x160] sm:$0x3]
      %v4120 = vld [vmem:[%s3458 + $0x168] sm:$0xff]
      %v4121 = vld [vmem:[%s3458 + $0x170] sm:$0xff]
      %v4122 = vld [vmem:[%s3458 + $0x178] sm:$0x3]
      %s4123 = scalar_lea.vmem %s5, 24
      %v4124 = vld [vmem:[%s4123] sm:$0xff]
      %v4126 = vsel %vm405, %v4124, 0
      %v4129 = vsel %vm405, %v4075, 0
      %v4132 = vsel %vm405, %v4076, 0
      %v4135 = vsel %vm405, %v4078, 0
      %v4138 = vsel %vm405, %v4079, 0
      %v4141 = vsel %vm405, %v4081, 0
      %v4144 = vsel %vm405, %v4082, 0
      %v4147 = vsel %vm405, %v4084, 0
      %v4150 = vsel %vm405, %v4085, 0
      %v4153 = vsel %vm405, %v4087, 0
      %v4156 = vsel %vm405, %v4088, 0
      %v4159 = vsel %vm405, %v4090, 0
      %v4162 = vsel %vm405, %v4091, 0
      %v4165 = vsel %vm405, %v4093, 0
      %v4168 = vsel %vm405, %v4094, 0
      %v4171 = vsel %vm405, %v4096, 0
      %v4174 = vsel %vm405, %v4097, 0
      %v4177 = vsel %vm405, %v4099, 0
      %v4180 = vsel %vm405, %v4100, 0
      %v4183 = vsel %vm405, %v4102, 0
      %v4186 = vsel %vm405, %v4103, 0
      %v4189 = vsel %vm405, %v4105, 0
      %v4192 = vsel %vm405, %v4106, 0
      %v4195 = vsel %vm405, %v4108, 0
      %v4198 = vsel %vm405, %v4109, 0
      %v4201 = vsel %vm405, %v4111, 0
      %v4204 = vsel %vm405, %v4112, 0
      %v4207 = vsel %vm405, %v4114, 0
      %v4210 = vsel %vm405, %v4115, 0
      %v4213 = vsel %vm405, %v4117, 0
      %v4216 = vsel %vm405, %v4118, 0
      %v4219 = vsel %vm405, %v4120, 0
      %v4222 = vsel %vm405, %v4121, 0
      %4224 = vmatpush.xpose.msra.mxu0 %v4174
      %4225 = vmatpush.xpose.msra.mxu0 %v4171
      %4226 = vmatpush.xpose.msra.mxu0 %v4168
      %4227 = vmatpush.xpose.msra.mxu0 %v4165
      %4228 = vmatpush.xpose.msra.mxu0 %v4162
      %4229 = vmatpush.xpose.msra.mxu0 %v4159
      %4230 = vmatpush.xpose.msra.mxu0 %v4156
      %4231 = vmatpush.xpose.msra.mxu0 %v4153
      %4232 = vmatpush.xpose.msra.mxu0 %v4150
      %4233 = vmatpush.xpose.msra.mxu0 %v4147
      %4234 = vmatpush.xpose.msra.mxu0 %v4144
      %4235 = vmatpush.xpose.msra.mxu0 %v4141
      %4236 = vmatpush.xpose.msra.mxu0 %v4138
      %4237 = vmatpush.xpose.msra.mxu0 %v4135
      %4238 = vmatpush.xpose.msra.mxu0 %v4132
      %4239 = vmatpush.xpose.msra.mxu0 %v4129
      %4240 = vmatmul.f32.gmra.mxu0 %v4126
      %v4241 = vpop.f32.mrf.mxu0
      %v4242 = vadd.f32 0.0, %v4241
      %4243 = vdwg.mxu0
      %4244 = vmatpush.xpose.msra.mxu0 %v4222
      %4245 = vmatpush.xpose.msra.mxu0 %v4219
      %4246 = vmatpush.xpose.msra.mxu0 %v4216
      %4247 = vmatpush.xpose.msra.mxu0 %v4213
      %4248 = vmatpush.xpose.msra.mxu0 %v4210
      %4249 = vmatpush.xpose.msra.mxu0 %v4207
      %4250 = vmatpush.xpose.msra.mxu0 %v4204
      %4251 = vmatpush.xpose.msra.mxu0 %v4201
      %4252 = vmatpush.xpose.msra.mxu0 %v4198
      %4253 = vmatpush.xpose.msra.mxu0 %v4195
      %4254 = vmatpush.xpose.msra.mxu0 %v4192
      %4255 = vmatpush.xpose.msra.mxu0 %v4189
      %4256 = vmatpush.xpose.msra.mxu0 %v4186
      %4257 = vmatpush.xpose.msra.mxu0 %v4183
      %4258 = vmatpush.xpose.msra.mxu0 %v4180
      %4259 = vmatpush.xpose.msra.mxu0 %v4177
      %4260 = vmatmul.f32.gmra.mxu0 %v4126
      %v4261 = vpop.f32.mrf.mxu0
      %v4262 = vadd.f32 0.0, %v4261
      %4263 = vdwg.mxu0
      %v4264 = vadd.f32 %v4073, %v4242
      %v4265 = vadd.f32 %v4074, %v4262
      %v4282 = vrot.slane %v4075, 1
      %v4283 = vrot.slane %v4076, 1
      %v4284 = vsel %vm732, %v4282, %v4283
      %v4285 = vrot.slane %v4077, 1
      %v4286 = vsel %vm732, %v4283, %v4285
      %v4287 = vrot.slane %v4078, 1
      %v4288 = vrot.slane %v4079, 1
      %v4289 = vsel %vm732, %v4287, %v4288
      %v4290 = vrot.slane %v4080, 1
      %v4291 = vsel %vm732, %v4288, %v4290
      %v4292 = vrot.slane %v4081, 1
      %v4293 = vrot.slane %v4082, 1
      %v4294 = vsel %vm732, %v4292, %v4293
      %v4295 = vrot.slane %v4083, 1
      %v4296 = vsel %vm732, %v4293, %v4295
      %v4297 = vrot.slane %v4084, 1
      %v4298 = vrot.slane %v4085, 1
      %v4299 = vsel %vm732, %v4297, %v4298
      %v4300 = vrot.slane %v4086, 1
      %v4301 = vsel %vm732, %v4298, %v4300
      %v4302 = vrot.slane %v4087, 1
      %v4303 = vrot.slane %v4088, 1
      %v4304 = vsel %vm732, %v4302, %v4303
      %v4305 = vrot.slane %v4089, 1
      %v4306 = vsel %vm732, %v4303, %v4305
      %v4307 = vrot.slane %v4090, 1
      %v4308 = vrot.slane %v4091, 1
      %v4309 = vsel %vm732, %v4307, %v4308
      %v4310 = vrot.slane %v4092, 1
      %v4311 = vsel %vm732, %v4308, %v4310
      %v4312 = vrot.slane %v4093, 1
      %v4313 = vrot.slane %v4094, 1
      %v4314 = vsel %vm732, %v4312, %v4313
      %v4315 = vrot.slane %v4095, 1
      %v4316 = vsel %vm732, %v4313, %v4315
      %v4317 = vrot.slane %v4096, 1
      %v4318 = vrot.slane %v4097, 1
      %v4319 = vsel %vm732, %v4317, %v4318
      %v4320 = vrot.slane %v4098, 1
      %v4321 = vsel %vm732, %v4318, %v4320
      %v4322 = vrot.slane %v4099, 1
      %v4323 = vrot.slane %v4100, 1
      %v4324 = vsel %vm732, %v4322, %v4323
      %v4325 = vrot.slane %v4101, 1
      %v4326 = vsel %vm732, %v4323, %v4325
      %v4327 = vrot.slane %v4102, 1
      %v4328 = vrot.slane %v4103, 1
      %v4329 = vsel %vm732, %v4327, %v4328
      %v4330 = vrot.slane %v4104, 1
      %v4331 = vsel %vm732, %v4328, %v4330
      %v4332 = vrot.slane %v4105, 1
      %v4333 = vrot.slane %v4106, 1
      %v4334 = vsel %vm732, %v4332, %v4333
      %v4335 = vrot.slane %v4107, 1
      %v4336 = vsel %vm732, %v4333, %v4335
      %v4337 = vrot.slane %v4108, 1
      %v4338 = vrot.slane %v4109, 1
      %v4339 = vsel %vm732, %v4337, %v4338
      %v4340 = vrot.slane %v4110, 1
      %v4341 = vsel %vm732, %v4338, %v4340
      %v4342 = vrot.slane %v4111, 1
      %v4343 = vrot.slane %v4112, 1
      %v4344 = vsel %vm732, %v4342, %v4343
      %v4345 = vrot.slane %v4113, 1
      %v4346 = vsel %vm732, %v4343, %v4345
      %v4347 = vrot.slane %v4114, 1
      %v4348 = vrot.slane %v4115, 1
      %v4349 = vsel %vm732, %v4347, %v4348
      %v4350 = vrot.slane %v4116, 1
      %v4351 = vsel %vm732, %v4348, %v4350
      %v4352 = vrot.slane %v4117, 1
      %v4353 = vrot.slane %v4118, 1
      %v4354 = vsel %vm732, %v4352, %v4353
      %v4355 = vrot.slane %v4119, 1
      %v4356 = vsel %vm732, %v4353, %v4355
      %v4357 = vrot.slane %v4120, 1
      %v4358 = vrot.slane %v4121, 1
      %v4359 = vsel %vm732, %v4357, %v4358
      %v4360 = vrot.slane %v4122, 1
      %v4361 = vsel %vm732, %v4358, %v4360
      %s4362 = scalar_lea.vmem %s5, 32
      %v4363 = vld [vmem:[%s4362] sm:$0xff]
      %v4365 = vsel %vm405, %v4363, 0
      %v4367 = vsel %vm405, %v4284, 0
      %v4369 = vsel %vm405, %v4286, 0
      %v4371 = vsel %vm405, %v4289, 0
      %v4373 = vsel %vm405, %v4291, 0
      %v4375 = vsel %vm405, %v4294, 0
      %v4377 = vsel %vm405, %v4296, 0
      %v4379 = vsel %vm405, %v4299, 0
      %v4381 = vsel %vm405, %v4301, 0
      %v4383 = vsel %vm405, %v4304, 0
      %v4385 = vsel %vm405, %v4306, 0
      %v4387 = vsel %vm405, %v4309, 0
      %v4389 = vsel %vm405, %v4311, 0
      %v4391 = vsel %vm405, %v4314, 0
      %v4393 = vsel %vm405, %v4316, 0
      %v4395 = vsel %vm405, %v4319, 0
      %v4397 = vsel %vm405, %v4321, 0
      %v4399 = vsel %vm405, %v4324, 0
      %v4401 = vsel %vm405, %v4326, 0
      %v4403 = vsel %vm405, %v4329, 0
      %v4405 = vsel %vm405, %v4331, 0
      %v4407 = vsel %vm405, %v4334, 0
      %v4409 = vsel %vm405, %v4336, 0
      %v4411 = vsel %vm405, %v4339, 0
      %v4413 = vsel %vm405, %v4341, 0
      %v4415 = vsel %vm405, %v4344, 0
      %v4417 = vsel %vm405, %v4346, 0
      %v4419 = vsel %vm405, %v4349, 0
      %v4421 = vsel %vm405, %v4351, 0
      %v4423 = vsel %vm405, %v4354, 0
      %v4425 = vsel %vm405, %v4356, 0
      %v4427 = vsel %vm405, %v4359, 0
      %v4429 = vsel %vm405, %v4361, 0
      %4431 = vmatpush.xpose.msra.mxu0 %v4397
      %4432 = vmatpush.xpose.msra.mxu0 %v4395
      %4433 = vmatpush.xpose.msra.mxu0 %v4393
      %4434 = vmatpush.xpose.msra.mxu0 %v4391
      %4435 = vmatpush.xpose.msra.mxu0 %v4389
      %4436 = vmatpush.xpose.msra.mxu0 %v4387
      %4437 = vmatpush.xpose.msra.mxu0 %v4385
      %4438 = vmatpush.xpose.msra.mxu0 %v4383
      %4439 = vmatpush.xpose.msra.mxu0 %v4381
      %4440 = vmatpush.xpose.msra.mxu0 %v4379
      %4441 = vmatpush.xpose.msra.mxu0 %v4377
      %4442 = vmatpush.xpose.msra.mxu0 %v4375
      %4443 = vmatpush.xpose.msra.mxu0 %v4373
      %4444 = vmatpush.xpose.msra.mxu0 %v4371
      %4445 = vmatpush.xpose.msra.mxu0 %v4369
      %4446 = vmatpush.xpose.msra.mxu0 %v4367
      %4447 = vmatmul.f32.gmra.mxu0 %v4365
      %v4448 = vpop.f32.mrf.mxu0
      %v4449 = vadd.f32 0.0, %v4448
      %4450 = vdwg.mxu0
      %4451 = vmatpush.xpose.msra.mxu0 %v4429
      %4452 = vmatpush.xpose.msra.mxu0 %v4427
      %4453 = vmatpush.xpose.msra.mxu0 %v4425
      %4454 = vmatpush.xpose.msra.mxu0 %v4423
      %4455 = vmatpush.xpose.msra.mxu0 %v4421
      %4456 = vmatpush.xpose.msra.mxu0 %v4419
      %4457 = vmatpush.xpose.msra.mxu0 %v4417
      %4458 = vmatpush.xpose.msra.mxu0 %v4415
      %4459 = vmatpush.xpose.msra.mxu0 %v4413
      %4460 = vmatpush.xpose.msra.mxu0 %v4411
      %4461 = vmatpush.xpose.msra.mxu0 %v4409
      %4462 = vmatpush.xpose.msra.mxu0 %v4407
      %4463 = vmatpush.xpose.msra.mxu0 %v4405
      %4464 = vmatpush.xpose.msra.mxu0 %v4403
      %4465 = vmatpush.xpose.msra.mxu0 %v4401
      %4466 = vmatpush.xpose.msra.mxu0 %v4399
      %4467 = vmatmul.f32.gmra.mxu0 %v4365
      %v4468 = vpop.f32.mrf.mxu0
      %v4469 = vadd.f32 0.0, %v4468
      %4470 = vdwg.mxu0
      %v4471 = vadd.f32 %v4264, %v4449
      %v4472 = vadd.f32 %v4265, %v4469
      %v4473 = vrot.slane %v4075, 2
      %v4474 = vrot.slane %v4076, 2
      %v4475 = vsel %vm1170, %v4473, %v4474
      %v4476 = vrot.slane %v4077, 2
      %v4477 = vsel %vm1170, %v4474, %v4476
      %v4478 = vrot.slane %v4078, 2
      %v4479 = vrot.slane %v4079, 2
      %v4480 = vsel %vm1170, %v4478, %v4479
      %v4481 = vrot.slane %v4080, 2
      %v4482 = vsel %vm1170, %v4479, %v4481
      %v4483 = vrot.slane %v4081, 2
      %v4484 = vrot.slane %v4082, 2
      %v4485 = vsel %vm1170, %v4483, %v4484
      %v4486 = vrot.slane %v4083, 2
      %v4487 = vsel %vm1170, %v4484, %v4486
      %v4488 = vrot.slane %v4084, 2
      %v4489 = vrot.slane %v4085, 2
      %v4490 = vsel %vm1170, %v4488, %v4489
      %v4491 = vrot.slane %v4086, 2
      %v4492 = vsel %vm1170, %v4489, %v4491
      %v4493 = vrot.slane %v4087, 2
      %v4494 = vrot.slane %v4088, 2
      %v4495 = vsel %vm1170, %v4493, %v4494
      %v4496 = vrot.slane %v4089, 2
      %v4497 = vsel %vm1170, %v4494, %v4496
      %v4498 = vrot.slane %v4090, 2
      %v4499 = vrot.slane %v4091, 2
      %v4500 = vsel %vm1170, %v4498, %v4499
      %v4501 = vrot.slane %v4092, 2
      %v4502 = vsel %vm1170, %v4499, %v4501
      %v4503 = vrot.slane %v4093, 2
      %v4504 = vrot.slane %v4094, 2
      %v4505 = vsel %vm1170, %v4503, %v4504
      %v4506 = vrot.slane %v4095, 2
      %v4507 = vsel %vm1170, %v4504, %v4506
      %v4508 = vrot.slane %v4096, 2
      %v4509 = vrot.slane %v4097, 2
      %v4510 = vsel %vm1170, %v4508, %v4509
      %v4511 = vrot.slane %v4098, 2
      %v4512 = vsel %vm1170, %v4509, %v4511
      %v4513 = vrot.slane %v4099, 2
      %v4514 = vrot.slane %v4100, 2
      %v4515 = vsel %vm1170, %v4513, %v4514
      %v4516 = vrot.slane %v4101, 2
      %v4517 = vsel %vm1170, %v4514, %v4516
      %v4518 = vrot.slane %v4102, 2
      %v4519 = vrot.slane %v4103, 2
      %v4520 = vsel %vm1170, %v4518, %v4519
      %v4521 = vrot.slane %v4104, 2
      %v4522 = vsel %vm1170, %v4519, %v4521
      %v4523 = vrot.slane %v4105, 2
      %v4524 = vrot.slane %v4106, 2
      %v4525 = vsel %vm1170, %v4523, %v4524
      %v4526 = vrot.slane %v4107, 2
      %v4527 = vsel %vm1170, %v4524, %v4526
      %v4528 = vrot.slane %v4108, 2
      %v4529 = vrot.slane %v4109, 2
      %v4530 = vsel %vm1170, %v4528, %v4529
      %v4531 = vrot.slane %v4110, 2
      %v4532 = vsel %vm1170, %v4529, %v4531
      %v4533 = vrot.slane %v4111, 2
      %v4534 = vrot.slane %v4112, 2
      %v4535 = vsel %vm1170, %v4533, %v4534
      %v4536 = vrot.slane %v4113, 2
      %v4537 = vsel %vm1170, %v4534, %v4536
      %v4538 = vrot.slane %v4114, 2
      %v4539 = vrot.slane %v4115, 2
      %v4540 = vsel %vm1170, %v4538, %v4539
      %v4541 = vrot.slane %v4116, 2
      %v4542 = vsel %vm1170, %v4539, %v4541
      %v4543 = vrot.slane %v4117, 2
      %v4544 = vrot.slane %v4118, 2
      %v4545 = vsel %vm1170, %v4543, %v4544
      %v4546 = vrot.slane %v4119, 2
      %v4547 = vsel %vm1170, %v4544, %v4546
      %v4548 = vrot.slane %v4120, 2
      %v4549 = vrot.slane %v4121, 2
      %v4550 = vsel %vm1170, %v4548, %v4549
      %v4551 = vrot.slane %v4122, 2
      %v4552 = vsel %vm1170, %v4549, %v4551
      %s4553 = scalar_lea.vmem %s5, 40
      %v4554 = vld [vmem:[%s4553] sm:$0xff]
      %v4556 = vsel %vm405, %v4554, 0
      %v4558 = vsel %vm405, %v4475, 0
      %v4560 = vsel %vm405, %v4477, 0
      %v4562 = vsel %vm405, %v4480, 0
      %v4564 = vsel %vm405, %v4482, 0
      %v4566 = vsel %vm405, %v4485, 0
      %v4568 = vsel %vm405, %v4487, 0
      %v4570 = vsel %vm405, %v4490, 0
      %v4572 = vsel %vm405, %v4492, 0
      %v4574 = vsel %vm405, %v4495, 0
      %v4576 = vsel %vm405, %v4497, 0
      %v4578 = vsel %vm405, %v4500, 0
      %v4580 = vsel %vm405, %v4502, 0
      %v4582 = vsel %vm405, %v4505, 0
      %v4584 = vsel %vm405, %v4507, 0
      %v4586 = vsel %vm405, %v4510, 0
      %v4588 = vsel %vm405, %v4512, 0
      %v4590 = vsel %vm405, %v4515, 0
      %v4592 = vsel %vm405, %v4517, 0
      %v4594 = vsel %vm405, %v4520, 0
      %v4596 = vsel %vm405, %v4522, 0
      %v4598 = vsel %vm405, %v4525, 0
      %v4600 = vsel %vm405, %v4527, 0
      %v4602 = vsel %vm405, %v4530, 0
      %v4604 = vsel %vm405, %v4532, 0
      %v4606 = vsel %vm405, %v4535, 0
      %v4608 = vsel %vm405, %v4537, 0
      %v4610 = vsel %vm405, %v4540, 0
      %v4612 = vsel %vm405, %v4542, 0
      %v4614 = vsel %vm405, %v4545, 0
      %v4616 = vsel %vm405, %v4547, 0
      %v4618 = vsel %vm405, %v4550, 0
      %v4620 = vsel %vm405, %v4552, 0
      %4622 = vmatpush.xpose.msra.mxu0 %v4588
      %4623 = vmatpush.xpose.msra.mxu0 %v4586
      %4624 = vmatpush.xpose.msra.mxu0 %v4584
      %4625 = vmatpush.xpose.msra.mxu0 %v4582
      %4626 = vmatpush.xpose.msra.mxu0 %v4580
      %4627 = vmatpush.xpose.msra.mxu0 %v4578
      %4628 = vmatpush.xpose.msra.mxu0 %v4576
      %4629 = vmatpush.xpose.msra.mxu0 %v4574
      %4630 = vmatpush.xpose.msra.mxu0 %v4572
      %4631 = vmatpush.xpose.msra.mxu0 %v4570
      %4632 = vmatpush.xpose.msra.mxu0 %v4568
      %4633 = vmatpush.xpose.msra.mxu0 %v4566
      %4634 = vmatpush.xpose.msra.mxu0 %v4564
      %4635 = vmatpush.xpose.msra.mxu0 %v4562
      %4636 = vmatpush.xpose.msra.mxu0 %v4560
      %4637 = vmatpush.xpose.msra.mxu0 %v4558
      %4638 = vmatmul.f32.gmra.mxu0 %v4556
      %v4639 = vpop.f32.mrf.mxu0
      %v4640 = vadd.f32 0.0, %v4639
      %4641 = vdwg.mxu0
      %4642 = vmatpush.xpose.msra.mxu0 %v4620
      %4643 = vmatpush.xpose.msra.mxu0 %v4618
      %4644 = vmatpush.xpose.msra.mxu0 %v4616
      %4645 = vmatpush.xpose.msra.mxu0 %v4614
      %4646 = vmatpush.xpose.msra.mxu0 %v4612
      %4647 = vmatpush.xpose.msra.mxu0 %v4610
      %4648 = vmatpush.xpose.msra.mxu0 %v4608
      %4649 = vmatpush.xpose.msra.mxu0 %v4606
      %4650 = vmatpush.xpose.msra.mxu0 %v4604
      %4651 = vmatpush.xpose.msra.mxu0 %v4602
      %4652 = vmatpush.xpose.msra.mxu0 %v4600
      %4653 = vmatpush.xpose.msra.mxu0 %v4598
      %4654 = vmatpush.xpose.msra.mxu0 %v4596
      %4655 = vmatpush.xpose.msra.mxu0 %v4594
      %4656 = vmatpush.xpose.msra.mxu0 %v4592
      %4657 = vmatpush.xpose.msra.mxu0 %v4590
      %4658 = vmatmul.f32.gmra.mxu0 %v4556
      %v4659 = vpop.f32.mrf.mxu0
      %v4660 = vadd.f32 0.0, %v4659
      %4661 = vdwg.mxu0
      %v4662 = vadd.f32 %v4471, %v4640
      %v4663 = vadd.f32 %v4472, %v4660
      %s4664 = scalar_lea.vmem [#allocation3], 48
      %v4665 = vld [vmem:[%s4664] sm:$0xff]
      %v4666 = vld [vmem:[%s4664 + $0x8] sm:$0xff]
      %v4667 = vld [vmem:[%s4664 + $0x10] sm:$0x3]
      %v4668 = vld [vmem:[%s4664 + $0x18] sm:$0xff]
      %v4669 = vld [vmem:[%s4664 + $0x20] sm:$0xff]
      %v4670 = vld [vmem:[%s4664 + $0x28] sm:$0x3]
      %v4671 = vld [vmem:[%s4664 + $0x30] sm:$0xff]
      %v4672 = vld [vmem:[%s4664 + $0x38] sm:$0xff]
      %v4673 = vld [vmem:[%s4664 + $0x40] sm:$0x3]
      %v4674 = vld [vmem:[%s4664 + $0x48] sm:$0xff]
      %v4675 = vld [vmem:[%s4664 + $0x50] sm:$0xff]
      %v4676 = vld [vmem:[%s4664 + $0x58] sm:$0x3]
      %v4677 = vld [vmem:[%s4664 + $0x60] sm:$0xff]
      %v4678 = vld [vmem:[%s4664 + $0x68] sm:$0xff]
      %v4679 = vld [vmem:[%s4664 + $0x70] sm:$0x3]
      %v4680 = vld [vmem:[%s4664 + $0x78] sm:$0xff]
      %v4681 = vld [vmem:[%s4664 + $0x80] sm:$0xff]
      %v4682 = vld [vmem:[%s4664 + $0x88] sm:$0x3]
      %v4683 = vld [vmem:[%s4664 + $0x90] sm:$0xff]
      %v4684 = vld [vmem:[%s4664 + $0x98] sm:$0xff]
      %v4685 = vld [vmem:[%s4664 + $0xa0] sm:$0x3]
      %v4686 = vld [vmem:[%s4664 + $0xa8] sm:$0xff]
      %v4687 = vld [vmem:[%s4664 + $0xb0] sm:$0xff]
      %v4688 = vld [vmem:[%s4664 + $0xb8] sm:$0x3]
      %v4689 = vld [vmem:[%s4664 + $0xc0] sm:$0xff]
      %v4690 = vld [vmem:[%s4664 + $0xc8] sm:$0xff]
      %v4691 = vld [vmem:[%s4664 + $0xd0] sm:$0x3]
      %v4692 = vld [vmem:[%s4664 + $0xd8] sm:$0xff]
      %v4693 = vld [vmem:[%s4664 + $0xe0] sm:$0xff]
      %v4694 = vld [vmem:[%s4664 + $0xe8] sm:$0x3]
      %v4695 = vld [vmem:[%s4664 + $0xf0] sm:$0xff]
      %v4696 = vld [vmem:[%s4664 + $0xf8] sm:$0xff]
      %v4697 = vld [vmem:[%s4664 + $0x100] sm:$0x3]
      %v4698 = vld [vmem:[%s4664 + $0x108] sm:$0xff]
      %v4699 = vld [vmem:[%s4664 + $0x110] sm:$0xff]
      %v4700 = vld [vmem:[%s4664 + $0x118] sm:$0x3]
      %v4701 = vld [vmem:[%s4664 + $0x120] sm:$0xff]
      %v4702 = vld [vmem:[%s4664 + $0x128] sm:$0xff]
      %v4703 = vld [vmem:[%s4664 + $0x130] sm:$0x3]
      %v4704 = vld [vmem:[%s4664 + $0x138] sm:$0xff]
      %v4705 = vld [vmem:[%s4664 + $0x140] sm:$0xff]
      %v4706 = vld [vmem:[%s4664 + $0x148] sm:$0x3]
      %v4707 = vld [vmem:[%s4664 + $0x150] sm:$0xff]
      %v4708 = vld [vmem:[%s4664 + $0x158] sm:$0xff]
      %v4709 = vld [vmem:[%s4664 + $0x160] sm:$0x3]
      %v4710 = vld [vmem:[%s4664 + $0x168] sm:$0xff]
      %v4711 = vld [vmem:[%s4664 + $0x170] sm:$0xff]
      %v4712 = vld [vmem:[%s4664 + $0x178] sm:$0x3]
      %s4713 = scalar_lea.vmem %s5, 48
      %v4714 = vld [vmem:[%s4713] sm:$0xff]
      %v4716 = vsel %vm405, %v4714, 0
      %v4719 = vsel %vm405, %v4665, 0
      %v4722 = vsel %vm405, %v4666, 0
      %v4725 = vsel %vm405, %v4668, 0
      %v4728 = vsel %vm405, %v4669, 0
      %v4731 = vsel %vm405, %v4671, 0
      %v4734 = vsel %vm405, %v4672, 0
      %v4737 = vsel %vm405, %v4674, 0
      %v4740 = vsel %vm405, %v4675, 0
      %v4743 = vsel %vm405, %v4677, 0
      %v4746 = vsel %vm405, %v4678, 0
      %v4749 = vsel %vm405, %v4680, 0
      %v4752 = vsel %vm405, %v4681, 0
      %v4755 = vsel %vm405, %v4683, 0
      %v4758 = vsel %vm405, %v4684, 0
      %v4761 = vsel %vm405, %v4686, 0
      %v4764 = vsel %vm405, %v4687, 0
      %v4767 = vsel %vm405, %v4689, 0
      %v4770 = vsel %vm405, %v4690, 0
      %v4773 = vsel %vm405, %v4692, 0
      %v4776 = vsel %vm405, %v4693, 0
      %v4779 = vsel %vm405, %v4695, 0
      %v4782 = vsel %vm405, %v4696, 0
      %v4785 = vsel %vm405, %v4698, 0
      %v4788 = vsel %vm405, %v4699, 0
      %v4791 = vsel %vm405, %v4701, 0
      %v4794 = vsel %vm405, %v4702, 0
      %v4797 = vsel %vm405, %v4704, 0
      %v4800 = vsel %vm405, %v4705, 0
      %v4803 = vsel %vm405, %v4707, 0
      %v4806 = vsel %vm405, %v4708, 0
      %v4809 = vsel %vm405, %v4710, 0
      %v4812 = vsel %vm405, %v4711, 0
      %4814 = vmatpush.xpose.msra.mxu0 %v4764
      %4815 = vmatpush.xpose.msra.mxu0 %v4761
      %4816 = vmatpush.xpose.msra.mxu0 %v4758
      %4817 = vmatpush.xpose.msra.mxu0 %v4755
      %4818 = vmatpush.xpose.msra.mxu0 %v4752
      %4819 = vmatpush.xpose.msra.mxu0 %v4749
      %4820 = vmatpush.xpose.msra.mxu0 %v4746
      %4821 = vmatpush.xpose.msra.mxu0 %v4743
      %4822 = vmatpush.xpose.msra.mxu0 %v4740
      %4823 = vmatpush.xpose.msra.mxu0 %v4737
      %4824 = vmatpush.xpose.msra.mxu0 %v4734
      %4825 = vmatpush.xpose.msra.mxu0 %v4731
      %4826 = vmatpush.xpose.msra.mxu0 %v4728
      %4827 = vmatpush.xpose.msra.mxu0 %v4725
      %4828 = vmatpush.xpose.msra.mxu0 %v4722
      %4829 = vmatpush.xpose.msra.mxu0 %v4719
      %4830 = vmatmul.f32.gmra.mxu0 %v4716
      %v4831 = vpop.f32.mrf.mxu0
      %v4832 = vadd.f32 0.0, %v4831
      %4833 = vdwg.mxu0
      %4834 = vmatpush.xpose.msra.mxu0 %v4812
      %4835 = vmatpush.xpose.msra.mxu0 %v4809
      %4836 = vmatpush.xpose.msra.mxu0 %v4806
      %4837 = vmatpush.xpose.msra.mxu0 %v4803
      %4838 = vmatpush.xpose.msra.mxu0 %v4800
      %4839 = vmatpush.xpose.msra.mxu0 %v4797
      %4840 = vmatpush.xpose.msra.mxu0 %v4794
      %4841 = vmatpush.xpose.msra.mxu0 %v4791
      %4842 = vmatpush.xpose.msra.mxu0 %v4788
      %4843 = vmatpush.xpose.msra.mxu0 %v4785
      %4844 = vmatpush.xpose.msra.mxu0 %v4782
      %4845 = vmatpush.xpose.msra.mxu0 %v4779
      %4846 = vmatpush.xpose.msra.mxu0 %v4776
      %4847 = vmatpush.xpose.msra.mxu0 %v4773
      %4848 = vmatpush.xpose.msra.mxu0 %v4770
      %4849 = vmatpush.xpose.msra.mxu0 %v4767
      %4850 = vmatmul.f32.gmra.mxu0 %v4716
      %v4851 = vpop.f32.mrf.mxu0
      %v4852 = vadd.f32 0.0, %v4851
      %4853 = vdwg.mxu0
      %v4854 = vadd.f32 %v4662, %v4832
      %v4855 = vadd.f32 %v4663, %v4852
      %v4872 = vrot.slane %v4665, 1
      %v4873 = vrot.slane %v4666, 1
      %v4874 = vsel %vm732, %v4872, %v4873
      %v4875 = vrot.slane %v4667, 1
      %v4876 = vsel %vm732, %v4873, %v4875
      %v4877 = vrot.slane %v4668, 1
      %v4878 = vrot.slane %v4669, 1
      %v4879 = vsel %vm732, %v4877, %v4878
      %v4880 = vrot.slane %v4670, 1
      %v4881 = vsel %vm732, %v4878, %v4880
      %v4882 = vrot.slane %v4671, 1
      %v4883 = vrot.slane %v4672, 1
      %v4884 = vsel %vm732, %v4882, %v4883
      %v4885 = vrot.slane %v4673, 1
      %v4886 = vsel %vm732, %v4883, %v4885
      %v4887 = vrot.slane %v4674, 1
      %v4888 = vrot.slane %v4675, 1
      %v4889 = vsel %vm732, %v4887, %v4888
      %v4890 = vrot.slane %v4676, 1
      %v4891 = vsel %vm732, %v4888, %v4890
      %v4892 = vrot.slane %v4677, 1
      %v4893 = vrot.slane %v4678, 1
      %v4894 = vsel %vm732, %v4892, %v4893
      %v4895 = vrot.slane %v4679, 1
      %v4896 = vsel %vm732, %v4893, %v4895
      %v4897 = vrot.slane %v4680, 1
      %v4898 = vrot.slane %v4681, 1
      %v4899 = vsel %vm732, %v4897, %v4898
      %v4900 = vrot.slane %v4682, 1
      %v4901 = vsel %vm732, %v4898, %v4900
      %v4902 = vrot.slane %v4683, 1
      %v4903 = vrot.slane %v4684, 1
      %v4904 = vsel %vm732, %v4902, %v4903
      %v4905 = vrot.slane %v4685, 1
      %v4906 = vsel %vm732, %v4903, %v4905
      %v4907 = vrot.slane %v4686, 1
      %v4908 = vrot.slane %v4687, 1
      %v4909 = vsel %vm732, %v4907, %v4908
      %v4910 = vrot.slane %v4688, 1
      %v4911 = vsel %vm732, %v4908, %v4910
      %v4912 = vrot.slane %v4689, 1
      %v4913 = vrot.slane %v4690, 1
      %v4914 = vsel %vm732, %v4912, %v4913
      %v4915 = vrot.slane %v4691, 1
      %v4916 = vsel %vm732, %v4913, %v4915
      %v4917 = vrot.slane %v4692, 1
      %v4918 = vrot.slane %v4693, 1
      %v4919 = vsel %vm732, %v4917, %v4918
      %v4920 = vrot.slane %v4694, 1
      %v4921 = vsel %vm732, %v4918, %v4920
      %v4922 = vrot.slane %v4695, 1
      %v4923 = vrot.slane %v4696, 1
      %v4924 = vsel %vm732, %v4922, %v4923
      %v4925 = vrot.slane %v4697, 1
      %v4926 = vsel %vm732, %v4923, %v4925
      %v4927 = vrot.slane %v4698, 1
      %v4928 = vrot.slane %v4699, 1
      %v4929 = vsel %vm732, %v4927, %v4928
      %v4930 = vrot.slane %v4700, 1
      %v4931 = vsel %vm732, %v4928, %v4930
      %v4932 = vrot.slane %v4701, 1
      %v4933 = vrot.slane %v4702, 1
      %v4934 = vsel %vm732, %v4932, %v4933
      %v4935 = vrot.slane %v4703, 1
      %v4936 = vsel %vm732, %v4933, %v4935
      %v4937 = vrot.slane %v4704, 1
      %v4938 = vrot.slane %v4705, 1
      %v4939 = vsel %vm732, %v4937, %v4938
      %v4940 = vrot.slane %v4706, 1
      %v4941 = vsel %vm732, %v4938, %v4940
      %v4942 = vrot.slane %v4707, 1
      %v4943 = vrot.slane %v4708, 1
      %v4944 = vsel %vm732, %v4942, %v4943
      %v4945 = vrot.slane %v4709, 1
      %v4946 = vsel %vm732, %v4943, %v4945
      %v4947 = vrot.slane %v4710, 1
      %v4948 = vrot.slane %v4711, 1
      %v4949 = vsel %vm732, %v4947, %v4948
      %v4950 = vrot.slane %v4712, 1
      %v4951 = vsel %vm732, %v4948, %v4950
      %s4952 = scalar_lea.vmem %s5, 56
      %v4953 = vld [vmem:[%s4952] sm:$0xff]
      %v4955 = vsel %vm405, %v4953, 0
      %v4957 = vsel %vm405, %v4874, 0
      %v4959 = vsel %vm405, %v4876, 0
      %v4961 = vsel %vm405, %v4879, 0
      %v4963 = vsel %vm405, %v4881, 0
      %v4965 = vsel %vm405, %v4884, 0
      %v4967 = vsel %vm405, %v4886, 0
      %v4969 = vsel %vm405, %v4889, 0
      %v4971 = vsel %vm405, %v4891, 0
      %v4973 = vsel %vm405, %v4894, 0
      %v4975 = vsel %vm405, %v4896, 0
      %v4977 = vsel %vm405, %v4899, 0
      %v4979 = vsel %vm405, %v4901, 0
      %v4981 = vsel %vm405, %v4904, 0
      %v4983 = vsel %vm405, %v4906, 0
      %v4985 = vsel %vm405, %v4909, 0
      %v4987 = vsel %vm405, %v4911, 0
      %v4989 = vsel %vm405, %v4914, 0
      %v4991 = vsel %vm405, %v4916, 0
      %v4993 = vsel %vm405, %v4919, 0
      %v4995 = vsel %vm405, %v4921, 0
      %v4997 = vsel %vm405, %v4924, 0
      %v4999 = vsel %vm405, %v4926, 0
      %v5001 = vsel %vm405, %v4929, 0
      %v5003 = vsel %vm405, %v4931, 0
      %v5005 = vsel %vm405, %v4934, 0
      %v5007 = vsel %vm405, %v4936, 0
      %v5009 = vsel %vm405, %v4939, 0
      %v5011 = vsel %vm405, %v4941, 0
      %v5013 = vsel %vm405, %v4944, 0
      %v5015 = vsel %vm405, %v4946, 0
      %v5017 = vsel %vm405, %v4949, 0
      %v5019 = vsel %vm405, %v4951, 0
      %5021 = vmatpush.xpose.msra.mxu0 %v4987
      %5022 = vmatpush.xpose.msra.mxu0 %v4985
      %5023 = vmatpush.xpose.msra.mxu0 %v4983
      %5024 = vmatpush.xpose.msra.mxu0 %v4981
      %5025 = vmatpush.xpose.msra.mxu0 %v4979
      %5026 = vmatpush.xpose.msra.mxu0 %v4977
      %5027 = vmatpush.xpose.msra.mxu0 %v4975
      %5028 = vmatpush.xpose.msra.mxu0 %v4973
      %5029 = vmatpush.xpose.msra.mxu0 %v4971
      %5030 = vmatpush.xpose.msra.mxu0 %v4969
      %5031 = vmatpush.xpose.msra.mxu0 %v4967
      %5032 = vmatpush.xpose.msra.mxu0 %v4965
      %5033 = vmatpush.xpose.msra.mxu0 %v4963
      %5034 = vmatpush.xpose.msra.mxu0 %v4961
      %5035 = vmatpush.xpose.msra.mxu0 %v4959
      %5036 = vmatpush.xpose.msra.mxu0 %v4957
      %5037 = vmatmul.f32.gmra.mxu0 %v4955
      %v5038 = vpop.f32.mrf.mxu0
      %v5039 = vadd.f32 0.0, %v5038
      %5040 = vdwg.mxu0
      %5041 = vmatpush.xpose.msra.mxu0 %v5019
      %5042 = vmatpush.xpose.msra.mxu0 %v5017
      %5043 = vmatpush.xpose.msra.mxu0 %v5015
      %5044 = vmatpush.xpose.msra.mxu0 %v5013
      %5045 = vmatpush.xpose.msra.mxu0 %v5011
      %5046 = vmatpush.xpose.msra.mxu0 %v5009
      %5047 = vmatpush.xpose.msra.mxu0 %v5007
      %5048 = vmatpush.xpose.msra.mxu0 %v5005
      %5049 = vmatpush.xpose.msra.mxu0 %v5003
      %5050 = vmatpush.xpose.msra.mxu0 %v5001
      %5051 = vmatpush.xpose.msra.mxu0 %v4999
      %5052 = vmatpush.xpose.msra.mxu0 %v4997
      %5053 = vmatpush.xpose.msra.mxu0 %v4995
      %5054 = vmatpush.xpose.msra.mxu0 %v4993
      %5055 = vmatpush.xpose.msra.mxu0 %v4991
      %5056 = vmatpush.xpose.msra.mxu0 %v4989
      %5057 = vmatmul.f32.gmra.mxu0 %v4955
      %v5058 = vpop.f32.mrf.mxu0
      %v5059 = vadd.f32 0.0, %v5058
      %5060 = vdwg.mxu0
      %v5061 = vadd.f32 %v4854, %v5039
      %v5062 = vadd.f32 %v4855, %v5059
      %v5063 = vrot.slane %v4665, 2
      %v5064 = vrot.slane %v4666, 2
      %v5065 = vsel %vm1170, %v5063, %v5064
      %v5066 = vrot.slane %v4667, 2
      %v5067 = vsel %vm1170, %v5064, %v5066
      %v5068 = vrot.slane %v4668, 2
      %v5069 = vrot.slane %v4669, 2
      %v5070 = vsel %vm1170, %v5068, %v5069
      %v5071 = vrot.slane %v4670, 2
      %v5072 = vsel %vm1170, %v5069, %v5071
      %v5073 = vrot.slane %v4671, 2
      %v5074 = vrot.slane %v4672, 2
      %v5075 = vsel %vm1170, %v5073, %v5074
      %v5076 = vrot.slane %v4673, 2
      %v5077 = vsel %vm1170, %v5074, %v5076
      %v5078 = vrot.slane %v4674, 2
      %v5079 = vrot.slane %v4675, 2
      %v5080 = vsel %vm1170, %v5078, %v5079
      %v5081 = vrot.slane %v4676, 2
      %v5082 = vsel %vm1170, %v5079, %v5081
      %v5083 = vrot.slane %v4677, 2
      %v5084 = vrot.slane %v4678, 2
      %v5085 = vsel %vm1170, %v5083, %v5084
      %v5086 = vrot.slane %v4679, 2
      %v5087 = vsel %vm1170, %v5084, %v5086
      %v5088 = vrot.slane %v4680, 2
      %v5089 = vrot.slane %v4681, 2
      %v5090 = vsel %vm1170, %v5088, %v5089
      %v5091 = vrot.slane %v4682, 2
      %v5092 = vsel %vm1170, %v5089, %v5091
      %v5093 = vrot.slane %v4683, 2
      %v5094 = vrot.slane %v4684, 2
      %v5095 = vsel %vm1170, %v5093, %v5094
      %v5096 = vrot.slane %v4685, 2
      %v5097 = vsel %vm1170, %v5094, %v5096
      %v5098 = vrot.slane %v4686, 2
      %v5099 = vrot.slane %v4687, 2
      %v5100 = vsel %vm1170, %v5098, %v5099
      %v5101 = vrot.slane %v4688, 2
      %v5102 = vsel %vm1170, %v5099, %v5101
      %v5103 = vrot.slane %v4689, 2
      %v5104 = vrot.slane %v4690, 2
      %v5105 = vsel %vm1170, %v5103, %v5104
      %v5106 = vrot.slane %v4691, 2
      %v5107 = vsel %vm1170, %v5104, %v5106
      %v5108 = vrot.slane %v4692, 2
      %v5109 = vrot.slane %v4693, 2
      %v5110 = vsel %vm1170, %v5108, %v5109
      %v5111 = vrot.slane %v4694, 2
      %v5112 = vsel %vm1170, %v5109, %v5111
      %v5113 = vrot.slane %v4695, 2
      %v5114 = vrot.slane %v4696, 2
      %v5115 = vsel %vm1170, %v5113, %v5114
      %v5116 = vrot.slane %v4697, 2
      %v5117 = vsel %vm1170, %v5114, %v5116
      %v5118 = vrot.slane %v4698, 2
      %v5119 = vrot.slane %v4699, 2
      %v5120 = vsel %vm1170, %v5118, %v5119
      %v5121 = vrot.slane %v4700, 2
      %v5122 = vsel %vm1170, %v5119, %v5121
      %v5123 = vrot.slane %v4701, 2
      %v5124 = vrot.slane %v4702, 2
      %v5125 = vsel %vm1170, %v5123, %v5124
      %v5126 = vrot.slane %v4703, 2
      %v5127 = vsel %vm1170, %v5124, %v5126
      %v5128 = vrot.slane %v4704, 2
      %v5129 = vrot.slane %v4705, 2
      %v5130 = vsel %vm1170, %v5128, %v5129
      %v5131 = vrot.slane %v4706, 2
      %v5132 = vsel %vm1170, %v5129, %v5131
      %v5133 = vrot.slane %v4707, 2
      %v5134 = vrot.slane %v4708, 2
      %v5135 = vsel %vm1170, %v5133, %v5134
      %v5136 = vrot.slane %v4709, 2
      %v5137 = vsel %vm1170, %v5134, %v5136
      %v5138 = vrot.slane %v4710, 2
      %v5139 = vrot.slane %v4711, 2
      %v5140 = vsel %vm1170, %v5138, %v5139
      %v5141 = vrot.slane %v4712, 2
      %v5142 = vsel %vm1170, %v5139, %v5141
      %s5143 = scalar_lea.vmem %s5, 64
      %v5144 = vld [vmem:[%s5143] sm:$0xff]
      %v5146 = vsel %vm405, %v5144, 0
      %v5148 = vsel %vm405, %v5065, 0
      %v5150 = vsel %vm405, %v5067, 0
      %v5152 = vsel %vm405, %v5070, 0
      %v5154 = vsel %vm405, %v5072, 0
      %v5156 = vsel %vm405, %v5075, 0
      %v5158 = vsel %vm405, %v5077, 0
      %v5160 = vsel %vm405, %v5080, 0
      %v5162 = vsel %vm405, %v5082, 0
      %v5164 = vsel %vm405, %v5085, 0
      %v5166 = vsel %vm405, %v5087, 0
      %v5168 = vsel %vm405, %v5090, 0
      %v5170 = vsel %vm405, %v5092, 0
      %v5172 = vsel %vm405, %v5095, 0
      %v5174 = vsel %vm405, %v5097, 0
      %v5176 = vsel %vm405, %v5100, 0
      %v5178 = vsel %vm405, %v5102, 0
      %v5180 = vsel %vm405, %v5105, 0
      %v5182 = vsel %vm405, %v5107, 0
      %v5184 = vsel %vm405, %v5110, 0
      %v5186 = vsel %vm405, %v5112, 0
      %v5188 = vsel %vm405, %v5115, 0
      %v5190 = vsel %vm405, %v5117, 0
      %v5192 = vsel %vm405, %v5120, 0
      %v5194 = vsel %vm405, %v5122, 0
      %v5196 = vsel %vm405, %v5125, 0
      %v5198 = vsel %vm405, %v5127, 0
      %v5200 = vsel %vm405, %v5130, 0
      %v5202 = vsel %vm405, %v5132, 0
      %v5204 = vsel %vm405, %v5135, 0
      %v5206 = vsel %vm405, %v5137, 0
      %v5208 = vsel %vm405, %v5140, 0
      %v5210 = vsel %vm405, %v5142, 0
      %5212 = vmatpush.xpose.msra.mxu0 %v5178
      %5213 = vmatpush.xpose.msra.mxu0 %v5176
      %5214 = vmatpush.xpose.msra.mxu0 %v5174
      %5215 = vmatpush.xpose.msra.mxu0 %v5172
      %5216 = vmatpush.xpose.msra.mxu0 %v5170
      %5217 = vmatpush.xpose.msra.mxu0 %v5168
      %5218 = vmatpush.xpose.msra.mxu0 %v5166
      %5219 = vmatpush.xpose.msra.mxu0 %v5164
      %5220 = vmatpush.xpose.msra.mxu0 %v5162
      %5221 = vmatpush.xpose.msra.mxu0 %v5160
      %5222 = vmatpush.xpose.msra.mxu0 %v5158
      %5223 = vmatpush.xpose.msra.mxu0 %v5156
      %5224 = vmatpush.xpose.msra.mxu0 %v5154
      %5225 = vmatpush.xpose.msra.mxu0 %v5152
      %5226 = vmatpush.xpose.msra.mxu0 %v5150
      %5227 = vmatpush.xpose.msra.mxu0 %v5148
      %5228 = vmatmul.f32.gmra.mxu0 %v5146
      %v5229 = vpop.f32.mrf.mxu0
      %v5230 = vadd.f32 0.0, %v5229
      %5231 = vdwg.mxu0
      %5232 = vmatpush.xpose.msra.mxu0 %v5210
      %5233 = vmatpush.xpose.msra.mxu0 %v5208
      %5234 = vmatpush.xpose.msra.mxu0 %v5206
      %5235 = vmatpush.xpose.msra.mxu0 %v5204
      %5236 = vmatpush.xpose.msra.mxu0 %v5202
      %5237 = vmatpush.xpose.msra.mxu0 %v5200
      %5238 = vmatpush.xpose.msra.mxu0 %v5198
      %5239 = vmatpush.xpose.msra.mxu0 %v5196
      %5240 = vmatpush.xpose.msra.mxu0 %v5194
      %5241 = vmatpush.xpose.msra.mxu0 %v5192
      %5242 = vmatpush.xpose.msra.mxu0 %v5190
      %5243 = vmatpush.xpose.msra.mxu0 %v5188
      %5244 = vmatpush.xpose.msra.mxu0 %v5186
      %5245 = vmatpush.xpose.msra.mxu0 %v5184
      %5246 = vmatpush.xpose.msra.mxu0 %v5182
      %5247 = vmatpush.xpose.msra.mxu0 %v5180
      %5248 = vmatmul.f32.gmra.mxu0 %v5146
      %v5249 = vpop.f32.mrf.mxu0
      %v5250 = vadd.f32 0.0, %v5249
      %5251 = vdwg.mxu0
      %v5252 = vadd.f32 %v5061, %v5230
      %v5253 = vadd.f32 %v5062, %v5250
      %v5254 = vld [vmem:[%s6] sm:$0xff]
      %5256 = vset.pattern.permute.xlu0 0
      %5257 = vperm.xlu0 %5256, %v5254
      %v5258 = vpop.permute.xlu0 %5257
      %v5260 = vmul.f32 %v5252, %v5258
      %v5261 = vmul.f32 %v5253, %v5258
      %v5262 = vld [vmem:[%s7] sm:$0xff]
      %5264 = vset.pattern.permute.xlu0 0
      %5265 = vperm.xlu0 %5264, %v5262
      %v5266 = vpop.permute.xlu0 %5265
      %v5268 = vadd.f32 %v5260, %v5266
      %v5269 = vadd.f32 %v5261, %v5266
      %vm5270 = vcmp.ge.f32.partialorder %v5268, 0.0
      %vm5271 = vcmp.ge.f32.partialorder %v5269, 0.0
      %v5272 = vmul.f32 %v5268, 0.01
      %v5273 = vmul.f32 %v5269, 0.01
      %v5274 = vsel %vm5270, %v5268, %v5272
      %v5275 = vsel %vm5271, %v5269, %v5273
      %5276 = vst [vmem:[%s325] sm:$0xff] %v5274
      %5277 = vst [vmem:[%s325 + $0x8] sm:$0xff] %v5275
      %p5278 = scmp.lt.s32.totalorder %s19, 1
      %s5279 = scalar_select %p5278, %s19, 1
      %s5280 = smul.addr %s5279, 2
      %s5281 = smul.addr %s5280, 8
      %s5282 = scalar_lea.vmem %s8, %s5281
      // Predicated region
      $region53: #{up_forward.3} parent=51 // pred_check
        %p5283 = pneg %p215
      $region54: #{up_forward.3} parent=51 // pred_check_branch
        %5285 = sbr.rel (%p5283) target = $region56
      $region55: #{up_forward.3} parent=51 // pred_region
        _
      $region56: #{up_forward.3} parent=51 // pred_fallthru
        _
    $region52: #{up_forward.3} parent=5 // pred_fallthru
      _
    %p5286 = scmp.le.s32.totalorder 2, %s14
    // Predicated region
    $region57: #{up_forward.3} parent=5 // pred_check
      %p5287 = pneg %p5286
    $region58: #{up_forward.3} parent=5 // pred_check_branch
      %5289 = sbr.rel (%p5287) target = $region60
    $region59: #{up_forward.3} parent=5 // pred_region
      %s5290 = ssub.s32 %s14, 2
      // Predicated region
      $region61: #{up_forward.3} parent=59 // pred_check
        %p5291 = pneg %p221
      $region62: #{up_forward.3} parent=59 // pred_check_branch
        %5293 = sbr.rel (%p5291) target = $region64
      $region63: #{up_forward.3} parent=59 // pred_region
        %p5294 = scmp.lt.s32.totalorder %s20, 1
        %s5295 = scalar_select %p5294, %s20, 1
        %s5296 = smul.addr %s5295, 2
        %s5297 = smul.addr %s5296, 8
        %s5298 = scalar_lea.vmem %s8, %s5297
      $region64: #{up_forward.3} parent=59 // pred_fallthru
        _
    $region60: #{up_forward.3} parent=5 // pred_fallthru
      _
  $region6: #{up_forward.3} parent=0 // loop_footer
    %s18 = sadd.s32 1, %s14
  $region7: #{up_forward.3} parent=0 // loop_footer_branch
    %13 = sbr.rel target = $region3
  $region8: #{up_forward.3} parent=0 // loop_exit
    _

</llo_original>
